<compile_context>
chip_gen: v7x
topology: tpu7x:2x2x1
jax: 0.10.0
libtpu: 0.0.40
codegen_flags: <defaults>
</compile_context>

<pallas_src>
import functools
import math

import jax
import jax.numpy as jnp
from jax.experimental import pallas as pl
from jax.experimental.pallas import tpu as pltpu


# ----------------------------------------------------------------------------
# Fused encoder kernel (one grid step per layer)
# ----------------------------------------------------------------------------

def _encoder_kernel(x0_ref, cos_ref, sin_ref,
                    wqkv_ref, bqkv_ref, wo_ref, bo_ref, ln1g_ref, ln1b_ref,
                    w1_ref, b1_ref, w2_ref, b2_ref, ln2g_ref, ln2b_ref,
                    o_ref,
                    *, B, S, H, dh, D, half, eps, scale):
    l = pl.program_id(0)

    # --- step-0 prologue: rotary positional encoding into the residual ref ---
    @pl.when(l == 0)
    def _():
        x0 = x0_ref[...]                      # (B*S, D) f32, columns [even|odd]
        x1 = x0[:, :half]
        x2 = x0[:, half:]
        c = jnp.concatenate([cos_ref[...]] * B, axis=0)   # (B*S, D/2)
        s = jnp.concatenate([sin_ref[...]] * B, axis=0)
        o_ref[:, :half] = x1 * c - x2 * s     # two direct half stores
        o_ref[:, half:] = x1 * s + x2 * c

    # Residual stream is VMEM-resident in o_ref across all layer steps.
    x = o_ref[...]                            # (B*S, D) f32
    xb = x.astype(jnp.bfloat16)

    def layer_norm(y, g, b):
        mu = jnp.mean(y, axis=-1, keepdims=True)
        d = y - mu
        var = jnp.mean(d * d, axis=-1, keepdims=True)
        return d * jax.lax.rsqrt(var + eps) * g + b

    # --- fused QKV projection (bf16 MXU inputs, f32 accumulation) ------------
    qkv = jnp.dot(xb, wqkv_ref[0], preferred_element_type=jnp.float32)
    qkv = (qkv + bqkv_ref[0]).astype(jnp.bfloat16)        # (B*S, 3D)

    # --- multi-head attention: heads as static lane slices, fully unrolled ---
    batch_out = []
    for b in range(B):
        r0, r1 = b * S, (b + 1) * S
        head_out = []
        for h in range(H):
            c0 = h * dh
            q = qkv[r0:r1, c0:c0 + dh]                    # (S, dh) bf16
            k = qkv[r0:r1, D + c0:D + c0 + dh]
            v = qkv[r0:r1, 2 * D + c0:2 * D + c0 + dh]
            sc = jax.lax.dot_general(q, k, (((1,), (1,)), ((), ())),
                                     preferred_element_type=jnp.float32) * scale
            m = jnp.max(sc, axis=-1, keepdims=True)
            p = jnp.exp(sc - m)
            p = p * pl.reciprocal(jnp.sum(p, axis=-1, keepdims=True), approx=True)
            head_out.append(jnp.dot(p.astype(jnp.bfloat16), v,
                                    preferred_element_type=jnp.float32))
        batch_out.append(jnp.concatenate(head_out, axis=-1))     # (S, D)
    attn = jnp.concatenate(batch_out, axis=0)                    # (B*S, D) f32

    # --- out-proj + residual + post-LN ----------------------------------------
    y = jnp.dot(attn.astype(jnp.bfloat16), wo_ref[0],
                preferred_element_type=jnp.float32) + bo_ref[0] + x
    x = layer_norm(y, ln1g_ref[0], ln1b_ref[0])

    # --- feed-forward (ReLU) + residual + post-LN -----------------------------
    hidden = jnp.dot(x.astype(jnp.bfloat16), w1_ref[0],
                     preferred_element_type=jnp.float32) + b1_ref[0]
    hidden = jnp.maximum(hidden, 0.0).astype(jnp.bfloat16)
    y = jnp.dot(hidden, w2_ref[0],
                preferred_element_type=jnp.float32) + b2_ref[0] + x
    o_ref[...] = layer_norm(y, ln2g_ref[0], ln2b_ref[0])


# ----------------------------------------------------------------------------
# Parameters (PyTorch-layout init, then one-time re-layout for the kernel)
# ----------------------------------------------------------------------------

def init_params(key, *, vocab_size, embed_dim, num_layers, ff_dim):
    keys = jax.random.split(key, 1 + num_layers)
    params = {"embed": jax.random.normal(keys[0], (vocab_size, embed_dim),
                                         jnp.float32)}
    D, F = embed_dim, ff_dim
    layers = []
    for li in range(num_layers):
        k = jax.random.split(keys[1 + li], 6)
        xav = math.sqrt(6.0 / (D + D))       # xavier_uniform for in_proj
        b_o = 1.0 / math.sqrt(D)
        b_1 = 1.0 / math.sqrt(D)
        b_2 = 1.0 / math.sqrt(F)
        layers.append({
            "in_proj_w": jax.random.uniform(k[0], (3 * D, D), jnp.float32, -xav, xav),
            "in_proj_b": jnp.zeros((3 * D,), jnp.float32),
            "out_proj_w": jax.random.uniform(k[1], (D, D), jnp.float32, -b_o, b_o),
            "out_proj_b": jnp.zeros((D,), jnp.float32),
            "ln1_g": jnp.ones((D,), jnp.float32), "ln1_b": jnp.zeros((D,), jnp.float32),
            "lin1_w": jax.random.uniform(k[2], (F, D), jnp.float32, -b_1, b_1),
            "lin1_b": jax.random.uniform(k[3], (F,), jnp.float32, -b_1, b_1),
            "lin2_w": jax.random.uniform(k[4], (D, F), jnp.float32, -b_2, b_2),
            "lin2_b": jax.random.uniform(k[5], (D,), jnp.float32, -b_2, b_2),
            "ln2_g": jnp.ones((D,), jnp.float32), "ln2_b": jnp.zeros((D,), jnp.float32),
        })
    params["layers"] = layers
    return params


def prep_params(params):
    """One-time re-layout: stack per-layer weights along a leading L axis,
    transpose Linear weights to (in, out) + bf16 cast, biases/LN params to
    (L, 1, N), embedding columns permuted to [even | odd] (matches torch's
    0::2 / 1::2 RoPE gather; torch's RoPE output is in this order too)."""
    emb = params["embed"]
    out = {"embed": jnp.concatenate([emb[:, 0::2], emb[:, 1::2]], axis=1)}
    L = params["layers"]

    def stk(fn):
        return jnp.stack([fn(p) for p in L], axis=0)

    out["wqkv"]  = stk(lambda p: p["in_proj_w"].T.astype(jnp.bfloat16))   # (L, D, 3D)
    out["bqkv"]  = stk(lambda p: p["in_proj_b"].reshape(1, -1))           # (L, 1, 3D)
    out["wo"]    = stk(lambda p: p["out_proj_w"].T.astype(jnp.bfloat16))  # (L, D, D)
    out["bo"]    = stk(lambda p: p["out_proj_b"].reshape(1, -1))
    out["ln1_g"] = stk(lambda p: p["ln1_g"].reshape(1, -1))
    out["ln1_b"] = stk(lambda p: p["ln1_b"].reshape(1, -1))
    out["w1"]    = stk(lambda p: p["lin1_w"].T.astype(jnp.bfloat16))      # (L, D, F)
    out["b1"]    = stk(lambda p: p["lin1_b"].reshape(1, -1))
    out["w2"]    = stk(lambda p: p["lin2_w"].T.astype(jnp.bfloat16))      # (L, F, D)
    out["b2"]    = stk(lambda p: p["lin2_b"].reshape(1, -1))
    out["ln2_g"] = stk(lambda p: p["ln2_g"].reshape(1, -1))
    out["ln2_b"] = stk(lambda p: p["ln2_b"].reshape(1, -1))
    return out


# ----------------------------------------------------------------------------
# Forward pass (matches TextEncoder.forward in eval mode)
# ----------------------------------------------------------------------------

def text_encoder(params, input_ids, *, num_heads, eps=1e-5):
    B, S = input_ids.shape
    emb = params["embed"]
    D = emb.shape[1]
    H = num_heads
    assert D % H == 0
    dh = D // H
    half = D // 2
    BS = B * S
    L = params["wqkv"].shape[0]
    F = params["w1"].shape[2]

    # Embedding lookup — data-dependent row gather stays in XLA.
    # TODO(synk): could move into Pallas with PrefetchScalarGridSpec +
    # pl.Element row gather, but at these sizes the per-row grid overhead
    # outweighs the benefit.
    x0 = jnp.take(emb, input_ids.reshape(-1), axis=0)            # (B*S, D) f32

    # cos/sin tables at (S, D/2); replicated across batch inside the kernel.
    inv_freq = 1.0 / (10000.0 ** (jnp.arange(0, D, 2, dtype=jnp.float32) / D))
    pos = jnp.arange(S, dtype=jnp.float32)
    sinusoid = pos[:, None] * inv_freq[None, :]                  # (S, D/2)
    cos = jnp.cos(sinusoid)
    sin = jnp.sin(sinusoid)

    kernel = functools.partial(_encoder_kernel, B=B, S=S, H=H, dh=dh, D=D,
                               half=half, eps=eps, scale=1.0 / math.sqrt(dh))

    def full(shape):
        nd = len(shape)
        return pl.BlockSpec(shape, lambda l, _nd=nd: (0,) * _nd)

    def per_layer(shape):
        nd = len(shape)
        return pl.BlockSpec((1,) + shape, lambda l, _nd=nd: (l,) + (0,) * _nd)

    grid_spec = pltpu.PrefetchScalarGridSpec(
        num_scalar_prefetch=0,
        grid=(L,),
        in_specs=[
            full((BS, D)),            # x0 (post-embedding, pre-RoPE)
            full((S, half)),          # cos
            full((S, half)),          # sin
            per_layer((D, 3 * D)),    # wqkv
            per_layer((1, 3 * D)),    # bqkv
            per_layer((D, D)),        # wo
            per_layer((1, D)),        # bo
            per_layer((1, D)),        # ln1_g
            per_layer((1, D)),        # ln1_b
            per_layer((D, F)),        # w1
            per_layer((1, F)),        # b1
            per_layer((F, D)),        # w2
            per_layer((1, D)),        # b2
            per_layer((1, D)),        # ln2_g
            per_layer((1, D)),        # ln2_b
        ],
        out_specs=pl.BlockSpec((BS, D), lambda l: (0, 0)),   # VMEM-resident
    )

    out = pl.pallas_call(
        kernel,
        out_shape=jax.ShapeDtypeStruct((BS, D), jnp.float32),
        grid_spec=grid_spec,
        compiler_params=pltpu.CompilerParams(
            dimension_semantics=("arbitrary",),       # layers are sequential
            vmem_limit_bytes=32 * 1024 * 1024,
        ),
    )(x0, cos, sin,
      params["wqkv"], params["bqkv"], params["wo"], params["bo"],
      params["ln1_g"], params["ln1_b"], params["w1"], params["b1"],
      params["w2"], params["b2"], params["ln2_g"], params["ln2_b"])

    return out.reshape(B, S, D)


if __name__ == "__main__":
    vocab_size = 1000
    embed_dim = 128
    num_layers = 2
    num_heads = 4
    ff_dim = 256
    B, S = 2, 64

    key = jax.random.PRNGKey(0)
    kp, kx = jax.random.split(key)
    params = prep_params(init_params(kp, vocab_size=vocab_size,
                                     embed_dim=embed_dim,
                                     num_layers=num_layers, ff_dim=ff_dim))
    input_ids = jax.random.randint(kx, (B, S), 0, vocab_size, dtype=jnp.int32)

    fwd = jax.jit(functools.partial(text_encoder, num_heads=num_heads))
    out = fwd(params, input_ids)
    jax.block_until_ready(out)
    assert out.shape == (B, S, embed_dim)
    assert out.dtype == jnp.float32
    print("KERNEL_OK")
</pallas_src>

<mosaic_0001>
module attributes {stable_mosaic.version = 11 : i64} {
  func.func @_encoder_kernel(%arg0: i32, %arg1: memref<128x128xf32, #tpu.memory_space<vmem>>, %arg2: memref<64x64xf32, #tpu.memory_space<vmem>>, %arg3: memref<64x64xf32, #tpu.memory_space<vmem>>, %arg4: memref<1x128x384xbf16, #tpu.memory_space<vmem>>, %arg5: memref<1x1x384xf32, #tpu.memory_space<vmem>>, %arg6: memref<1x128x128xbf16, #tpu.memory_space<vmem>>, %arg7: memref<1x1x128xf32, #tpu.memory_space<vmem>>, %arg8: memref<1x1x128xf32, #tpu.memory_space<vmem>>, %arg9: memref<1x1x128xf32, #tpu.memory_space<vmem>>, %arg10: memref<1x128x256xbf16, #tpu.memory_space<vmem>>, %arg11: memref<1x1x256xf32, #tpu.memory_space<vmem>>, %arg12: memref<1x256x128xbf16, #tpu.memory_space<vmem>>, %arg13: memref<1x1x128xf32, #tpu.memory_space<vmem>>, %arg14: memref<1x1x128xf32, #tpu.memory_space<vmem>>, %arg15: memref<1x1x128xf32, #tpu.memory_space<vmem>>, %arg16: memref<128x128xf32, #tpu.memory_space<vmem>>) attributes {dimension_semantics = [#tpu.dimension_semantics<arbitrary>], iteration_bounds = array<i64: 2>, scalar_prefetch = 0 : i64, scratch_operands = 0 : i64, tpu.core_type = #tpu.core_type<tc>, window_params = [{pipeline_mode = #tpu.pipeline_mode<synchronous>, transform_indices = @transform_0, window_bounds = array<i64: 128, 128>}, {pipeline_mode = #tpu.pipeline_mode<synchronous>, transform_indices = @transform_1, window_bounds = array<i64: 64, 64>}, {pipeline_mode = #tpu.pipeline_mode<synchronous>, transform_indices = @transform_2, window_bounds = array<i64: 64, 64>}, {transform_indices = @transform_3, window_bounds = array<i64: 1, 128, 384>}, {transform_indices = @transform_4, window_bounds = array<i64: 1, 1, 384>}, {transform_indices = @transform_5, window_bounds = array<i64: 1, 128, 128>}, {transform_indices = @transform_6, window_bounds = array<i64: 1, 1, 128>}, {transform_indices = @transform_7, window_bounds = array<i64: 1, 1, 128>}, {transform_indices = @transform_8, window_bounds = array<i64: 1, 1, 128>}, {transform_indices = @transform_9, window_bounds = array<i64: 1, 128, 256>}, {transform_indices = @transform_10, window_bounds = array<i64: 1, 1, 256>}, {transform_indices = @transform_11, window_bounds = array<i64: 1, 256, 128>}, {transform_indices = @transform_12, window_bounds = array<i64: 1, 1, 128>}, {transform_indices = @transform_13, window_bounds = array<i64: 1, 1, 128>}, {transform_indices = @transform_14, window_bounds = array<i64: 1, 1, 128>}, {pipeline_mode = #tpu.pipeline_mode<synchronous>, transform_indices = @transform_15, window_bounds = array<i64: 128, 128>}]} {
    %c0_i32 = arith.constant 0 : i32
    %0 = arith.cmpi eq, %arg0, %c0_i32 : i32
    %1 = arith.extui %0 : i1 to i32
    %c0_i32_0 = arith.constant 0 : i32
    %2 = arith.cmpi ne, %1, %c0_i32_0 : i32
    scf.if %2 {
      %c0_94 = arith.constant 0 : index
      %c0_95 = arith.constant 0 : index
      %237 = vector.load %arg1[%c0_94, %c0_95] : memref<128x128xf32, #tpu.memory_space<vmem>>, vector<128x128xf32>
      %238 = vector.extract_strided_slice %237 {offsets = [0, 0], sizes = [128, 64], strides = [1, 1]} : vector<128x128xf32> to vector<128x64xf32>
      %239 = vector.extract_strided_slice %237 {offsets = [0, 64], sizes = [128, 64], strides = [1, 1]} : vector<128x128xf32> to vector<128x64xf32>
      %c0_96 = arith.constant 0 : index
      %c0_97 = arith.constant 0 : index
      %240 = vector.load %arg2[%c0_96, %c0_97] : memref<64x64xf32, #tpu.memory_space<vmem>>, vector<64x64xf32>
      %241 = tpu.concatenate %240, %240 in 0 : vector<64x64xf32>, vector<64x64xf32> -> vector<128x64xf32>
      %c0_98 = arith.constant 0 : index
      %c0_99 = arith.constant 0 : index
      %242 = vector.load %arg3[%c0_98, %c0_99] : memref<64x64xf32, #tpu.memory_space<vmem>>, vector<64x64xf32>
      %243 = tpu.concatenate %242, %242 in 0 : vector<64x64xf32>, vector<64x64xf32> -> vector<128x64xf32>
      %244 = arith.mulf %238, %241 : vector<128x64xf32>
      %245 = arith.mulf %239, %243 : vector<128x64xf32>
      %246 = arith.subf %244, %245 : vector<128x64xf32>
      %c0_100 = arith.constant 0 : index
      %c0_101 = arith.constant 0 : index
      %247 = vector.load %arg16[%c0_100, %c0_101] : memref<128x128xf32, #tpu.memory_space<vmem>>, vector<128x64xf32>
      tpu.vector_store %arg16[%c0_100, %c0_101], %246 {strides = array<i32>} : memref<128x128xf32, #tpu.memory_space<vmem>>, vector<128x64xf32>,
      %248 = arith.mulf %238, %243 : vector<128x64xf32>
      %249 = arith.mulf %239, %241 : vector<128x64xf32>
      %250 = arith.addf %248, %249 : vector<128x64xf32>
      %c0_102 = arith.constant 0 : index
      %c64 = arith.constant 64 : index
      %251 = vector.load %arg16[%c0_102, %c64] : memref<128x128xf32, #tpu.memory_space<vmem>>, vector<128x64xf32>
      tpu.vector_store %arg16[%c0_102, %c64], %250 {strides = array<i32>} : memref<128x128xf32, #tpu.memory_space<vmem>>, vector<128x64xf32>,
    } else {
    }
    %c0 = arith.constant 0 : index
    %c0_1 = arith.constant 0 : index
    %3 = vector.load %arg16[%c0, %c0_1] : memref<128x128xf32, #tpu.memory_space<vmem>>, vector<128x128xf32>
    %4 = arith.truncf %3 : vector<128x128xf32> to vector<128x128xbf16>
    %c0_2 = arith.constant 0 : index
    %c0_3 = arith.constant 0 : index
    %c0_4 = arith.constant 0 : index
    %5 = vector.load %arg4[%c0_2, %c0_3, %c0_4] : memref<1x128x384xbf16, #tpu.memory_space<vmem>>, vector<1x128x384xbf16>
    %6 = vector.shape_cast %5 : vector<1x128x384xbf16> to vector<128x384xbf16>
    %cst = arith.constant dense<0.000000e+00> : vector<128x384xf32>
    %7 = tpu.matmul %4, %6, %cst {dimension_numbers = #tpu.dot_dimension_numbers<[1], [0], [0], [1], [0, 0, 1, 1], [], []>} : vector<128x128xbf16>, vector<128x384xbf16>, vector<128x384xf32> -> vector<128x384xf32>
    %c0_5 = arith.constant 0 : index
    %c0_6 = arith.constant 0 : index
    %c0_7 = arith.constant 0 : index
    %8 = vector.load %arg5[%c0_5, %c0_6, %c0_7] : memref<1x1x384xf32, #tpu.memory_space<vmem>>, vector<1x1x384xf32>
    %9 = vector.shape_cast %8 : vector<1x1x384xf32> to vector<1x384xf32>
    %10 = vector.broadcast %9 : vector<1x384xf32> to vector<128x384xf32>
    %11 = arith.addf %7, %10 : vector<128x384xf32>
    %12 = arith.truncf %11 : vector<128x384xf32> to vector<128x384xbf16>
    %13 = vector.extract_strided_slice %12 {offsets = [0, 0], sizes = [64, 32], strides = [1, 1]} : vector<128x384xbf16> to vector<64x32xbf16>
    %14 = vector.extract_strided_slice %12 {offsets = [0, 128], sizes = [64, 32], strides = [1, 1]} : vector<128x384xbf16> to vector<64x32xbf16>
    %15 = vector.extract_strided_slice %12 {offsets = [0, 256], sizes = [64, 32], strides = [1, 1]} : vector<128x384xbf16> to vector<64x32xbf16>
    %cst_8 = arith.constant dense<0.000000e+00> : vector<64x64xf32>
    %16 = tpu.matmul %13, %14, %cst_8 {dimension_numbers = #tpu.dot_dimension_numbers<[1], [1], [0], [0], [0, 0, 1, 0], [], []>} : vector<64x32xbf16>, vector<64x32xbf16>, vector<64x64xf32> -> vector<64x64xf32>
    %cst_9 = arith.constant 0.176776692 : f32
    %17 = vector.broadcast %cst_9 : f32 to vector<64x64xf32>
    %18 = arith.mulf %16, %17 : vector<64x64xf32>
    %cst_10 = arith.constant dense<0xFF800000> : vector<64xf32>
    %19 = vector.multi_reduction <maximumf>, %18, %cst_10 [1] : vector<64x64xf32> to vector<64xf32>
    %20 = vector.shape_cast %19 : vector<64xf32> to vector<64x1xf32>
    %21 = vector.broadcast %20 : vector<64x1xf32> to vector<64x64xf32>
    %22 = arith.subf %18, %21 : vector<64x64xf32>
    %23 = math.exp %22 : vector<64x64xf32>
    %cst_11 = arith.constant dense<0.000000e+00> : vector<64xf32>
    %24 = vector.multi_reduction <add>, %23, %cst_11 [1] : vector<64x64xf32> to vector<64xf32>
    %25 = vector.shape_cast %24 : vector<64xf32> to vector<64x1xf32>
    %26 = tpu.reciprocal %25 {approx = true} : vector<64x1xf32> -> vector<64x1xf32>
    %27 = vector.broadcast %26 : vector<64x1xf32> to vector<64x64xf32>
    %28 = arith.mulf %23, %27 : vector<64x64xf32>
    %29 = arith.truncf %28 : vector<64x64xf32> to vector<64x64xbf16>
    %cst_12 = arith.constant dense<0.000000e+00> : vector<64x32xf32>
    %30 = tpu.matmul %29, %15, %cst_12 {dimension_numbers = #tpu.dot_dimension_numbers<[1], [0], [0], [1], [0, 0, 1, 1], [], []>} : vector<64x64xbf16>, vector<64x32xbf16>, vector<64x32xf32> -> vector<64x32xf32>
    %31 = vector.extract_strided_slice %12 {offsets = [0, 32], sizes = [64, 32], strides = [1, 1]} : vector<128x384xbf16> to vector<64x32xbf16>
    %32 = vector.extract_strided_slice %12 {offsets = [0, 160], sizes = [64, 32], strides = [1, 1]} : vector<128x384xbf16> to vector<64x32xbf16>
    %33 = vector.extract_strided_slice %12 {offsets = [0, 288], sizes = [64, 32], strides = [1, 1]} : vector<128x384xbf16> to vector<64x32xbf16>
    %cst_13 = arith.constant dense<0.000000e+00> : vector<64x64xf32>
    %34 = tpu.matmul %31, %32, %cst_13 {dimension_numbers = #tpu.dot_dimension_numbers<[1], [1], [0], [0], [0, 0, 1, 0], [], []>} : vector<64x32xbf16>, vector<64x32xbf16>, vector<64x64xf32> -> vector<64x64xf32>
    %cst_14 = arith.constant 0.176776692 : f32
    %35 = vector.broadcast %cst_14 : f32 to vector<64x64xf32>
    %36 = arith.mulf %34, %35 : vector<64x64xf32>
    %cst_15 = arith.constant dense<0xFF800000> : vector<64xf32>
    %37 = vector.multi_reduction <maximumf>, %36, %cst_15 [1] : vector<64x64xf32> to vector<64xf32>
    %38 = vector.shape_cast %37 : vector<64xf32> to vector<64x1xf32>
    %39 = vector.broadcast %38 : vector<64x1xf32> to vector<64x64xf32>
    %40 = arith.subf %36, %39 : vector<64x64xf32>
    %41 = math.exp %40 : vector<64x64xf32>
    %cst_16 = arith.constant dense<0.000000e+00> : vector<64xf32>
    %42 = vector.multi_reduction <add>, %41, %cst_16 [1] : vector<64x64xf32> to vector<64xf32>
    %43 = vector.shape_cast %42 : vector<64xf32> to vector<64x1xf32>
    %44 = tpu.reciprocal %43 {approx = true} : vector<64x1xf32> -> vector<64x1xf32>
    %45 = vector.broadcast %44 : vector<64x1xf32> to vector<64x64xf32>
    %46 = arith.mulf %41, %45 : vector<64x64xf32>
    %47 = arith.truncf %46 : vector<64x64xf32> to vector<64x64xbf16>
    %cst_17 = arith.constant dense<0.000000e+00> : vector<64x32xf32>
    %48 = tpu.matmul %47, %33, %cst_17 {dimension_numbers = #tpu.dot_dimension_numbers<[1], [0], [0], [1], [0, 0, 1, 1], [], []>} : vector<64x64xbf16>, vector<64x32xbf16>, vector<64x32xf32> -> vector<64x32xf32>
    %49 = vector.extract_strided_slice %12 {offsets = [0, 64], sizes = [64, 32], strides = [1, 1]} : vector<128x384xbf16> to vector<64x32xbf16>
    %50 = vector.extract_strided_slice %12 {offsets = [0, 192], sizes = [64, 32], strides = [1, 1]} : vector<128x384xbf16> to vector<64x32xbf16>
    %51 = vector.extract_strided_slice %12 {offsets = [0, 320], sizes = [64, 32], strides = [1, 1]} : vector<128x384xbf16> to vector<64x32xbf16>
    %cst_18 = arith.constant dense<0.000000e+00> : vector<64x64xf32>
    %52 = tpu.matmul %49, %50, %cst_18 {dimension_numbers = #tpu.dot_dimension_numbers<[1], [1], [0], [0], [0, 0, 1, 0], [], []>} : vector<64x32xbf16>, vector<64x32xbf16>, vector<64x64xf32> -> vector<64x64xf32>
    %cst_19 = arith.constant 0.176776692 : f32
    %53 = vector.broadcast %cst_19 : f32 to vector<64x64xf32>
    %54 = arith.mulf %52, %53 : vector<64x64xf32>
    %cst_20 = arith.constant dense<0xFF800000> : vector<64xf32>
    %55 = vector.multi_reduction <maximumf>, %54, %cst_20 [1] : vector<64x64xf32> to vector<64xf32>
    %56 = vector.shape_cast %55 : vector<64xf32> to vector<64x1xf32>
    %57 = vector.broadcast %56 : vector<64x1xf32> to vector<64x64xf32>
    %58 = arith.subf %54, %57 : vector<64x64xf32>
    %59 = math.exp %58 : vector<64x64xf32>
    %cst_21 = arith.constant dense<0.000000e+00> : vector<64xf32>
    %60 = vector.multi_reduction <add>, %59, %cst_21 [1] : vector<64x64xf32> to vector<64xf32>
    %61 = vector.shape_cast %60 : vector<64xf32> to vector<64x1xf32>
    %62 = tpu.reciprocal %61 {approx = true} : vector<64x1xf32> -> vector<64x1xf32>
    %63 = vector.broadcast %62 : vector<64x1xf32> to vector<64x64xf32>
    %64 = arith.mulf %59, %63 : vector<64x64xf32>
    %65 = arith.truncf %64 : vector<64x64xf32> to vector<64x64xbf16>
    %cst_22 = arith.constant dense<0.000000e+00> : vector<64x32xf32>
    %66 = tpu.matmul %65, %51, %cst_22 {dimension_numbers = #tpu.dot_dimension_numbers<[1], [0], [0], [1], [0, 0, 1, 1], [], []>} : vector<64x64xbf16>, vector<64x32xbf16>, vector<64x32xf32> -> vector<64x32xf32>
    %67 = vector.extract_strided_slice %12 {offsets = [0, 96], sizes = [64, 32], strides = [1, 1]} : vector<128x384xbf16> to vector<64x32xbf16>
    %68 = vector.extract_strided_slice %12 {offsets = [0, 224], sizes = [64, 32], strides = [1, 1]} : vector<128x384xbf16> to vector<64x32xbf16>
    %69 = vector.extract_strided_slice %12 {offsets = [0, 352], sizes = [64, 32], strides = [1, 1]} : vector<128x384xbf16> to vector<64x32xbf16>
    %cst_23 = arith.constant dense<0.000000e+00> : vector<64x64xf32>
    %70 = tpu.matmul %67, %68, %cst_23 {dimension_numbers = #tpu.dot_dimension_numbers<[1], [1], [0], [0], [0, 0, 1, 0], [], []>} : vector<64x32xbf16>, vector<64x32xbf16>, vector<64x64xf32> -> vector<64x64xf32>
    %cst_24 = arith.constant 0.176776692 : f32
    %71 = vector.broadcast %cst_24 : f32 to vector<64x64xf32>
    %72 = arith.mulf %70, %71 : vector<64x64xf32>
    %cst_25 = arith.constant dense<0xFF800000> : vector<64xf32>
    %73 = vector.multi_reduction <maximumf>, %72, %cst_25 [1] : vector<64x64xf32> to vector<64xf32>
    %74 = vector.shape_cast %73 : vector<64xf32> to vector<64x1xf32>
    %75 = vector.broadcast %74 : vector<64x1xf32> to vector<64x64xf32>
    %76 = arith.subf %72, %75 : vector<64x64xf32>
    %77 = math.exp %76 : vector<64x64xf32>
    %cst_26 = arith.constant dense<0.000000e+00> : vector<64xf32>
    %78 = vector.multi_reduction <add>, %77, %cst_26 [1] : vector<64x64xf32> to vector<64xf32>
    %79 = vector.shape_cast %78 : vector<64xf32> to vector<64x1xf32>
    %80 = tpu.reciprocal %79 {approx = true} : vector<64x1xf32> -> vector<64x1xf32>
    %81 = vector.broadcast %80 : vector<64x1xf32> to vector<64x64xf32>
    %82 = arith.mulf %77, %81 : vector<64x64xf32>
    %83 = arith.truncf %82 : vector<64x64xf32> to vector<64x64xbf16>
    %cst_27 = arith.constant dense<0.000000e+00> : vector<64x32xf32>
    %84 = tpu.matmul %83, %69, %cst_27 {dimension_numbers = #tpu.dot_dimension_numbers<[1], [0], [0], [1], [0, 0, 1, 1], [], []>} : vector<64x64xbf16>, vector<64x32xbf16>, vector<64x32xf32> -> vector<64x32xf32>
    %85 = tpu.concatenate %30, %48, %66, %84 in 1 : vector<64x32xf32>, vector<64x32xf32>, vector<64x32xf32>, vector<64x32xf32> -> vector<64x128xf32>
    %86 = vector.extract_strided_slice %12 {offsets = [64, 0], sizes = [64, 32], strides = [1, 1]} : vector<128x384xbf16> to vector<64x32xbf16>
    %87 = vector.extract_strided_slice %12 {offsets = [64, 128], sizes = [64, 32], strides = [1, 1]} : vector<128x384xbf16> to vector<64x32xbf16>
    %88 = vector.extract_strided_slice %12 {offsets = [64, 256], sizes = [64, 32], strides = [1, 1]} : vector<128x384xbf16> to vector<64x32xbf16>
    %cst_28 = arith.constant dense<0.000000e+00> : vector<64x64xf32>
    %89 = tpu.matmul %86, %87, %cst_28 {dimension_numbers = #tpu.dot_dimension_numbers<[1], [1], [0], [0], [0, 0, 1, 0], [], []>} : vector<64x32xbf16>, vector<64x32xbf16>, vector<64x64xf32> -> vector<64x64xf32>
    %cst_29 = arith.constant 0.176776692 : f32
    %90 = vector.broadcast %cst_29 : f32 to vector<64x64xf32>
    %91 = arith.mulf %89, %90 : vector<64x64xf32>
    %cst_30 = arith.constant dense<0xFF800000> : vector<64xf32>
    %92 = vector.multi_reduction <maximumf>, %91, %cst_30 [1] : vector<64x64xf32> to vector<64xf32>
    %93 = vector.shape_cast %92 : vector<64xf32> to vector<64x1xf32>
    %94 = vector.broadcast %93 : vector<64x1xf32> to vector<64x64xf32>
    %95 = arith.subf %91, %94 : vector<64x64xf32>
    %96 = math.exp %95 : vector<64x64xf32>
    %cst_31 = arith.constant dense<0.000000e+00> : vector<64xf32>
    %97 = vector.multi_reduction <add>, %96, %cst_31 [1] : vector<64x64xf32> to vector<64xf32>
    %98 = vector.shape_cast %97 : vector<64xf32> to vector<64x1xf32>
    %99 = tpu.reciprocal %98 {approx = true} : vector<64x1xf32> -> vector<64x1xf32>
    %100 = vector.broadcast %99 : vector<64x1xf32> to vector<64x64xf32>
    %101 = arith.mulf %96, %100 : vector<64x64xf32>
    %102 = arith.truncf %101 : vector<64x64xf32> to vector<64x64xbf16>
    %cst_32 = arith.constant dense<0.000000e+00> : vector<64x32xf32>
    %103 = tpu.matmul %102, %88, %cst_32 {dimension_numbers = #tpu.dot_dimension_numbers<[1], [0], [0], [1], [0, 0, 1, 1], [], []>} : vector<64x64xbf16>, vector<64x32xbf16>, vector<64x32xf32> -> vector<64x32xf32>
    %104 = vector.extract_strided_slice %12 {offsets = [64, 32], sizes = [64, 32], strides = [1, 1]} : vector<128x384xbf16> to vector<64x32xbf16>
    %105 = vector.extract_strided_slice %12 {offsets = [64, 160], sizes = [64, 32], strides = [1, 1]} : vector<128x384xbf16> to vector<64x32xbf16>
    %106 = vector.extract_strided_slice %12 {offsets = [64, 288], sizes = [64, 32], strides = [1, 1]} : vector<128x384xbf16> to vector<64x32xbf16>
    %cst_33 = arith.constant dense<0.000000e+00> : vector<64x64xf32>
    %107 = tpu.matmul %104, %105, %cst_33 {dimension_numbers = #tpu.dot_dimension_numbers<[1], [1], [0], [0], [0, 0, 1, 0], [], []>} : vector<64x32xbf16>, vector<64x32xbf16>, vector<64x64xf32> -> vector<64x64xf32>
    %cst_34 = arith.constant 0.176776692 : f32
    %108 = vector.broadcast %cst_34 : f32 to vector<64x64xf32>
    %109 = arith.mulf %107, %108 : vector<64x64xf32>
    %cst_35 = arith.constant dense<0xFF800000> : vector<64xf32>
    %110 = vector.multi_reduction <maximumf>, %109, %cst_35 [1] : vector<64x64xf32> to vector<64xf32>
    %111 = vector.shape_cast %110 : vector<64xf32> to vector<64x1xf32>
    %112 = vector.broadcast %111 : vector<64x1xf32> to vector<64x64xf32>
    %113 = arith.subf %109, %112 : vector<64x64xf32>
    %114 = math.exp %113 : vector<64x64xf32>
    %cst_36 = arith.constant dense<0.000000e+00> : vector<64xf32>
    %115 = vector.multi_reduction <add>, %114, %cst_36 [1] : vector<64x64xf32> to vector<64xf32>
    %116 = vector.shape_cast %115 : vector<64xf32> to vector<64x1xf32>
    %117 = tpu.reciprocal %116 {approx = true} : vector<64x1xf32> -> vector<64x1xf32>
    %118 = vector.broadcast %117 : vector<64x1xf32> to vector<64x64xf32>
    %119 = arith.mulf %114, %118 : vector<64x64xf32>
    %120 = arith.truncf %119 : vector<64x64xf32> to vector<64x64xbf16>
    %cst_37 = arith.constant dense<0.000000e+00> : vector<64x32xf32>
    %121 = tpu.matmul %120, %106, %cst_37 {dimension_numbers = #tpu.dot_dimension_numbers<[1], [0], [0], [1], [0, 0, 1, 1], [], []>} : vector<64x64xbf16>, vector<64x32xbf16>, vector<64x32xf32> -> vector<64x32xf32>
    %122 = vector.extract_strided_slice %12 {offsets = [64, 64], sizes = [64, 32], strides = [1, 1]} : vector<128x384xbf16> to vector<64x32xbf16>
    %123 = vector.extract_strided_slice %12 {offsets = [64, 192], sizes = [64, 32], strides = [1, 1]} : vector<128x384xbf16> to vector<64x32xbf16>
    %124 = vector.extract_strided_slice %12 {offsets = [64, 320], sizes = [64, 32], strides = [1, 1]} : vector<128x384xbf16> to vector<64x32xbf16>
    %cst_38 = arith.constant dense<0.000000e+00> : vector<64x64xf32>
    %125 = tpu.matmul %122, %123, %cst_38 {dimension_numbers = #tpu.dot_dimension_numbers<[1], [1], [0], [0], [0, 0, 1, 0], [], []>} : vector<64x32xbf16>, vector<64x32xbf16>, vector<64x64xf32> -> vector<64x64xf32>
    %cst_39 = arith.constant 0.176776692 : f32
    %126 = vector.broadcast %cst_39 : f32 to vector<64x64xf32>
    %127 = arith.mulf %125, %126 : vector<64x64xf32>
    %cst_40 = arith.constant dense<0xFF800000> : vector<64xf32>
    %128 = vector.multi_reduction <maximumf>, %127, %cst_40 [1] : vector<64x64xf32> to vector<64xf32>
    %129 = vector.shape_cast %128 : vector<64xf32> to vector<64x1xf32>
    %130 = vector.broadcast %129 : vector<64x1xf32> to vector<64x64xf32>
    %131 = arith.subf %127, %130 : vector<64x64xf32>
    %132 = math.exp %131 : vector<64x64xf32>
    %cst_41 = arith.constant dense<0.000000e+00> : vector<64xf32>
    %133 = vector.multi_reduction <add>, %132, %cst_41 [1] : vector<64x64xf32> to vector<64xf32>
    %134 = vector.shape_cast %133 : vector<64xf32> to vector<64x1xf32>
    %135 = tpu.reciprocal %134 {approx = true} : vector<64x1xf32> -> vector<64x1xf32>
    %136 = vector.broadcast %135 : vector<64x1xf32> to vector<64x64xf32>
    %137 = arith.mulf %132, %136 : vector<64x64xf32>
    %138 = arith.truncf %137 : vector<64x64xf32> to vector<64x64xbf16>
    %cst_42 = arith.constant dense<0.000000e+00> : vector<64x32xf32>
    %139 = tpu.matmul %138, %124, %cst_42 {dimension_numbers = #tpu.dot_dimension_numbers<[1], [0], [0], [1], [0, 0, 1, 1], [], []>} : vector<64x64xbf16>, vector<64x32xbf16>, vector<64x32xf32> -> vector<64x32xf32>
    %140 = vector.extract_strided_slice %12 {offsets = [64, 96], sizes = [64, 32], strides = [1, 1]} : vector<128x384xbf16> to vector<64x32xbf16>
    %141 = vector.extract_strided_slice %12 {offsets = [64, 224], sizes = [64, 32], strides = [1, 1]} : vector<128x384xbf16> to vector<64x32xbf16>
    %142 = vector.extract_strided_slice %12 {offsets = [64, 352], sizes = [64, 32], strides = [1, 1]} : vector<128x384xbf16> to vector<64x32xbf16>
    %cst_43 = arith.constant dense<0.000000e+00> : vector<64x64xf32>
    %143 = tpu.matmul %140, %141, %cst_43 {dimension_numbers = #tpu.dot_dimension_numbers<[1], [1], [0], [0], [0, 0, 1, 0], [], []>} : vector<64x32xbf16>, vector<64x32xbf16>, vector<64x64xf32> -> vector<64x64xf32>
    %cst_44 = arith.constant 0.176776692 : f32
    %144 = vector.broadcast %cst_44 : f32 to vector<64x64xf32>
    %145 = arith.mulf %143, %144 : vector<64x64xf32>
    %cst_45 = arith.constant dense<0xFF800000> : vector<64xf32>
    %146 = vector.multi_reduction <maximumf>, %145, %cst_45 [1] : vector<64x64xf32> to vector<64xf32>
    %147 = vector.shape_cast %146 : vector<64xf32> to vector<64x1xf32>
    %148 = vector.broadcast %147 : vector<64x1xf32> to vector<64x64xf32>
    %149 = arith.subf %145, %148 : vector<64x64xf32>
    %150 = math.exp %149 : vector<64x64xf32>
    %cst_46 = arith.constant dense<0.000000e+00> : vector<64xf32>
    %151 = vector.multi_reduction <add>, %150, %cst_46 [1] : vector<64x64xf32> to vector<64xf32>
    %152 = vector.shape_cast %151 : vector<64xf32> to vector<64x1xf32>
    %153 = tpu.reciprocal %152 {approx = true} : vector<64x1xf32> -> vector<64x1xf32>
    %154 = vector.broadcast %153 : vector<64x1xf32> to vector<64x64xf32>
    %155 = arith.mulf %150, %154 : vector<64x64xf32>
    %156 = arith.truncf %155 : vector<64x64xf32> to vector<64x64xbf16>
    %cst_47 = arith.constant dense<0.000000e+00> : vector<64x32xf32>
    %157 = tpu.matmul %156, %142, %cst_47 {dimension_numbers = #tpu.dot_dimension_numbers<[1], [0], [0], [1], [0, 0, 1, 1], [], []>} : vector<64x64xbf16>, vector<64x32xbf16>, vector<64x32xf32> -> vector<64x32xf32>
    %158 = tpu.concatenate %103, %121, %139, %157 in 1 : vector<64x32xf32>, vector<64x32xf32>, vector<64x32xf32>, vector<64x32xf32> -> vector<64x128xf32>
    %159 = tpu.concatenate %85, %158 in 0 : vector<64x128xf32>, vector<64x128xf32> -> vector<128x128xf32>
    %160 = arith.truncf %159 : vector<128x128xf32> to vector<128x128xbf16>
    %c0_48 = arith.constant 0 : index
    %c0_49 = arith.constant 0 : index
    %c0_50 = arith.constant 0 : index
    %161 = vector.load %arg6[%c0_48, %c0_49, %c0_50] : memref<1x128x128xbf16, #tpu.memory_space<vmem>>, vector<1x128x128xbf16>
    %162 = vector.shape_cast %161 : vector<1x128x128xbf16> to vector<128x128xbf16>
    %cst_51 = arith.constant dense<0.000000e+00> : vector<128x128xf32>
    %163 = tpu.matmul %160, %162, %cst_51 {dimension_numbers = #tpu.dot_dimension_numbers<[1], [0], [0], [1], [0, 0, 1, 1], [], []>} : vector<128x128xbf16>, vector<128x128xbf16>, vector<128x128xf32> -> vector<128x128xf32>
    %c0_52 = arith.constant 0 : index
    %c0_53 = arith.constant 0 : index
    %c0_54 = arith.constant 0 : index
    %164 = vector.load %arg7[%c0_52, %c0_53, %c0_54] : memref<1x1x128xf32, #tpu.memory_space<vmem>>, vector<1x1x128xf32>
    %165 = vector.shape_cast %164 : vector<1x1x128xf32> to vector<1x128xf32>
    %166 = vector.broadcast %165 : vector<1x128xf32> to vector<128x128xf32>
    %167 = arith.addf %163, %166 : vector<128x128xf32>
    %168 = arith.addf %167, %3 : vector<128x128xf32>
    %c0_55 = arith.constant 0 : index
    %c0_56 = arith.constant 0 : index
    %c0_57 = arith.constant 0 : index
    %169 = vector.load %arg8[%c0_55, %c0_56, %c0_57] : memref<1x1x128xf32, #tpu.memory_space<vmem>>, vector<1x1x128xf32>
    %170 = vector.shape_cast %169 : vector<1x1x128xf32> to vector<1x128xf32>
    %c0_58 = arith.constant 0 : index
    %c0_59 = arith.constant 0 : index
    %c0_60 = arith.constant 0 : index
    %171 = vector.load %arg9[%c0_58, %c0_59, %c0_60] : memref<1x1x128xf32, #tpu.memory_space<vmem>>, vector<1x1x128xf32>
    %172 = vector.shape_cast %171 : vector<1x1x128xf32> to vector<1x128xf32>
    %cst_61 = arith.constant dense<0.000000e+00> : vector<128xf32>
    %173 = vector.multi_reduction <add>, %168, %cst_61 [1] : vector<128x128xf32> to vector<128xf32>
    %174 = vector.shape_cast %173 : vector<128xf32> to vector<128x1xf32>
    %cst_62 = arith.constant 1.280000e+02 : f32
    %175 = vector.broadcast %cst_62 : f32 to vector<128x1xf32>
    %176 = arith.divf %174, %175 : vector<128x1xf32>
    %177 = vector.broadcast %176 : vector<128x1xf32> to vector<128x128xf32>
    %178 = arith.subf %168, %177 : vector<128x128xf32>
    %179 = arith.mulf %178, %178 : vector<128x128xf32>
    %cst_63 = arith.constant dense<0.000000e+00> : vector<128xf32>
    %180 = vector.multi_reduction <add>, %179, %cst_63 [1] : vector<128x128xf32> to vector<128xf32>
    %181 = vector.shape_cast %180 : vector<128xf32> to vector<128x1xf32>
    %cst_64 = arith.constant 1.280000e+02 : f32
    %182 = vector.broadcast %cst_64 : f32 to vector<128x1xf32>
    %183 = arith.divf %181, %182 : vector<128x1xf32>
    %cst_65 = arith.constant 9.99999974E-6 : f32
    %184 = vector.broadcast %cst_65 : f32 to vector<128x1xf32>
    %185 = arith.addf %183, %184 : vector<128x1xf32>
    %186 = math.rsqrt %185 : vector<128x1xf32>
    %187 = vector.broadcast %186 : vector<128x1xf32> to vector<128x128xf32>
    %188 = arith.mulf %178, %187 : vector<128x128xf32>
    %189 = vector.broadcast %170 : vector<1x128xf32> to vector<128x128xf32>
    %190 = arith.mulf %188, %189 : vector<128x128xf32>
    %191 = vector.broadcast %172 : vector<1x128xf32> to vector<128x128xf32>
    %192 = arith.addf %190, %191 : vector<128x128xf32>
    %193 = arith.truncf %192 : vector<128x128xf32> to vector<128x128xbf16>
    %c0_66 = arith.constant 0 : index
    %c0_67 = arith.constant 0 : index
    %c0_68 = arith.constant 0 : index
    %194 = vector.load %arg10[%c0_66, %c0_67, %c0_68] : memref<1x128x256xbf16, #tpu.memory_space<vmem>>, vector<1x128x256xbf16>
    %195 = vector.shape_cast %194 : vector<1x128x256xbf16> to vector<128x256xbf16>
    %cst_69 = arith.constant dense<0.000000e+00> : vector<128x256xf32>
    %196 = tpu.matmul %193, %195, %cst_69 {dimension_numbers = #tpu.dot_dimension_numbers<[1], [0], [0], [1], [0, 0, 1, 1], [], []>} : vector<128x128xbf16>, vector<128x256xbf16>, vector<128x256xf32> -> vector<128x256xf32>
    %c0_70 = arith.constant 0 : index
    %c0_71 = arith.constant 0 : index
    %c0_72 = arith.constant 0 : index
    %197 = vector.load %arg11[%c0_70, %c0_71, %c0_72] : memref<1x1x256xf32, #tpu.memory_space<vmem>>, vector<1x1x256xf32>
    %198 = vector.shape_cast %197 : vector<1x1x256xf32> to vector<1x256xf32>
    %199 = vector.broadcast %198 : vector<1x256xf32> to vector<128x256xf32>
    %200 = arith.addf %196, %199 : vector<128x256xf32>
    %cst_73 = arith.constant 0.000000e+00 : f32
    %201 = vector.broadcast %cst_73 : f32 to vector<128x256xf32>
    %202 = arith.maximumf %200, %201 : vector<128x256xf32>
    %203 = arith.truncf %202 : vector<128x256xf32> to vector<128x256xbf16>
    %c0_74 = arith.constant 0 : index
    %c0_75 = arith.constant 0 : index
    %c0_76 = arith.constant 0 : index
    %204 = vector.load %arg12[%c0_74, %c0_75, %c0_76] : memref<1x256x128xbf16, #tpu.memory_space<vmem>>, vector<1x256x128xbf16>
    %205 = vector.shape_cast %204 : vector<1x256x128xbf16> to vector<256x128xbf16>
    %cst_77 = arith.constant dense<0.000000e+00> : vector<128x128xf32>
    %206 = tpu.matmul %203, %205, %cst_77 {dimension_numbers = #tpu.dot_dimension_numbers<[1], [0], [0], [1], [0, 0, 1, 1], [], []>} : vector<128x256xbf16>, vector<256x128xbf16>, vector<128x128xf32> -> vector<128x128xf32>
    %c0_78 = arith.constant 0 : index
    %c0_79 = arith.constant 0 : index
    %c0_80 = arith.constant 0 : index
    %207 = vector.load %arg13[%c0_78, %c0_79, %c0_80] : memref<1x1x128xf32, #tpu.memory_space<vmem>>, vector<1x1x128xf32>
    %208 = vector.shape_cast %207 : vector<1x1x128xf32> to vector<1x128xf32>
    %209 = vector.broadcast %208 : vector<1x128xf32> to vector<128x128xf32>
    %210 = arith.addf %206, %209 : vector<128x128xf32>
    %211 = arith.addf %210, %192 : vector<128x128xf32>
    %c0_81 = arith.constant 0 : index
    %c0_82 = arith.constant 0 : index
    %c0_83 = arith.constant 0 : index
    %212 = vector.load %arg14[%c0_81, %c0_82, %c0_83] : memref<1x1x128xf32, #tpu.memory_space<vmem>>, vector<1x1x128xf32>
    %213 = vector.shape_cast %212 : vector<1x1x128xf32> to vector<1x128xf32>
    %c0_84 = arith.constant 0 : index
    %c0_85 = arith.constant 0 : index
    %c0_86 = arith.constant 0 : index
    %214 = vector.load %arg15[%c0_84, %c0_85, %c0_86] : memref<1x1x128xf32, #tpu.memory_space<vmem>>, vector<1x1x128xf32>
    %215 = vector.shape_cast %214 : vector<1x1x128xf32> to vector<1x128xf32>
    %cst_87 = arith.constant dense<0.000000e+00> : vector<128xf32>
    %216 = vector.multi_reduction <add>, %211, %cst_87 [1] : vector<128x128xf32> to vector<128xf32>
    %217 = vector.shape_cast %216 : vector<128xf32> to vector<128x1xf32>
    %cst_88 = arith.constant 1.280000e+02 : f32
    %218 = vector.broadcast %cst_88 : f32 to vector<128x1xf32>
    %219 = arith.divf %217, %218 : vector<128x1xf32>
    %220 = vector.broadcast %219 : vector<128x1xf32> to vector<128x128xf32>
    %221 = arith.subf %211, %220 : vector<128x128xf32>
    %222 = arith.mulf %221, %221 : vector<128x128xf32>
    %cst_89 = arith.constant dense<0.000000e+00> : vector<128xf32>
    %223 = vector.multi_reduction <add>, %222, %cst_89 [1] : vector<128x128xf32> to vector<128xf32>
    %224 = vector.shape_cast %223 : vector<128xf32> to vector<128x1xf32>
    %cst_90 = arith.constant 1.280000e+02 : f32
    %225 = vector.broadcast %cst_90 : f32 to vector<128x1xf32>
    %226 = arith.divf %224, %225 : vector<128x1xf32>
    %cst_91 = arith.constant 9.99999974E-6 : f32
    %227 = vector.broadcast %cst_91 : f32 to vector<128x1xf32>
    %228 = arith.addf %226, %227 : vector<128x1xf32>
    %229 = math.rsqrt %228 : vector<128x1xf32>
    %230 = vector.broadcast %229 : vector<128x1xf32> to vector<128x128xf32>
    %231 = arith.mulf %221, %230 : vector<128x128xf32>
    %232 = vector.broadcast %213 : vector<1x128xf32> to vector<128x128xf32>
    %233 = arith.mulf %231, %232 : vector<128x128xf32>
    %234 = vector.broadcast %215 : vector<1x128xf32> to vector<128x128xf32>
    %235 = arith.addf %233, %234 : vector<128x128xf32>
    %c0_92 = arith.constant 0 : index
    %c0_93 = arith.constant 0 : index
    %236 = vector.load %arg16[%c0_92, %c0_93] : memref<128x128xf32, #tpu.memory_space<vmem>>, vector<128x128xf32>
    tpu.vector_store %arg16[%c0_92, %c0_93], %235 {strides = array<i32>} : memref<128x128xf32, #tpu.memory_space<vmem>>, vector<128x128xf32>,
    return
  }
  func.func @transform_0(%arg0: i32) -> (i32, i32) {
    %c0_i32 = arith.constant 0 : i32
    %c0_i32_0 = arith.constant 0 : i32
    %c0_i32_1 = arith.constant 0 : i32
    return %c0_i32, %c0_i32_0 : i32, i32
  }
  func.func @transform_1(%arg0: i32) -> (i32, i32) {
    %c0_i32 = arith.constant 0 : i32
    %c0_i32_0 = arith.constant 0 : i32
    %c0_i32_1 = arith.constant 0 : i32
    return %c0_i32, %c0_i32_0 : i32, i32
  }
  func.func @transform_2(%arg0: i32) -> (i32, i32) {
    %c0_i32 = arith.constant 0 : i32
    %c0_i32_0 = arith.constant 0 : i32
    %c0_i32_1 = arith.constant 0 : i32
    return %c0_i32, %c0_i32_0 : i32, i32
  }
  func.func @transform_3(%arg0: i32) -> (i32, i32, i32) {
    %c0_i32 = arith.constant 0 : i32
    %c0_i32_0 = arith.constant 0 : i32
    %c0_i32_1 = arith.constant 0 : i32
    return %arg0, %c0_i32, %c0_i32_0 : i32, i32, i32
  }
  func.func @transform_4(%arg0: i32) -> (i32, i32, i32) {
    %c0_i32 = arith.constant 0 : i32
    %c0_i32_0 = arith.constant 0 : i32
    %c0_i32_1 = arith.constant 0 : i32
    return %arg0, %c0_i32, %c0_i32_0 : i32, i32, i32
  }
  func.func @transform_5(%arg0: i32) -> (i32, i32, i32) {
    %c0_i32 = arith.constant 0 : i32
    %c0_i32_0 = arith.constant 0 : i32
    %c0_i32_1 = arith.constant 0 : i32
    return %arg0, %c0_i32, %c0_i32_0 : i32, i32, i32
  }
  func.func @transform_6(%arg0: i32) -> (i32, i32, i32) {
    %c0_i32 = arith.constant 0 : i32
    %c0_i32_0 = arith.constant 0 : i32
    %c0_i32_1 = arith.constant 0 : i32
    return %arg0, %c0_i32, %c0_i32_0 : i32, i32, i32
  }
  func.func @transform_7(%arg0: i32) -> (i32, i32, i32) {
    %c0_i32 = arith.constant 0 : i32
    %c0_i32_0 = arith.constant 0 : i32
    %c0_i32_1 = arith.constant 0 : i32
    return %arg0, %c0_i32, %c0_i32_0 : i32, i32, i32
  }
  func.func @transform_8(%arg0: i32) -> (i32, i32, i32) {
    %c0_i32 = arith.constant 0 : i32
    %c0_i32_0 = arith.constant 0 : i32
    %c0_i32_1 = arith.constant 0 : i32
    return %arg0, %c0_i32, %c0_i32_0 : i32, i32, i32
  }
  func.func @transform_9(%arg0: i32) -> (i32, i32, i32) {
    %c0_i32 = arith.constant 0 : i32
    %c0_i32_0 = arith.constant 0 : i32
    %c0_i32_1 = arith.constant 0 : i32
    return %arg0, %c0_i32, %c0_i32_0 : i32, i32, i32
  }
  func.func @transform_10(%arg0: i32) -> (i32, i32, i32) {
    %c0_i32 = arith.constant 0 : i32
    %c0_i32_0 = arith.constant 0 : i32
    %c0_i32_1 = arith.constant 0 : i32
    return %arg0, %c0_i32, %c0_i32_0 : i32, i32, i32
  }
  func.func @transform_11(%arg0: i32) -> (i32, i32, i32) {
    %c0_i32 = arith.constant 0 : i32
    %c0_i32_0 = arith.constant 0 : i32
    %c0_i32_1 = arith.constant 0 : i32
    return %arg0, %c0_i32, %c0_i32_0 : i32, i32, i32
  }
  func.func @transform_12(%arg0: i32) -> (i32, i32, i32) {
    %c0_i32 = arith.constant 0 : i32
    %c0_i32_0 = arith.constant 0 : i32
    %c0_i32_1 = arith.constant 0 : i32
    return %arg0, %c0_i32, %c0_i32_0 : i32, i32, i32
  }
  func.func @transform_13(%arg0: i32) -> (i32, i32, i32) {
    %c0_i32 = arith.constant 0 : i32
    %c0_i32_0 = arith.constant 0 : i32
    %c0_i32_1 = arith.constant 0 : i32
    return %arg0, %c0_i32, %c0_i32_0 : i32, i32, i32
  }
  func.func @transform_14(%arg0: i32) -> (i32, i32, i32) {
    %c0_i32 = arith.constant 0 : i32
    %c0_i32_0 = arith.constant 0 : i32
    %c0_i32_1 = arith.constant 0 : i32
    return %arg0, %c0_i32, %c0_i32_0 : i32, i32, i32
  }
  func.func @transform_15(%arg0: i32) -> (i32, i32) {
    %c0_i32 = arith.constant 0 : i32
    %c0_i32_0 = arith.constant 0 : i32
    %c0_i32_1 = arith.constant 0 : i32
    return %c0_i32, %c0_i32_0 : i32, i32
  }
}

</mosaic_0001>

<llo_original>
// kernel: text_encoder.1
$region0: #{text_encoder.1}
  #allocation0 [shape = 'u32[]', space=smem, size = 0x4, offset = 0x4, fixed_abs, tag = 'smem constant byte address 0x4 - core index']
  #allocation1 [shape = 'u32[144,128]{1,0:T(1,128)}', space=vmem, size = 0x12000, scoped, tag = 'internal scratch']
  %s0 = inlined_call_operand.vmem [shape: f32[128,128], index: 0, kind: input, shape index: {}]
  %s1 = inlined_call_operand.vmem [shape: f32[64,64], index: 1, kind: input, shape index: {}]
  %s2 = inlined_call_operand.vmem [shape: f32[64,64], index: 2, kind: input, shape index: {}]
  %s3 = inlined_call_operand.vmem [shape: bf16[2,128,384], index: 3, kind: input, shape index: {}]
  %s4 = inlined_call_operand.vmem [shape: f32[2,1,384], index: 4, kind: input, shape index: {}]
  %s5 = inlined_call_operand.vmem [shape: bf16[2,128,128], index: 5, kind: input, shape index: {}]
  %s6 = inlined_call_operand.vmem [shape: f32[2,1,128], index: 6, kind: input, shape index: {}]
  %s7 = inlined_call_operand.vmem [shape: f32[2,1,128], index: 7, kind: input, shape index: {}]
  %s8 = inlined_call_operand.vmem [shape: f32[2,1,128], index: 8, kind: input, shape index: {}]
  %s9 = inlined_call_operand.vmem [shape: bf16[2,128,256], index: 9, kind: input, shape index: {}]
  %s10 = inlined_call_operand.vmem [shape: f32[2,1,256], index: 10, kind: input, shape index: {}]
  %s11 = inlined_call_operand.vmem [shape: bf16[2,256,128], index: 11, kind: input, shape index: {}]
  %s12 = inlined_call_operand.vmem [shape: f32[2,1,128], index: 12, kind: input, shape index: {}]
  %s13 = inlined_call_operand.vmem [shape: f32[2,1,128], index: 13, kind: input, shape index: {}]
  %s14 = inlined_call_operand.vmem [shape: f32[2,1,128], index: 14, kind: input, shape index: {}]
  %s15 = inlined_call_operand.hbm [shape: f32[128,128], index: 15, kind: output, shape index: {}]
  %s16 = sld [smem:[#allocation0]]
  $region97: #{text_encoder.1} parent=0
    _
  %s18 = ssub.s32 1, %s16
  %s19 = scalar_select 0, %s18, %s16
  $region1: #{text_encoder.1} parent=0
    #allocation2 [shape = 'u8[65536]{0}', space=vmem, size = 0x10000, scoped, tag = 'output window, operand 0, single buffered']
    #allocation3 [shape = 's32[2]{0}', space=sflag, size = 0x8, scoped, tag = 'scoped memory for text_encoder.1']
    %20 = vsyncpa [#allocation3], 0
    loop: start=0, step=1, limit=4
    $region2: #{text_encoder.1} parent=1 // loop_pre_header
      _
    $region3: #{text_encoder.1} parent=1 // loop_header
      %s22 = sphi 0, %s26
      %p23 = scmp.ge.s32.totalorder %s22, 4
      %s30 = sphi 0, %s30
      %s32 = sphi 0, %s30
      %s33 = sphi 0, %s32
      %s47 = sphi 0, %s33
      %s51 = sphi 0, %s51
      %s53 = sphi 0, %s51
      %s54 = sphi 0, %s53
      %s68 = sphi 0, %s54
      %s72 = sphi 0, %s72
      %s74 = sphi 0, %s72
      %s75 = sphi 0, %s74
      %s89 = sphi 0, %s75
      %s95 = sphi 0, %s97
      %s98 = sphi 0, %s95
      %s99 = sphi 0, %s98
      %s115 = sphi 0, %s99
      %s121 = sphi 0, %s123
      %s124 = sphi 0, %s121
      %s125 = sphi 0, %s124
      %s141 = sphi 0, %s125
      %s147 = sphi 0, %s149
      %s150 = sphi 0, %s147
      %s151 = sphi 0, %s150
      %s167 = sphi 0, %s151
      %s173 = sphi 0, %s175
      %s176 = sphi 0, %s173
      %s177 = sphi 0, %s176
      %s193 = sphi 0, %s177
      %s199 = sphi 0, %s201
      %s202 = sphi 0, %s199
      %s203 = sphi 0, %s202
      %s219 = sphi 0, %s203
      %s225 = sphi 0, %s227
      %s228 = sphi 0, %s225
      %s229 = sphi 0, %s228
      %s245 = sphi 0, %s229
      %s251 = sphi 0, %s253
      %s254 = sphi 0, %s251
      %s255 = sphi 0, %s254
      %s271 = sphi 0, %s255
      %s277 = sphi 0, %s279
      %s280 = sphi 0, %s277
      %s281 = sphi 0, %s280
      %s297 = sphi 0, %s281
      %s303 = sphi 0, %s305
      %s306 = sphi 0, %s303
      %s307 = sphi 0, %s306
      %s323 = sphi 0, %s307
      %s329 = sphi 0, %s331
      %s332 = sphi 0, %s329
      %s333 = sphi 0, %s332
      %s349 = sphi 0, %s333
      %s355 = sphi 0, %s357
      %s358 = sphi 0, %s355
      %s359 = sphi 0, %s358
      %s375 = sphi 0, %s359
      %s381 = sphi 0, %s383
      %s384 = sphi 0, %s381
      %s385 = sphi 0, %s384
      %s401 = sphi 0, %s385
      %s405 = sphi 0, %s405
      %s407 = sphi 0, %s405
      %s408 = sphi 0, %s407
      %s422 = sphi 0, %s408
    $region4: #{text_encoder.1} parent=1 // loop_header_branch
      %25 = sbr.rel (%p23) target = $region8
    $region5: #{text_encoder.1} parent=1 // loop_body
      %s27 = ssub.s32 %s22, 1
      %s28 = ssub.s32 %s22, 2
      %s29 = sadd.s32 %s22, 1
      %s31 = sadd.s32 %s30, 1
      %p34 = scmp.eq.s32.totalorder %s22, 1
      %p35 = scmp.ne.s32.totalorder %s30, %s32
      %p36 = scmp.eq.s32.totalorder %s22, 0
      %p37 = por %p35, %p36
      %p38 = scmp.ne.s32.totalorder %s30, %s32
      %p39 = scmp.eq.s32.totalorder %s27, 1
      %p40 = por %p38, %p39
      %p41 = scmp.ne.s32.totalorder %s32, %s33
      %p42 = scmp.eq.s32.totalorder %s27, 0
      %p43 = por %p41, %p42
      %p44 = scmp.ne.s32.totalorder %s32, %s33
      %p45 = scmp.eq.s32.totalorder %s28, 1
      %p46 = por %p44, %p45
      %p48 = scmp.ne.s32.totalorder %s33, %s47
      %p49 = scmp.eq.s32.totalorder %s28, 0
      %p50 = por %p48, %p49
      %s52 = sadd.s32 %s51, 1
      %p55 = scmp.eq.s32.totalorder %s22, 1
      %p56 = scmp.ne.s32.totalorder %s51, %s53
      %p57 = scmp.eq.s32.totalorder %s22, 0
      %p58 = por %p56, %p57
      %p59 = scmp.ne.s32.totalorder %s51, %s53
      %p60 = scmp.eq.s32.totalorder %s27, 1
      %p61 = por %p59, %p60
      %p62 = scmp.ne.s32.totalorder %s53, %s54
      %p63 = scmp.eq.s32.totalorder %s27, 0
      %p64 = por %p62, %p63
      %p65 = scmp.ne.s32.totalorder %s53, %s54
      %p66 = scmp.eq.s32.totalorder %s28, 1
      %p67 = por %p65, %p66
      %p69 = scmp.ne.s32.totalorder %s54, %s68
      %p70 = scmp.eq.s32.totalorder %s28, 0
      %p71 = por %p69, %p70
      %s73 = sadd.s32 %s72, 1
      %p76 = scmp.eq.s32.totalorder %s22, 1
      %p77 = scmp.ne.s32.totalorder %s72, %s74
      %p78 = scmp.eq.s32.totalorder %s22, 0
      %p79 = por %p77, %p78
      %p80 = scmp.ne.s32.totalorder %s72, %s74
      %p81 = scmp.eq.s32.totalorder %s27, 1
      %p82 = por %p80, %p81
      %p83 = scmp.ne.s32.totalorder %s74, %s75
      %p84 = scmp.eq.s32.totalorder %s27, 0
      %p85 = por %p83, %p84
      %p86 = scmp.ne.s32.totalorder %s74, %s75
      %p87 = scmp.eq.s32.totalorder %s28, 1
      %p88 = por %p86, %p87
      %p90 = scmp.ne.s32.totalorder %s75, %s89
      %p91 = scmp.eq.s32.totalorder %s28, 0
      %p92 = por %p90, %p91
      %s93 = ssub.s32 %s22, %s29
      %p94 = scmp.eq.s32.totalorder %s93, 0
      %s96 = sadd.s32 %s95, 1
      %s97 = scalar_select %p94, %s95, %s96
      %p100 = pneg %p94
      %p101 = scmp.eq.s32.totalorder %s22, 1
      %p102 = por %p100, %p101
      %p103 = scmp.ne.s32.totalorder %s95, %s98
      %p104 = scmp.eq.s32.totalorder %s22, 0
      %p105 = por %p103, %p104
      %p106 = scmp.ne.s32.totalorder %s95, %s98
      %p107 = scmp.eq.s32.totalorder %s27, 1
      %p108 = por %p106, %p107
      %p109 = scmp.ne.s32.totalorder %s98, %s99
      %p110 = scmp.eq.s32.totalorder %s27, 0
      %p111 = por %p109, %p110
      %p112 = scmp.ne.s32.totalorder %s98, %s99
      %p113 = scmp.eq.s32.totalorder %s28, 1
      %p114 = por %p112, %p113
      %p116 = scmp.ne.s32.totalorder %s99, %s115
      %p117 = scmp.eq.s32.totalorder %s28, 0
      %p118 = por %p116, %p117
      %s119 = ssub.s32 %s22, %s29
      %p120 = scmp.eq.s32.totalorder %s119, 0
      %s122 = sadd.s32 %s121, 1
      %s123 = scalar_select %p120, %s121, %s122
      %p126 = pneg %p120
      %p127 = scmp.eq.s32.totalorder %s22, 1
      %p128 = por %p126, %p127
      %p129 = scmp.ne.s32.totalorder %s121, %s124
      %p130 = scmp.eq.s32.totalorder %s22, 0
      %p131 = por %p129, %p130
      %p132 = scmp.ne.s32.totalorder %s121, %s124
      %p133 = scmp.eq.s32.totalorder %s27, 1
      %p134 = por %p132, %p133
      %p135 = scmp.ne.s32.totalorder %s124, %s125
      %p136 = scmp.eq.s32.totalorder %s27, 0
      %p137 = por %p135, %p136
      %p138 = scmp.ne.s32.totalorder %s124, %s125
      %p139 = scmp.eq.s32.totalorder %s28, 1
      %p140 = por %p138, %p139
      %p142 = scmp.ne.s32.totalorder %s125, %s141
      %p143 = scmp.eq.s32.totalorder %s28, 0
      %p144 = por %p142, %p143
      %s145 = ssub.s32 %s22, %s29
      %p146 = scmp.eq.s32.totalorder %s145, 0
      %s148 = sadd.s32 %s147, 1
      %s149 = scalar_select %p146, %s147, %s148
      %p152 = pneg %p146
      %p153 = scmp.eq.s32.totalorder %s22, 1
      %p154 = por %p152, %p153
      %p155 = scmp.ne.s32.totalorder %s147, %s150
      %p156 = scmp.eq.s32.totalorder %s22, 0
      %p157 = por %p155, %p156
      %p158 = scmp.ne.s32.totalorder %s147, %s150
      %p159 = scmp.eq.s32.totalorder %s27, 1
      %p160 = por %p158, %p159
      %p161 = scmp.ne.s32.totalorder %s150, %s151
      %p162 = scmp.eq.s32.totalorder %s27, 0
      %p163 = por %p161, %p162
      %p164 = scmp.ne.s32.totalorder %s150, %s151
      %p165 = scmp.eq.s32.totalorder %s28, 1
      %p166 = por %p164, %p165
      %p168 = scmp.ne.s32.totalorder %s151, %s167
      %p169 = scmp.eq.s32.totalorder %s28, 0
      %p170 = por %p168, %p169
      %s171 = ssub.s32 %s22, %s29
      %p172 = scmp.eq.s32.totalorder %s171, 0
      %s174 = sadd.s32 %s173, 1
      %s175 = scalar_select %p172, %s173, %s174
      %p178 = pneg %p172
      %p179 = scmp.eq.s32.totalorder %s22, 1
      %p180 = por %p178, %p179
      %p181 = scmp.ne.s32.totalorder %s173, %s176
      %p182 = scmp.eq.s32.totalorder %s22, 0
      %p183 = por %p181, %p182
      %p184 = scmp.ne.s32.totalorder %s173, %s176
      %p185 = scmp.eq.s32.totalorder %s27, 1
      %p186 = por %p184, %p185
      %p187 = scmp.ne.s32.totalorder %s176, %s177
      %p188 = scmp.eq.s32.totalorder %s27, 0
      %p189 = por %p187, %p188
      %p190 = scmp.ne.s32.totalorder %s176, %s177
      %p191 = scmp.eq.s32.totalorder %s28, 1
      %p192 = por %p190, %p191
      %p194 = scmp.ne.s32.totalorder %s177, %s193
      %p195 = scmp.eq.s32.totalorder %s28, 0
      %p196 = por %p194, %p195
      %s197 = ssub.s32 %s22, %s29
      %p198 = scmp.eq.s32.totalorder %s197, 0
      %s200 = sadd.s32 %s199, 1
      %s201 = scalar_select %p198, %s199, %s200
      %p204 = pneg %p198
      %p205 = scmp.eq.s32.totalorder %s22, 1
      %p206 = por %p204, %p205
      %p207 = scmp.ne.s32.totalorder %s199, %s202
      %p208 = scmp.eq.s32.totalorder %s22, 0
      %p209 = por %p207, %p208
      %p210 = scmp.ne.s32.totalorder %s199, %s202
      %p211 = scmp.eq.s32.totalorder %s27, 1
      %p212 = por %p210, %p211
      %p213 = scmp.ne.s32.totalorder %s202, %s203
      %p214 = scmp.eq.s32.totalorder %s27, 0
      %p215 = por %p213, %p214
      %p216 = scmp.ne.s32.totalorder %s202, %s203
      %p217 = scmp.eq.s32.totalorder %s28, 1
      %p218 = por %p216, %p217
      %p220 = scmp.ne.s32.totalorder %s203, %s219
      %p221 = scmp.eq.s32.totalorder %s28, 0
      %p222 = por %p220, %p221
      %s223 = ssub.s32 %s22, %s29
      %p224 = scmp.eq.s32.totalorder %s223, 0
      %s226 = sadd.s32 %s225, 1
      %s227 = scalar_select %p224, %s225, %s226
      %p230 = pneg %p224
      %p231 = scmp.eq.s32.totalorder %s22, 1
      %p232 = por %p230, %p231
      %p233 = scmp.ne.s32.totalorder %s225, %s228
      %p234 = scmp.eq.s32.totalorder %s22, 0
      %p235 = por %p233, %p234
      %p236 = scmp.ne.s32.totalorder %s225, %s228
      %p237 = scmp.eq.s32.totalorder %s27, 1
      %p238 = por %p236, %p237
      %p239 = scmp.ne.s32.totalorder %s228, %s229
      %p240 = scmp.eq.s32.totalorder %s27, 0
      %p241 = por %p239, %p240
      %p242 = scmp.ne.s32.totalorder %s228, %s229
      %p243 = scmp.eq.s32.totalorder %s28, 1
      %p244 = por %p242, %p243
      %p246 = scmp.ne.s32.totalorder %s229, %s245
      %p247 = scmp.eq.s32.totalorder %s28, 0
      %p248 = por %p246, %p247
      %s249 = ssub.s32 %s22, %s29
      %p250 = scmp.eq.s32.totalorder %s249, 0
      %s252 = sadd.s32 %s251, 1
      %s253 = scalar_select %p250, %s251, %s252
      %p256 = pneg %p250
      %p257 = scmp.eq.s32.totalorder %s22, 1
      %p258 = por %p256, %p257
      %p259 = scmp.ne.s32.totalorder %s251, %s254
      %p260 = scmp.eq.s32.totalorder %s22, 0
      %p261 = por %p259, %p260
      %p262 = scmp.ne.s32.totalorder %s251, %s254
      %p263 = scmp.eq.s32.totalorder %s27, 1
      %p264 = por %p262, %p263
      %p265 = scmp.ne.s32.totalorder %s254, %s255
      %p266 = scmp.eq.s32.totalorder %s27, 0
      %p267 = por %p265, %p266
      %p268 = scmp.ne.s32.totalorder %s254, %s255
      %p269 = scmp.eq.s32.totalorder %s28, 1
      %p270 = por %p268, %p269
      %p272 = scmp.ne.s32.totalorder %s255, %s271
      %p273 = scmp.eq.s32.totalorder %s28, 0
      %p274 = por %p272, %p273
      %s275 = ssub.s32 %s22, %s29
      %p276 = scmp.eq.s32.totalorder %s275, 0
      %s278 = sadd.s32 %s277, 1
      %s279 = scalar_select %p276, %s277, %s278
      %p282 = pneg %p276
      %p283 = scmp.eq.s32.totalorder %s22, 1
      %p284 = por %p282, %p283
      %p285 = scmp.ne.s32.totalorder %s277, %s280
      %p286 = scmp.eq.s32.totalorder %s22, 0
      %p287 = por %p285, %p286
      %p288 = scmp.ne.s32.totalorder %s277, %s280
      %p289 = scmp.eq.s32.totalorder %s27, 1
      %p290 = por %p288, %p289
      %p291 = scmp.ne.s32.totalorder %s280, %s281
      %p292 = scmp.eq.s32.totalorder %s27, 0
      %p293 = por %p291, %p292
      %p294 = scmp.ne.s32.totalorder %s280, %s281
      %p295 = scmp.eq.s32.totalorder %s28, 1
      %p296 = por %p294, %p295
      %p298 = scmp.ne.s32.totalorder %s281, %s297
      %p299 = scmp.eq.s32.totalorder %s28, 0
      %p300 = por %p298, %p299
      %s301 = ssub.s32 %s22, %s29
      %p302 = scmp.eq.s32.totalorder %s301, 0
      %s304 = sadd.s32 %s303, 1
      %s305 = scalar_select %p302, %s303, %s304
      %p308 = pneg %p302
      %p309 = scmp.eq.s32.totalorder %s22, 1
      %p310 = por %p308, %p309
      %p311 = scmp.ne.s32.totalorder %s303, %s306
      %p312 = scmp.eq.s32.totalorder %s22, 0
      %p313 = por %p311, %p312
      %p314 = scmp.ne.s32.totalorder %s303, %s306
      %p315 = scmp.eq.s32.totalorder %s27, 1
      %p316 = por %p314, %p315
      %p317 = scmp.ne.s32.totalorder %s306, %s307
      %p318 = scmp.eq.s32.totalorder %s27, 0
      %p319 = por %p317, %p318
      %p320 = scmp.ne.s32.totalorder %s306, %s307
      %p321 = scmp.eq.s32.totalorder %s28, 1
      %p322 = por %p320, %p321
      %p324 = scmp.ne.s32.totalorder %s307, %s323
      %p325 = scmp.eq.s32.totalorder %s28, 0
      %p326 = por %p324, %p325
      %s327 = ssub.s32 %s22, %s29
      %p328 = scmp.eq.s32.totalorder %s327, 0
      %s330 = sadd.s32 %s329, 1
      %s331 = scalar_select %p328, %s329, %s330
      %p334 = pneg %p328
      %p335 = scmp.eq.s32.totalorder %s22, 1
      %p336 = por %p334, %p335
      %p337 = scmp.ne.s32.totalorder %s329, %s332
      %p338 = scmp.eq.s32.totalorder %s22, 0
      %p339 = por %p337, %p338
      %p340 = scmp.ne.s32.totalorder %s329, %s332
      %p341 = scmp.eq.s32.totalorder %s27, 1
      %p342 = por %p340, %p341
      %p343 = scmp.ne.s32.totalorder %s332, %s333
      %p344 = scmp.eq.s32.totalorder %s27, 0
      %p345 = por %p343, %p344
      %p346 = scmp.ne.s32.totalorder %s332, %s333
      %p347 = scmp.eq.s32.totalorder %s28, 1
      %p348 = por %p346, %p347
      %p350 = scmp.ne.s32.totalorder %s333, %s349
      %p351 = scmp.eq.s32.totalorder %s28, 0
      %p352 = por %p350, %p351
      %s353 = ssub.s32 %s22, %s29
      %p354 = scmp.eq.s32.totalorder %s353, 0
      %s356 = sadd.s32 %s355, 1
      %s357 = scalar_select %p354, %s355, %s356
      %p360 = pneg %p354
      %p361 = scmp.eq.s32.totalorder %s22, 1
      %p362 = por %p360, %p361
      %p363 = scmp.ne.s32.totalorder %s355, %s358
      %p364 = scmp.eq.s32.totalorder %s22, 0
      %p365 = por %p363, %p364
      %p366 = scmp.ne.s32.totalorder %s355, %s358
      %p367 = scmp.eq.s32.totalorder %s27, 1
      %p368 = por %p366, %p367
      %p369 = scmp.ne.s32.totalorder %s358, %s359
      %p370 = scmp.eq.s32.totalorder %s27, 0
      %p371 = por %p369, %p370
      %p372 = scmp.ne.s32.totalorder %s358, %s359
      %p373 = scmp.eq.s32.totalorder %s28, 1
      %p374 = por %p372, %p373
      %p376 = scmp.ne.s32.totalorder %s359, %s375
      %p377 = scmp.eq.s32.totalorder %s28, 0
      %p378 = por %p376, %p377
      %s379 = ssub.s32 %s22, %s29
      %p380 = scmp.eq.s32.totalorder %s379, 0
      %s382 = sadd.s32 %s381, 1
      %s383 = scalar_select %p380, %s381, %s382
      %p386 = pneg %p380
      %p387 = scmp.eq.s32.totalorder %s22, 1
      %p388 = por %p386, %p387
      %p389 = scmp.ne.s32.totalorder %s381, %s384
      %p390 = scmp.eq.s32.totalorder %s22, 0
      %p391 = por %p389, %p390
      %p392 = scmp.ne.s32.totalorder %s381, %s384
      %p393 = scmp.eq.s32.totalorder %s27, 1
      %p394 = por %p392, %p393
      %p395 = scmp.ne.s32.totalorder %s384, %s385
      %p396 = scmp.eq.s32.totalorder %s27, 0
      %p397 = por %p395, %p396
      %p398 = scmp.ne.s32.totalorder %s384, %s385
      %p399 = scmp.eq.s32.totalorder %s28, 1
      %p400 = por %p398, %p399
      %p402 = scmp.ne.s32.totalorder %s385, %s401
      %p403 = scmp.eq.s32.totalorder %s28, 0
      %p404 = por %p402, %p403
      %s406 = sadd.s32 %s405, 1
      %p409 = scmp.eq.s32.totalorder %s22, 1
      %p410 = scmp.ne.s32.totalorder %s405, %s407
      %p411 = scmp.eq.s32.totalorder %s22, 0
      %p412 = por %p410, %p411
      %p413 = scmp.ne.s32.totalorder %s405, %s407
      %p414 = scmp.eq.s32.totalorder %s27, 1
      %p415 = por %p413, %p414
      %p416 = scmp.ne.s32.totalorder %s407, %s408
      %p417 = scmp.eq.s32.totalorder %s27, 0
      %p418 = por %p416, %p417
      %p419 = scmp.ne.s32.totalorder %s407, %s408
      %p420 = scmp.eq.s32.totalorder %s28, 1
      %p421 = por %p419, %p420
      %p423 = scmp.ne.s32.totalorder %s408, %s422
      %p424 = scmp.eq.s32.totalorder %s28, 0
      %p425 = por %p423, %p424
      %p426 = scmp.le.s32.totalorder 1, %s22
      %p427 = scmp.lt.s32.totalorder %s22, 3
      %p428 = pnand %p426, %p427
      %p429 = pneg %p428
      // Predicated region
      $region9: #{text_encoder.1} parent=5 // pred_check
        _
      $region10: #{text_encoder.1} parent=5 // pred_check_branch
        %431 = sbr.rel (%p428) target = $region12
      $region11: #{text_encoder.1} parent=5 // pred_region
        %s432 = ssub.s32 %s22, 1
        // Predicated region
        $region13: #{text_encoder.1} parent=11 // pred_check
          %p433 = pneg %p43
        $region14: #{text_encoder.1} parent=11 // pred_check_branch
          %435 = sbr.rel (%p433) target = $region16
        $region15: #{text_encoder.1} parent=11 // pred_region
          _
        $region16: #{text_encoder.1} parent=11 // pred_fallthru
          _
        // Predicated region
        $region17: #{text_encoder.1} parent=11 // pred_check
          %p436 = pneg %p64
        $region18: #{text_encoder.1} parent=11 // pred_check_branch
          %438 = sbr.rel (%p436) target = $region20
        $region19: #{text_encoder.1} parent=11 // pred_region
          _
        $region20: #{text_encoder.1} parent=11 // pred_fallthru
          _
        // Predicated region
        $region21: #{text_encoder.1} parent=11 // pred_check
          %p439 = pneg %p85
        $region22: #{text_encoder.1} parent=11 // pred_check_branch
          %441 = sbr.rel (%p439) target = $region24
        $region23: #{text_encoder.1} parent=11 // pred_region
          _
        $region24: #{text_encoder.1} parent=11 // pred_fallthru
          _
      $region12: #{text_encoder.1} parent=5 // pred_fallthru
        _
      %p442 = scmp.lt.s32.totalorder %s22, 2
      // Predicated region
      $region25: #{text_encoder.1} parent=5 // pred_check
        %p443 = pneg %p442
      $region26: #{text_encoder.1} parent=5 // pred_check_branch
        %445 = sbr.rel (%p443) target = $region28
      $region27: #{text_encoder.1} parent=5 // pred_region
        // Predicated region
        $region29: #{text_encoder.1} parent=27 // pred_check
          %p446 = pneg %p105
        $region30: #{text_encoder.1} parent=27 // pred_check_branch
          %448 = sbr.rel (%p446) target = $region32
        $region31: #{text_encoder.1} parent=27 // pred_region
          %p449 = scmp.lt.s32.totalorder %s22, 1
          %s450 = scalar_select %p449, %s22, 1
          %s451 = smul.addr %s450, 48
          %s452 = smul.addr %s451, 4
          %s453 = scalar_lea.vmem %s3, %s452
        $region32: #{text_encoder.1} parent=27 // pred_fallthru
          _
        // Predicated region
        $region33: #{text_encoder.1} parent=27 // pred_check
          %p454 = pneg %p131
        $region34: #{text_encoder.1} parent=27 // pred_check_branch
          %456 = sbr.rel (%p454) target = $region36
        $region35: #{text_encoder.1} parent=27 // pred_region
          %p457 = scmp.lt.s32.totalorder %s22, 1
          %s458 = scalar_select %p457, %s22, 1
          %s459 = smul.addr %s458, 3
          %s460 = scalar_lea.vmem %s4, %s459
        $region36: #{text_encoder.1} parent=27 // pred_fallthru
          _
        // Predicated region
        $region37: #{text_encoder.1} parent=27 // pred_check
          %p461 = pneg %p157
        $region38: #{text_encoder.1} parent=27 // pred_check_branch
          %463 = sbr.rel (%p461) target = $region40
        $region39: #{text_encoder.1} parent=27 // pred_region
          %p464 = scmp.lt.s32.totalorder %s22, 1
          %s465 = scalar_select %p464, %s22, 1
          %s466 = smul.addr %s465, 16
          %s467 = smul.addr %s466, 4
          %s468 = scalar_lea.vmem %s5, %s467
        $region40: #{text_encoder.1} parent=27 // pred_fallthru
          _
        // Predicated region
        $region41: #{text_encoder.1} parent=27 // pred_check
          %p469 = pneg %p183
        $region42: #{text_encoder.1} parent=27 // pred_check_branch
          %471 = sbr.rel (%p469) target = $region44
        $region43: #{text_encoder.1} parent=27 // pred_region
          %p472 = scmp.lt.s32.totalorder %s22, 1
          %s473 = scalar_select %p472, %s22, 1
          %s474 = scalar_lea.vmem %s6, %s473
        $region44: #{text_encoder.1} parent=27 // pred_fallthru
          _
        // Predicated region
        $region45: #{text_encoder.1} parent=27 // pred_check
          %p475 = pneg %p209
        $region46: #{text_encoder.1} parent=27 // pred_check_branch
          %477 = sbr.rel (%p475) target = $region48
        $region47: #{text_encoder.1} parent=27 // pred_region
          %p478 = scmp.lt.s32.totalorder %s22, 1
          %s479 = scalar_select %p478, %s22, 1
          %s480 = scalar_lea.vmem %s7, %s479
        $region48: #{text_encoder.1} parent=27 // pred_fallthru
          _
        // Predicated region
        $region49: #{text_encoder.1} parent=27 // pred_check
          %p481 = pneg %p235
        $region50: #{text_encoder.1} parent=27 // pred_check_branch
          %483 = sbr.rel (%p481) target = $region52
        $region51: #{text_encoder.1} parent=27 // pred_region
          %p484 = scmp.lt.s32.totalorder %s22, 1
          %s485 = scalar_select %p484, %s22, 1
          %s486 = scalar_lea.vmem %s8, %s485
        $region52: #{text_encoder.1} parent=27 // pred_fallthru
          _
        // Predicated region
        $region53: #{text_encoder.1} parent=27 // pred_check
          %p487 = pneg %p261
        $region54: #{text_encoder.1} parent=27 // pred_check_branch
          %489 = sbr.rel (%p487) target = $region56
        $region55: #{text_encoder.1} parent=27 // pred_region
          %p490 = scmp.lt.s32.totalorder %s22, 1
          %s491 = scalar_select %p490, %s22, 1
          %s492 = smul.addr %s491, 32
          %s493 = smul.addr %s492, 4
          %s494 = scalar_lea.vmem %s9, %s493
        $region56: #{text_encoder.1} parent=27 // pred_fallthru
          _
        // Predicated region
        $region57: #{text_encoder.1} parent=27 // pred_check
          %p495 = pneg %p287
        $region58: #{text_encoder.1} parent=27 // pred_check_branch
          %497 = sbr.rel (%p495) target = $region60
        $region59: #{text_encoder.1} parent=27 // pred_region
          %p498 = scmp.lt.s32.totalorder %s22, 1
          %s499 = scalar_select %p498, %s22, 1
          %s500 = smul.addr %s499, 2
          %s501 = scalar_lea.vmem %s10, %s500
        $region60: #{text_encoder.1} parent=27 // pred_fallthru
          _
        // Predicated region
        $region61: #{text_encoder.1} parent=27 // pred_check
          %p502 = pneg %p313
        $region62: #{text_encoder.1} parent=27 // pred_check_branch
          %504 = sbr.rel (%p502) target = $region64
        $region63: #{text_encoder.1} parent=27 // pred_region
          %p505 = scmp.lt.s32.totalorder %s22, 1
          %s506 = scalar_select %p505, %s22, 1
          %s507 = smul.addr %s506, 32
          %s508 = smul.addr %s507, 4
          %s509 = scalar_lea.vmem %s11, %s508
        $region64: #{text_encoder.1} parent=27 // pred_fallthru
          _
        // Predicated region
        $region65: #{text_encoder.1} parent=27 // pred_check
          %p510 = pneg %p339
        $region66: #{text_encoder.1} parent=27 // pred_check_branch
          %512 = sbr.rel (%p510) target = $region68
        $region67: #{text_encoder.1} parent=27 // pred_region
          %p513 = scmp.lt.s32.totalorder %s22, 1
          %s514 = scalar_select %p513, %s22, 1
          %s515 = scalar_lea.vmem %s12, %s514
        $region68: #{text_encoder.1} parent=27 // pred_fallthru
          _
        // Predicated region
        $region69: #{text_encoder.1} parent=27 // pred_check
          %p516 = pneg %p365
        $region70: #{text_encoder.1} parent=27 // pred_check_branch
          %518 = sbr.rel (%p516) target = $region72
        $region71: #{text_encoder.1} parent=27 // pred_region
          %p519 = scmp.lt.s32.totalorder %s22, 1
          %s520 = scalar_select %p519, %s22, 1
          %s521 = scalar_lea.vmem %s13, %s520
        $region72: #{text_encoder.1} parent=27 // pred_fallthru
          _
        // Predicated region
        $region73: #{text_encoder.1} parent=27 // pred_check
          %p522 = pneg %p391
        $region74: #{text_encoder.1} parent=27 // pred_check_branch
          %524 = sbr.rel (%p522) target = $region76
        $region75: #{text_encoder.1} parent=27 // pred_region
          %p525 = scmp.lt.s32.totalorder %s22, 1
          %s526 = scalar_select %p525, %s22, 1
          %s527 = scalar_lea.vmem %s14, %s526
        $region76: #{text_encoder.1} parent=27 // pred_fallthru
          _
      $region28: #{text_encoder.1} parent=5 // pred_fallthru
        _
      %p528 = scmp.le.s32.totalorder 1, %s22
      %p529 = scmp.lt.s32.totalorder %s22, 3
      %p530 = pnand %p528, %p529
      %p531 = pneg %p530
      // Predicated region
      $region77: #{text_encoder.1} parent=5 // pred_check
        _
      $region78: #{text_encoder.1} parent=5 // pred_check_branch
        %533 = sbr.rel (%p530) target = $region80
      $region79: #{text_encoder.1} parent=5 // pred_region
        %s534 = ssub.s32 %s22, 1
        %p535 = pneg %p43
        %p536 = pneg %p40
        %p537 = pneg %p64
        %p538 = pneg %p61
        %p539 = pneg %p85
        %p540 = pneg %p82
        %p541 = scmp.lt.s32.totalorder %s27, 1
        %s542 = scalar_select %p541, %s27, 1
        %s543 = smul.addr %s542, 48
        %s544 = smul.addr %s543, 4
        %s545 = scalar_lea.vmem %s3, %s544
        %p546 = pneg %p111
        %p547 = pneg %p108
        %p548 = scmp.lt.s32.totalorder %s27, 1
        %s549 = scalar_select %p548, %s27, 1
        %s550 = smul.addr %s549, 3
        %s551 = scalar_lea.vmem %s4, %s550
        %p552 = pneg %p137
        %p553 = pneg %p134
        %p554 = scmp.lt.s32.totalorder %s27, 1
        %s555 = scalar_select %p554, %s27, 1
        %s556 = smul.addr %s555, 16
        %s557 = smul.addr %s556, 4
        %s558 = scalar_lea.vmem %s5, %s557
        %p559 = pneg %p163
        %p560 = pneg %p160
        %p561 = scmp.lt.s32.totalorder %s27, 1
        %s562 = scalar_select %p561, %s27, 1
        %s563 = scalar_lea.vmem %s6, %s562
        %p564 = pneg %p189
        %p565 = pneg %p186
        %p566 = scmp.lt.s32.totalorder %s27, 1
        %s567 = scalar_select %p566, %s27, 1
        %s568 = scalar_lea.vmem %s7, %s567
        %p569 = pneg %p215
        %p570 = pneg %p212
        %p571 = scmp.lt.s32.totalorder %s27, 1
        %s572 = scalar_select %p571, %s27, 1
        %s573 = scalar_lea.vmem %s8, %s572
        %p574 = pneg %p241
        %p575 = pneg %p238
        %p576 = scmp.lt.s32.totalorder %s27, 1
        %s577 = scalar_select %p576, %s27, 1
        %s578 = smul.addr %s577, 32
        %s579 = smul.addr %s578, 4
        %s580 = scalar_lea.vmem %s9, %s579
        %p581 = pneg %p267
        %p582 = pneg %p264
        %p583 = scmp.lt.s32.totalorder %s27, 1
        %s584 = scalar_select %p583, %s27, 1
        %s585 = smul.addr %s584, 2
        %s586 = scalar_lea.vmem %s10, %s585
        %p587 = pneg %p293
        %p588 = pneg %p290
        %p589 = scmp.lt.s32.totalorder %s27, 1
        %s590 = scalar_select %p589, %s27, 1
        %s591 = smul.addr %s590, 32
        %s592 = smul.addr %s591, 4
        %s593 = scalar_lea.vmem %s11, %s592
        %p594 = pneg %p319
        %p595 = pneg %p316
        %p596 = scmp.lt.s32.totalorder %s27, 1
        %s597 = scalar_select %p596, %s27, 1
        %s598 = scalar_lea.vmem %s12, %s597
        %p599 = pneg %p345
        %p600 = pneg %p342
        %p601 = scmp.lt.s32.totalorder %s27, 1
        %s602 = scalar_select %p601, %s27, 1
        %s603 = scalar_lea.vmem %s13, %s602
        %p604 = pneg %p371
        %p605 = pneg %p368
        %p606 = scmp.lt.s32.totalorder %s27, 1
        %s607 = scalar_select %p606, %s27, 1
        %s608 = scalar_lea.vmem %s14, %s607
        %p609 = pneg %p397
        %p610 = pneg %p394
        %p611 = pneg %p418
        %p612 = pneg %p415
        %p613 = scmp.lt.s32.totalorder %s27, 1
        %s614 = scalar_select %p613, %s27, 1
        %s615 = smul.addr %s614, 48
        %s616 = smul.addr %s615, 4
        %s617 = scalar_lea.vmem %s3, %s616
        %p618 = scmp.lt.s32.totalorder %s27, 1
        %s619 = scalar_select %p618, %s27, 1
        %s620 = smul.addr %s619, 3
        %s621 = scalar_lea.vmem %s4, %s620
        %p622 = scmp.lt.s32.totalorder %s27, 1
        %s623 = scalar_select %p622, %s27, 1
        %s624 = smul.addr %s623, 16
        %s625 = smul.addr %s624, 4
        %s626 = scalar_lea.vmem %s5, %s625
        %p627 = scmp.lt.s32.totalorder %s27, 1
        %s628 = scalar_select %p627, %s27, 1
        %s629 = scalar_lea.vmem %s6, %s628
        %p630 = scmp.lt.s32.totalorder %s27, 1
        %s631 = scalar_select %p630, %s27, 1
        %s632 = scalar_lea.vmem %s7, %s631
        %p633 = scmp.lt.s32.totalorder %s27, 1
        %s634 = scalar_select %p633, %s27, 1
        %s635 = scalar_lea.vmem %s8, %s634
        %p636 = scmp.lt.s32.totalorder %s27, 1
        %s637 = scalar_select %p636, %s27, 1
        %s638 = smul.addr %s637, 32
        %s639 = smul.addr %s638, 4
        %s640 = scalar_lea.vmem %s9, %s639
        %p641 = scmp.lt.s32.totalorder %s27, 1
        %s642 = scalar_select %p641, %s27, 1
        %s643 = smul.addr %s642, 2
        %s644 = scalar_lea.vmem %s10, %s643
        %p645 = scmp.lt.s32.totalorder %s27, 1
        %s646 = scalar_select %p645, %s27, 1
        %s647 = smul.addr %s646, 32
        %s648 = smul.addr %s647, 4
        %s649 = scalar_lea.vmem %s11, %s648
        %p650 = scmp.lt.s32.totalorder %s27, 1
        %s651 = scalar_select %p650, %s27, 1
        %s652 = scalar_lea.vmem %s12, %s651
        %p653 = scmp.lt.s32.totalorder %s27, 1
        %s654 = scalar_select %p653, %s27, 1
        %s655 = scalar_lea.vmem %s13, %s654
        %p656 = scmp.lt.s32.totalorder %s27, 1
        %s657 = scalar_select %p656, %s27, 1
        %s658 = scalar_lea.vmem %s14, %s657
        %p660 = scmp.eq.s32.totalorder %s27, 0
        // Predicated region
        $region81: #{text_encoder.1} parent=79 // pred_check
          %p661 = pneg %p660
        $region82: #{text_encoder.1} parent=79 // pred_check_branch
          %663 = sbr.rel (%p661) target = $region84
        $region83: #{text_encoder.1} parent=79 // pred_region
          %v664 = vld [vmem:[%s0] sm:$0xff]
          %v665 = vld [vmem:[%s0 + $0x8] sm:$0xff]
          %v666 = vld [vmem:[%s0 + $0x10] sm:$0xff]
          %v667 = vld [vmem:[%s0 + $0x18] sm:$0xff]
          %v668 = vld [vmem:[%s0 + $0x20] sm:$0xff]
          %v669 = vld [vmem:[%s0 + $0x28] sm:$0xff]
          %v670 = vld [vmem:[%s0 + $0x30] sm:$0xff]
          %v671 = vld [vmem:[%s0 + $0x38] sm:$0xff]
          %v672 = vld [vmem:[%s0 + $0x40] sm:$0xff]
          %v673 = vld [vmem:[%s0 + $0x48] sm:$0xff]
          %v674 = vld [vmem:[%s0 + $0x50] sm:$0xff]
          %v675 = vld [vmem:[%s0 + $0x58] sm:$0xff]
          %v676 = vld [vmem:[%s0 + $0x60] sm:$0xff]
          %v677 = vld [vmem:[%s0 + $0x68] sm:$0xff]
          %v678 = vld [vmem:[%s0 + $0x70] sm:$0xff]
          %v679 = vld [vmem:[%s0 + $0x78] sm:$0xff]
          %v680 = vld [vmem:[%s1] sm:$0xff]
          %v681 = vld [vmem:[%s1 + $0x8] sm:$0xff]
          %v682 = vld [vmem:[%s1 + $0x10] sm:$0xff]
          %v683 = vld [vmem:[%s1 + $0x18] sm:$0xff]
          %v684 = vld [vmem:[%s1 + $0x20] sm:$0xff]
          %v685 = vld [vmem:[%s1 + $0x28] sm:$0xff]
          %v686 = vld [vmem:[%s1 + $0x30] sm:$0xff]
          %v687 = vld [vmem:[%s1 + $0x38] sm:$0xff]
          %v688 = vld [vmem:[%s2] sm:$0xff]
          %v689 = vld [vmem:[%s2 + $0x8] sm:$0xff]
          %v690 = vld [vmem:[%s2 + $0x10] sm:$0xff]
          %v691 = vld [vmem:[%s2 + $0x18] sm:$0xff]
          %v692 = vld [vmem:[%s2 + $0x20] sm:$0xff]
          %v693 = vld [vmem:[%s2 + $0x28] sm:$0xff]
          %v694 = vld [vmem:[%s2 + $0x30] sm:$0xff]
          %v695 = vld [vmem:[%s2 + $0x38] sm:$0xff]
          %v696 = vmul.f32 %v664, %v680
          %v697 = vmul.f32 %v665, %v681
          %v698 = vmul.f32 %v666, %v682
          %v699 = vmul.f32 %v667, %v683
          %v700 = vmul.f32 %v668, %v684
          %v701 = vmul.f32 %v669, %v685
          %v702 = vmul.f32 %v670, %v686
          %v703 = vmul.f32 %v671, %v687
          %v704 = vmul.f32 %v672, %v680
          %v705 = vmul.f32 %v673, %v681
          %v706 = vmul.f32 %v674, %v682
          %v707 = vmul.f32 %v675, %v683
          %v708 = vmul.f32 %v676, %v684
          %v709 = vmul.f32 %v677, %v685
          %v710 = vmul.f32 %v678, %v686
          %v711 = vmul.f32 %v679, %v687
          %720 = vrot.lane.b32.xlu0 %v688, 64
          %v721 = vpop.permute.xlu0 %720
          %722 = vrot.lane.b32.xlu0 %v689, 64
          %v723 = vpop.permute.xlu0 %722
          %724 = vrot.lane.b32.xlu0 %v690, 64
          %v725 = vpop.permute.xlu0 %724
          %726 = vrot.lane.b32.xlu0 %v691, 64
          %v727 = vpop.permute.xlu0 %726
          %728 = vrot.lane.b32.xlu0 %v692, 64
          %v729 = vpop.permute.xlu0 %728
          %730 = vrot.lane.b32.xlu0 %v693, 64
          %v731 = vpop.permute.xlu0 %730
          %732 = vrot.lane.b32.xlu0 %v694, 64
          %v733 = vpop.permute.xlu0 %732
          %734 = vrot.lane.b32.xlu0 %v695, 64
          %v735 = vpop.permute.xlu0 %734
          %v744 = vmul.f32 %v664, %v721
          %v745 = vmul.f32 %v665, %v723
          %v746 = vmul.f32 %v666, %v725
          %v747 = vmul.f32 %v667, %v727
          %v748 = vmul.f32 %v668, %v729
          %v749 = vmul.f32 %v669, %v731
          %v750 = vmul.f32 %v670, %v733
          %v751 = vmul.f32 %v671, %v735
          %v752 = vmul.f32 %v672, %v721
          %v753 = vmul.f32 %v673, %v723
          %v754 = vmul.f32 %v674, %v725
          %v755 = vmul.f32 %v675, %v727
          %v756 = vmul.f32 %v676, %v729
          %v757 = vmul.f32 %v677, %v731
          %v758 = vmul.f32 %v678, %v733
          %v759 = vmul.f32 %v679, %v735
          %776 = vrot.lane.b32.xlu0 %v744, 64
          %v777 = vpop.permute.xlu0 %776
          %778 = vrot.lane.b32.xlu0 %v745, 64
          %v779 = vpop.permute.xlu0 %778
          %780 = vrot.lane.b32.xlu0 %v746, 64
          %v781 = vpop.permute.xlu0 %780
          %782 = vrot.lane.b32.xlu0 %v747, 64
          %v783 = vpop.permute.xlu0 %782
          %784 = vrot.lane.b32.xlu0 %v748, 64
          %v785 = vpop.permute.xlu0 %784
          %786 = vrot.lane.b32.xlu0 %v749, 64
          %v787 = vpop.permute.xlu0 %786
          %788 = vrot.lane.b32.xlu0 %v750, 64
          %v789 = vpop.permute.xlu0 %788
          %790 = vrot.lane.b32.xlu0 %v751, 64
          %v791 = vpop.permute.xlu0 %790
          %792 = vrot.lane.b32.xlu0 %v752, 64
          %v793 = vpop.permute.xlu0 %792
          %794 = vrot.lane.b32.xlu0 %v753, 64
          %v795 = vpop.permute.xlu0 %794
          %796 = vrot.lane.b32.xlu0 %v754, 64
          %v797 = vpop.permute.xlu0 %796
          %798 = vrot.lane.b32.xlu0 %v755, 64
          %v799 = vpop.permute.xlu0 %798
          %800 = vrot.lane.b32.xlu0 %v756, 64
          %v801 = vpop.permute.xlu0 %800
          %802 = vrot.lane.b32.xlu0 %v757, 64
          %v803 = vpop.permute.xlu0 %802
          %804 = vrot.lane.b32.xlu0 %v758, 64
          %v805 = vpop.permute.xlu0 %804
          %806 = vrot.lane.b32.xlu0 %v759, 64
          %v807 = vpop.permute.xlu0 %806
          %v824 = vsub.f32 %v696, %v777
          %v825 = vsub.f32 %v697, %v779
          %v826 = vsub.f32 %v698, %v781
          %v827 = vsub.f32 %v699, %v783
          %v828 = vsub.f32 %v700, %v785
          %v829 = vsub.f32 %v701, %v787
          %v830 = vsub.f32 %v702, %v789
          %v831 = vsub.f32 %v703, %v791
          %v832 = vsub.f32 %v704, %v793
          %v833 = vsub.f32 %v705, %v795
          %v834 = vsub.f32 %v706, %v797
          %v835 = vsub.f32 %v707, %v799
          %v836 = vsub.f32 %v708, %v801
          %v837 = vsub.f32 %v709, %v803
          %v838 = vsub.f32 %v710, %v805
          %v839 = vsub.f32 %v711, %v807
          %vm840 = vcmask 523264
          %841 = vst.msk [vmem:[#allocation2] sm:$0xff] %vm840, %v824
          %842 = vst.msk [vmem:[#allocation2 + $0x8] sm:$0xff] %vm840, %v825
          %843 = vst.msk [vmem:[#allocation2 + $0x10] sm:$0xff] %vm840, %v826
          %844 = vst.msk [vmem:[#allocation2 + $0x18] sm:$0xff] %vm840, %v827
          %845 = vst.msk [vmem:[#allocation2 + $0x20] sm:$0xff] %vm840, %v828
          %846 = vst.msk [vmem:[#allocation2 + $0x28] sm:$0xff] %vm840, %v829
          %847 = vst.msk [vmem:[#allocation2 + $0x30] sm:$0xff] %vm840, %v830
          %848 = vst.msk [vmem:[#allocation2 + $0x38] sm:$0xff] %vm840, %v831
          %849 = vst.msk [vmem:[#allocation2 + $0x40] sm:$0xff] %vm840, %v832
          %850 = vst.msk [vmem:[#allocation2 + $0x48] sm:$0xff] %vm840, %v833
          %851 = vst.msk [vmem:[#allocation2 + $0x50] sm:$0xff] %vm840, %v834
          %852 = vst.msk [vmem:[#allocation2 + $0x58] sm:$0xff] %vm840, %v835
          %853 = vst.msk [vmem:[#allocation2 + $0x60] sm:$0xff] %vm840, %v836
          %854 = vst.msk [vmem:[#allocation2 + $0x68] sm:$0xff] %vm840, %v837
          %855 = vst.msk [vmem:[#allocation2 + $0x70] sm:$0xff] %vm840, %v838
          %856 = vst.msk [vmem:[#allocation2 + $0x78] sm:$0xff] %vm840, %v839
          %v857 = vmul.f32 %v664, %v688
          %v858 = vmul.f32 %v665, %v689
          %v859 = vmul.f32 %v666, %v690
          %v860 = vmul.f32 %v667, %v691
          %v861 = vmul.f32 %v668, %v692
          %v862 = vmul.f32 %v669, %v693
          %v863 = vmul.f32 %v670, %v694
          %v864 = vmul.f32 %v671, %v695
          %v865 = vmul.f32 %v672, %v688
          %v866 = vmul.f32 %v673, %v689
          %v867 = vmul.f32 %v674, %v690
          %v868 = vmul.f32 %v675, %v691
          %v869 = vmul.f32 %v676, %v692
          %v870 = vmul.f32 %v677, %v693
          %v871 = vmul.f32 %v678, %v694
          %v872 = vmul.f32 %v679, %v695
          %881 = vrot.lane.b32.xlu0 %v680, 64
          %v882 = vpop.permute.xlu0 %881
          %883 = vrot.lane.b32.xlu0 %v681, 64
          %v884 = vpop.permute.xlu0 %883
          %885 = vrot.lane.b32.xlu0 %v682, 64
          %v886 = vpop.permute.xlu0 %885
          %887 = vrot.lane.b32.xlu0 %v683, 64
          %v888 = vpop.permute.xlu0 %887
          %889 = vrot.lane.b32.xlu0 %v684, 64
          %v890 = vpop.permute.xlu0 %889
          %891 = vrot.lane.b32.xlu0 %v685, 64
          %v892 = vpop.permute.xlu0 %891
          %893 = vrot.lane.b32.xlu0 %v686, 64
          %v894 = vpop.permute.xlu0 %893
          %895 = vrot.lane.b32.xlu0 %v687, 64
          %v896 = vpop.permute.xlu0 %895
          %v905 = vmul.f32 %v664, %v882
          %v906 = vmul.f32 %v665, %v884
          %v907 = vmul.f32 %v666, %v886
          %v908 = vmul.f32 %v667, %v888
          %v909 = vmul.f32 %v668, %v890
          %v910 = vmul.f32 %v669, %v892
          %v911 = vmul.f32 %v670, %v894
          %v912 = vmul.f32 %v671, %v896
          %v913 = vmul.f32 %v672, %v882
          %v914 = vmul.f32 %v673, %v884
          %v915 = vmul.f32 %v674, %v886
          %v916 = vmul.f32 %v675, %v888
          %v917 = vmul.f32 %v676, %v890
          %v918 = vmul.f32 %v677, %v892
          %v919 = vmul.f32 %v678, %v894
          %v920 = vmul.f32 %v679, %v896
          %937 = vrot.lane.b32.xlu0 %v905, 64
          %v938 = vpop.permute.xlu0 %937
          %939 = vrot.lane.b32.xlu0 %v906, 64
          %v940 = vpop.permute.xlu0 %939
          %941 = vrot.lane.b32.xlu0 %v907, 64
          %v942 = vpop.permute.xlu0 %941
          %943 = vrot.lane.b32.xlu0 %v908, 64
          %v944 = vpop.permute.xlu0 %943
          %945 = vrot.lane.b32.xlu0 %v909, 64
          %v946 = vpop.permute.xlu0 %945
          %947 = vrot.lane.b32.xlu0 %v910, 64
          %v948 = vpop.permute.xlu0 %947
          %949 = vrot.lane.b32.xlu0 %v911, 64
          %v950 = vpop.permute.xlu0 %949
          %951 = vrot.lane.b32.xlu0 %v912, 64
          %v952 = vpop.permute.xlu0 %951
          %953 = vrot.lane.b32.xlu0 %v913, 64
          %v954 = vpop.permute.xlu0 %953
          %955 = vrot.lane.b32.xlu0 %v914, 64
          %v956 = vpop.permute.xlu0 %955
          %957 = vrot.lane.b32.xlu0 %v915, 64
          %v958 = vpop.permute.xlu0 %957
          %959 = vrot.lane.b32.xlu0 %v916, 64
          %v960 = vpop.permute.xlu0 %959
          %961 = vrot.lane.b32.xlu0 %v917, 64
          %v962 = vpop.permute.xlu0 %961
          %963 = vrot.lane.b32.xlu0 %v918, 64
          %v964 = vpop.permute.xlu0 %963
          %965 = vrot.lane.b32.xlu0 %v919, 64
          %v966 = vpop.permute.xlu0 %965
          %967 = vrot.lane.b32.xlu0 %v920, 64
          %v968 = vpop.permute.xlu0 %967
          %v985 = vadd.f32 %v857, %v938
          %v986 = vadd.f32 %v858, %v940
          %v987 = vadd.f32 %v859, %v942
          %v988 = vadd.f32 %v860, %v944
          %v989 = vadd.f32 %v861, %v946
          %v990 = vadd.f32 %v862, %v948
          %v991 = vadd.f32 %v863, %v950
          %v992 = vadd.f32 %v864, %v952
          %v993 = vadd.f32 %v865, %v954
          %v994 = vadd.f32 %v866, %v956
          %v995 = vadd.f32 %v867, %v958
          %v996 = vadd.f32 %v868, %v960
          %v997 = vadd.f32 %v869, %v962
          %v998 = vadd.f32 %v870, %v964
          %v999 = vadd.f32 %v871, %v966
          %v1000 = vadd.f32 %v872, %v968
          %1017 = vrot.lane.b32.xlu0 %v985, 64
          %v1018 = vpop.permute.xlu0 %1017
          %1019 = vrot.lane.b32.xlu0 %v986, 64
          %v1020 = vpop.permute.xlu0 %1019
          %1021 = vrot.lane.b32.xlu0 %v987, 64
          %v1022 = vpop.permute.xlu0 %1021
          %1023 = vrot.lane.b32.xlu0 %v988, 64
          %v1024 = vpop.permute.xlu0 %1023
          %1025 = vrot.lane.b32.xlu0 %v989, 64
          %v1026 = vpop.permute.xlu0 %1025
          %1027 = vrot.lane.b32.xlu0 %v990, 64
          %v1028 = vpop.permute.xlu0 %1027
          %1029 = vrot.lane.b32.xlu0 %v991, 64
          %v1030 = vpop.permute.xlu0 %1029
          %1031 = vrot.lane.b32.xlu0 %v992, 64
          %v1032 = vpop.permute.xlu0 %1031
          %1033 = vrot.lane.b32.xlu0 %v993, 64
          %v1034 = vpop.permute.xlu0 %1033
          %1035 = vrot.lane.b32.xlu0 %v994, 64
          %v1036 = vpop.permute.xlu0 %1035
          %1037 = vrot.lane.b32.xlu0 %v995, 64
          %v1038 = vpop.permute.xlu0 %1037
          %1039 = vrot.lane.b32.xlu0 %v996, 64
          %v1040 = vpop.permute.xlu0 %1039
          %1041 = vrot.lane.b32.xlu0 %v997, 64
          %v1042 = vpop.permute.xlu0 %1041
          %1043 = vrot.lane.b32.xlu0 %v998, 64
          %v1044 = vpop.permute.xlu0 %1043
          %1045 = vrot.lane.b32.xlu0 %v999, 64
          %v1046 = vpop.permute.xlu0 %1045
          %1047 = vrot.lane.b32.xlu0 %v1000, 64
          %v1048 = vpop.permute.xlu0 %1047
          %vm1065 = vcmask 1048064
          %1066 = vst.msk [vmem:[#allocation2] sm:$0xff] %vm1065, %v1018
          %1067 = vst.msk [vmem:[#allocation2 + $0x8] sm:$0xff] %vm1065, %v1020
          %1068 = vst.msk [vmem:[#allocation2 + $0x10] sm:$0xff] %vm1065, %v1022
          %1069 = vst.msk [vmem:[#allocation2 + $0x18] sm:$0xff] %vm1065, %v1024
          %1070 = vst.msk [vmem:[#allocation2 + $0x20] sm:$0xff] %vm1065, %v1026
          %1071 = vst.msk [vmem:[#allocation2 + $0x28] sm:$0xff] %vm1065, %v1028
          %1072 = vst.msk [vmem:[#allocation2 + $0x30] sm:$0xff] %vm1065, %v1030
          %1073 = vst.msk [vmem:[#allocation2 + $0x38] sm:$0xff] %vm1065, %v1032
          %1074 = vst.msk [vmem:[#allocation2 + $0x40] sm:$0xff] %vm1065, %v1034
          %1075 = vst.msk [vmem:[#allocation2 + $0x48] sm:$0xff] %vm1065, %v1036
          %1076 = vst.msk [vmem:[#allocation2 + $0x50] sm:$0xff] %vm1065, %v1038
          %1077 = vst.msk [vmem:[#allocation2 + $0x58] sm:$0xff] %vm1065, %v1040
          %1078 = vst.msk [vmem:[#allocation2 + $0x60] sm:$0xff] %vm1065, %v1042
          %1079 = vst.msk [vmem:[#allocation2 + $0x68] sm:$0xff] %vm1065, %v1044
          %1080 = vst.msk [vmem:[#allocation2 + $0x70] sm:$0xff] %vm1065, %v1046
          %1081 = vst.msk [vmem:[#allocation2 + $0x78] sm:$0xff] %vm1065, %v1048
        $region84: #{text_encoder.1} parent=79 // pred_fallthru
          _
        %v1082 = vld [vmem:[#allocation2] sm:$0xff]
        %v1083 = vld [vmem:[#allocation2 + $0x8] sm:$0xff]
        %v1084 = vld [vmem:[#allocation2 + $0x10] sm:$0xff]
        %v1085 = vld [vmem:[#allocation2 + $0x18] sm:$0xff]
        %v1086 = vld [vmem:[#allocation2 + $0x20] sm:$0xff]
        %v1087 = vld [vmem:[#allocation2 + $0x28] sm:$0xff]
        %v1088 = vld [vmem:[#allocation2 + $0x30] sm:$0xff]
        %v1089 = vld [vmem:[#allocation2 + $0x38] sm:$0xff]
        %v1090 = vld [vmem:[#allocation2 + $0x40] sm:$0xff]
        %v1091 = vld [vmem:[#allocation2 + $0x48] sm:$0xff]
        %v1092 = vld [vmem:[#allocation2 + $0x50] sm:$0xff]
        %v1093 = vld [vmem:[#allocation2 + $0x58] sm:$0xff]
        %v1094 = vld [vmem:[#allocation2 + $0x60] sm:$0xff]
        %v1095 = vld [vmem:[#allocation2 + $0x68] sm:$0xff]
        %v1096 = vld [vmem:[#allocation2 + $0x70] sm:$0xff]
        %v1097 = vld [vmem:[#allocation2 + $0x78] sm:$0xff]
        %v1098 = vpack.c.bf16 %v1083, %v1082
        %v1099 = vpack.c.bf16 %v1085, %v1084
        %v1100 = vpack.c.bf16 %v1087, %v1086
        %v1101 = vpack.c.bf16 %v1089, %v1088
        %v1102 = vpack.c.bf16 %v1091, %v1090
        %v1103 = vpack.c.bf16 %v1093, %v1092
        %v1104 = vpack.c.bf16 %v1095, %v1094
        %v1105 = vpack.c.bf16 %v1097, %v1096
        %v1106 = vld [vmem:[%s617] sm:$0xff]
        %v1107 = vld [vmem:[%s617 + $0x8] sm:$0xf]
        %v1108 = vld [vmem:[%s617 + $0xc] sm:$0xff]
        %v1109 = vld [vmem:[%s617 + $0x14] sm:$0xf]
        %v1110 = vld [vmem:[%s617 + $0x18] sm:$0xff]
        %v1111 = vld [vmem:[%s617 + $0x20] sm:$0xf]
        %v1112 = vld [vmem:[%s617 + $0x24] sm:$0xff]
        %v1113 = vld [vmem:[%s617 + $0x2c] sm:$0xf]
        %v1114 = vld [vmem:[%s617 + $0x30] sm:$0xff]
        %v1115 = vld [vmem:[%s617 + $0x38] sm:$0xf]
        %v1116 = vld [vmem:[%s617 + $0x3c] sm:$0xff]
        %v1117 = vld [vmem:[%s617 + $0x44] sm:$0xf]
        %v1118 = vld [vmem:[%s617 + $0x48] sm:$0xff]
        %v1119 = vld [vmem:[%s617 + $0x50] sm:$0xf]
        %v1120 = vld [vmem:[%s617 + $0x54] sm:$0xff]
        %v1121 = vld [vmem:[%s617 + $0x5c] sm:$0xf]
        %v1122 = vld [vmem:[%s617 + $0x60] sm:$0xff]
        %v1123 = vld [vmem:[%s617 + $0x68] sm:$0xf]
        %v1124 = vld [vmem:[%s617 + $0x6c] sm:$0xff]
        %v1125 = vld [vmem:[%s617 + $0x74] sm:$0xf]
        %v1126 = vld [vmem:[%s617 + $0x78] sm:$0xff]
        %v1127 = vld [vmem:[%s617 + $0x80] sm:$0xf]
        %v1128 = vld [vmem:[%s617 + $0x84] sm:$0xff]
        %v1129 = vld [vmem:[%s617 + $0x8c] sm:$0xf]
        %v1130 = vld [vmem:[%s617 + $0x90] sm:$0xff]
        %v1131 = vld [vmem:[%s617 + $0x98] sm:$0xf]
        %v1132 = vld [vmem:[%s617 + $0x9c] sm:$0xff]
        %v1133 = vld [vmem:[%s617 + $0xa4] sm:$0xf]
        %v1134 = vld [vmem:[%s617 + $0xa8] sm:$0xff]
        %v1135 = vld [vmem:[%s617 + $0xb0] sm:$0xf]
        %v1136 = vld [vmem:[%s617 + $0xb4] sm:$0xff]
        %v1137 = vld [vmem:[%s617 + $0xbc] sm:$0xf]
        %v1138 = vld [vmem:[%s621] sm:$0x7]
        %v1140 = vlaneseq
        %v1141 = vshrl.u32 %v1140, 7
        %v1142 = vsub.s32 0, %v1141
        %v1143 = vrot.slane %v1138, %v1142
        %v1144 = vlaneseq
        %v1145 = vshrl.u32 %v1144, 7
        %v1146 = vsub.s32 1, %v1145
        %v1147 = vrot.slane %v1138, %v1146
        %v1148 = vlaneseq
        %v1149 = vshrl.u32 %v1148, 7
        %v1150 = vsub.s32 2, %v1149
        %v1151 = vrot.slane %v1138, %v1150
        %v1187 = vunpack.c.l.b16 %v1106
        %v1188 = vunpack.c.h.b16 %v1106
        %v1189 = vunpack.c.l.b16 %v1107
        %v1190 = vunpack.c.l.b16 %v1108
        %v1191 = vunpack.c.h.b16 %v1108
        %v1192 = vunpack.c.l.b16 %v1109
        %v1193 = vunpack.c.l.b16 %v1110
        %v1194 = vunpack.c.h.b16 %v1110
        %v1195 = vunpack.c.l.b16 %v1111
        %v1196 = vunpack.c.l.b16 %v1112
        %v1197 = vunpack.c.h.b16 %v1112
        %v1198 = vunpack.c.l.b16 %v1113
        %v1199 = vunpack.c.l.b16 %v1114
        %v1200 = vunpack.c.h.b16 %v1114
        %v1201 = vunpack.c.l.b16 %v1115
        %v1202 = vunpack.c.l.b16 %v1116
        %v1203 = vunpack.c.h.b16 %v1116
        %v1204 = vunpack.c.l.b16 %v1117
        %v1205 = vunpack.c.l.b16 %v1118
        %v1206 = vunpack.c.h.b16 %v1118
        %v1207 = vunpack.c.l.b16 %v1119
        %v1208 = vunpack.c.l.b16 %v1120
        %v1209 = vunpack.c.h.b16 %v1120
        %v1210 = vunpack.c.l.b16 %v1121
        %v1211 = vunpack.c.l.b16 %v1122
        %v1212 = vunpack.c.h.b16 %v1122
        %v1213 = vunpack.c.l.b16 %v1123
        %v1214 = vunpack.c.l.b16 %v1124
        %v1215 = vunpack.c.h.b16 %v1124
        %v1216 = vunpack.c.l.b16 %v1125
        %v1217 = vunpack.c.l.b16 %v1126
        %v1218 = vunpack.c.h.b16 %v1126
        %v1219 = vunpack.c.l.b16 %v1127
        %v1220 = vunpack.c.l.b16 %v1128
        %v1221 = vunpack.c.h.b16 %v1128
        %v1222 = vunpack.c.l.b16 %v1129
        %v1223 = vunpack.c.l.b16 %v1130
        %v1224 = vunpack.c.h.b16 %v1130
        %v1225 = vunpack.c.l.b16 %v1131
        %v1226 = vunpack.c.l.b16 %v1132
        %v1227 = vunpack.c.h.b16 %v1132
        %v1228 = vunpack.c.l.b16 %v1133
        %v1229 = vunpack.c.l.b16 %v1134
        %v1230 = vunpack.c.h.b16 %v1134
        %v1231 = vunpack.c.l.b16 %v1135
        %v1232 = vunpack.c.l.b16 %v1136
        %v1233 = vunpack.c.h.b16 %v1136
        %v1234 = vunpack.c.l.b16 %v1137
        %v1235 = vpack.c.b16 %v1190, %v1187
        %v1236 = vpack.c.b16 %v1191, %v1188
        %v1237 = vpack.c.b16 %v1192, %v1189
        %v1238 = vpack.c.b16 %v1196, %v1193
        %v1239 = vpack.c.b16 %v1197, %v1194
        %v1240 = vpack.c.b16 %v1198, %v1195
        %v1241 = vpack.c.b16 %v1202, %v1199
        %v1242 = vpack.c.b16 %v1203, %v1200
        %v1243 = vpack.c.b16 %v1204, %v1201
        %v1244 = vpack.c.b16 %v1208, %v1205
        %v1245 = vpack.c.b16 %v1209, %v1206
        %v1246 = vpack.c.b16 %v1210, %v1207
        %v1247 = vpack.c.b16 %v1214, %v1211
        %v1248 = vpack.c.b16 %v1215, %v1212
        %v1249 = vpack.c.b16 %v1216, %v1213
        %v1250 = vpack.c.b16 %v1220, %v1217
        %v1251 = vpack.c.b16 %v1221, %v1218
        %v1252 = vpack.c.b16 %v1222, %v1219
        %v1253 = vpack.c.b16 %v1226, %v1223
        %v1254 = vpack.c.b16 %v1227, %v1224
        %v1255 = vpack.c.b16 %v1228, %v1225
        %v1256 = vpack.c.b16 %v1232, %v1229
        %v1257 = vpack.c.b16 %v1233, %v1230
        %v1258 = vpack.c.b16 %v1234, %v1231
        %1283 = vmatprep.subr.bf16.mxu0 %v1236
        %1284 = vmatpush1.bf16.msra.mxu0 %v1235
        %1285 = vmatprep.subr.bf16.mxu0 %v1239
        %1286 = vmatpush1.bf16.msra.mxu0 %v1238
        %1287 = vmatprep.subr.bf16.mxu0 %v1242
        %1288 = vmatpush1.bf16.msra.mxu0 %v1241
        %1289 = vmatprep.subr.bf16.mxu0 %v1245
        %1290 = vmatpush1.bf16.msra.mxu0 %v1244
        %1291 = vmatprep.subr.bf16.mxu0 %v1248
        %1292 = vmatpush1.bf16.msra.mxu0 %v1247
        %1293 = vmatprep.subr.bf16.mxu0 %v1251
        %1294 = vmatpush1.bf16.msra.mxu0 %v1250
        %1295 = vmatprep.subr.bf16.mxu0 %v1254
        %1296 = vmatpush1.bf16.msra.mxu0 %v1253
        %1297 = vmatprep.subr.bf16.mxu0 %v1257
        %1298 = vmatpush1.bf16.msra.mxu0 %v1256
        %1299 = vmatprep.subr.bf16.mxu0 0
        %1300 = vmatpush1.bf16.msra.mxu0 0
        %1301 = vmatprep.subr.bf16.mxu0 0
        %1302 = vmatpush1.bf16.msra.mxu0 0
        %1303 = vmatprep.subr.bf16.mxu0 0
        %1304 = vmatpush1.bf16.msra.mxu0 0
        %1305 = vmatprep.subr.bf16.mxu0 0
        %1306 = vmatpush1.bf16.msra.mxu0 0
        %1307 = vmatprep.subr.bf16.mxu0 0
        %1308 = vmatpush1.bf16.msra.mxu0 0
        %1309 = vmatprep.subr.bf16.mxu0 0
        %1310 = vmatpush1.bf16.msra.mxu0 0
        %1311 = vmatprep.subr.bf16.mxu0 0
        %1312 = vmatpush1.bf16.msra.mxu0 0
        %1313 = vmatprep.subr.bf16.mxu0 0
        %1314 = vmatpush1.bf16.msra.mxu0 0
        %1315 = vmatprep.mubr.bf16.mxu0 0
        %1316 = vmatmul.mubr.bf16.gmra.mrb[0].mxu0 %v1098
        %v1317 = vpop.f32.mrb[0].mxu0
        %v1318 = vadd.f32 %v1143, %v1317
        %v1319 = vpop.f32.mrb[0].mxu0
        %v1320 = vadd.f32 %v1147, %v1319
        %v1321 = vpop.f32.mrb[0].mxu0
        %v1322 = vadd.f32 %v1143, %v1321
        %v1323 = vpop.f32.mrb[0].mxu0
        %v1324 = vadd.f32 %v1147, %v1323
        %1325 = vmatprep.mubr.bf16.mxu0 0
        %1326 = vmatmul.mubr.bf16.gmra.mrb[0].mxu0 %v1099
        %v1327 = vpop.f32.mrb[0].mxu0
        %v1328 = vadd.f32 %v1143, %v1327
        %v1329 = vpop.f32.mrb[0].mxu0
        %v1330 = vadd.f32 %v1147, %v1329
        %v1331 = vpop.f32.mrb[0].mxu0
        %v1332 = vadd.f32 %v1143, %v1331
        %v1333 = vpop.f32.mrb[0].mxu0
        %v1334 = vadd.f32 %v1147, %v1333
        %1335 = vmatprep.mubr.bf16.mxu0 0
        %1336 = vmatmul.mubr.bf16.gmra.mrb[0].mxu0 %v1100
        %v1337 = vpop.f32.mrb[0].mxu0
        %v1338 = vadd.f32 %v1143, %v1337
        %v1339 = vpop.f32.mrb[0].mxu0
        %v1340 = vadd.f32 %v1147, %v1339
        %v1341 = vpop.f32.mrb[0].mxu0
        %v1342 = vadd.f32 %v1143, %v1341
        %v1343 = vpop.f32.mrb[0].mxu0
        %v1344 = vadd.f32 %v1147, %v1343
        %1345 = vmatprep.mubr.bf16.mxu0 0
        %1346 = vmatmul.mubr.bf16.gmra.mrb[0].mxu0 %v1101
        %v1347 = vpop.f32.mrb[0].mxu0
        %v1348 = vadd.f32 %v1143, %v1347
        %v1349 = vpop.f32.mrb[0].mxu0
        %v1350 = vadd.f32 %v1147, %v1349
        %v1351 = vpop.f32.mrb[0].mxu0
        %v1352 = vadd.f32 %v1143, %v1351
        %v1353 = vpop.f32.mrb[0].mxu0
        %v1354 = vadd.f32 %v1147, %v1353
        %1355 = vmatprep.mubr.bf16.mxu0 0
        %1356 = vmatmul.mubr.bf16.gmra.mrb[0].mxu0 %v1102
        %v1357 = vpop.f32.mrb[0].mxu0
        %v1358 = vadd.f32 %v1143, %v1357
        %v1359 = vpop.f32.mrb[0].mxu0
        %v1360 = vadd.f32 %v1147, %v1359
        %v1361 = vpop.f32.mrb[0].mxu0
        %v1362 = vadd.f32 %v1143, %v1361
        %v1363 = vpop.f32.mrb[0].mxu0
        %v1364 = vadd.f32 %v1147, %v1363
        %1365 = vmatprep.mubr.bf16.mxu0 0
        %1366 = vmatmul.mubr.bf16.gmra.mrb[0].mxu0 %v1103
        %v1367 = vpop.f32.mrb[0].mxu0
        %v1368 = vadd.f32 %v1143, %v1367
        %v1369 = vpop.f32.mrb[0].mxu0
        %v1370 = vadd.f32 %v1147, %v1369
        %v1371 = vpop.f32.mrb[0].mxu0
        %v1372 = vadd.f32 %v1143, %v1371
        %v1373 = vpop.f32.mrb[0].mxu0
        %v1374 = vadd.f32 %v1147, %v1373
        %1375 = vmatprep.mubr.bf16.mxu0 0
        %1376 = vmatmul.mubr.bf16.gmra.mrb[0].mxu0 %v1104
        %v1377 = vpop.f32.mrb[0].mxu0
        %v1378 = vadd.f32 %v1143, %v1377
        %v1379 = vpop.f32.mrb[0].mxu0
        %v1380 = vadd.f32 %v1147, %v1379
        %v1381 = vpop.f32.mrb[0].mxu0
        %v1382 = vadd.f32 %v1143, %v1381
        %v1383 = vpop.f32.mrb[0].mxu0
        %v1384 = vadd.f32 %v1147, %v1383
        %1385 = vmatprep.mubr.bf16.mxu0 0
        %1386 = vmatmul.mubr.bf16.gmra.mrb[0].mxu0 %v1105
        %v1387 = vpop.f32.mrb[0].mxu0
        %v1388 = vadd.f32 %v1143, %v1387
        %v1389 = vpop.f32.mrb[0].mxu0
        %v1390 = vadd.f32 %v1147, %v1389
        %v1391 = vpop.f32.mrb[0].mxu0
        %v1392 = vadd.f32 %v1143, %v1391
        %v1393 = vpop.f32.mrb[0].mxu0
        %v1394 = vadd.f32 %v1147, %v1393
        %1395 = vdwg.mxu0
        %1396 = vmatprep.subr.bf16.mxu0 0
        %1397 = vmatpush1.bf16.msra.mxu0 %v1237
        %1398 = vmatprep.subr.bf16.mxu0 0
        %1399 = vmatpush1.bf16.msra.mxu0 %v1240
        %1400 = vmatprep.subr.bf16.mxu0 0
        %1401 = vmatpush1.bf16.msra.mxu0 %v1243
        %1402 = vmatprep.subr.bf16.mxu0 0
        %1403 = vmatpush1.bf16.msra.mxu0 %v1246
        %1404 = vmatprep.subr.bf16.mxu0 0
        %1405 = vmatpush1.bf16.msra.mxu0 %v1249
        %1406 = vmatprep.subr.bf16.mxu0 0
        %1407 = vmatpush1.bf16.msra.mxu0 %v1252
        %1408 = vmatprep.subr.bf16.mxu0 0
        %1409 = vmatpush1.bf16.msra.mxu0 %v1255
        %1410 = vmatprep.subr.bf16.mxu0 0
        %1411 = vmatpush1.bf16.msra.mxu0 %v1258
        %1412 = vmatprep.subr.bf16.mxu0 0
        %1413 = vmatpush1.bf16.msra.mxu0 0
        %1414 = vmatprep.subr.bf16.mxu0 0
        %1415 = vmatpush1.bf16.msra.mxu0 0
        %1416 = vmatprep.subr.bf16.mxu0 0
        %1417 = vmatpush1.bf16.msra.mxu0 0
        %1418 = vmatprep.subr.bf16.mxu0 0
        %1419 = vmatpush1.bf16.msra.mxu0 0
        %1420 = vmatprep.subr.bf16.mxu0 0
        %1421 = vmatpush1.bf16.msra.mxu0 0
        %1422 = vmatprep.subr.bf16.mxu0 0
        %1423 = vmatpush1.bf16.msra.mxu0 0
        %1424 = vmatprep.subr.bf16.mxu0 0
        %1425 = vmatpush1.bf16.msra.mxu0 0
        %1426 = vmatprep.subr.bf16.mxu0 0
        %1427 = vmatpush1.bf16.msra.mxu0 0
        %1428 = vmatprep.mubr.bf16.mxu0 0
        %1429 = vmatmul.mubr.bf16.gmra.mrb[0].mxu0 %v1098
        %v1430 = vpop.f32.mrb[0].mxu0
        %v1431 = vadd.f32 %v1151, %v1430
        %v1432 = vpop.f32.mrb[0].mxu0
        %v1433 = vpop.f32.mrb[0].mxu0
        %v1434 = vadd.f32 %v1151, %v1433
        %v1435 = vpop.f32.mrb[0].mxu0
        %1436 = vmatprep.mubr.bf16.mxu0 0
        %1437 = vmatmul.mubr.bf16.gmra.mrb[0].mxu0 %v1099
        %v1438 = vpop.f32.mrb[0].mxu0
        %v1439 = vadd.f32 %v1151, %v1438
        %v1440 = vpop.f32.mrb[0].mxu0
        %v1441 = vpop.f32.mrb[0].mxu0
        %v1442 = vadd.f32 %v1151, %v1441
        %v1443 = vpop.f32.mrb[0].mxu0
        %1444 = vmatprep.mubr.bf16.mxu0 0
        %1445 = vmatmul.mubr.bf16.gmra.mrb[0].mxu0 %v1100
        %v1446 = vpop.f32.mrb[0].mxu0
        %v1447 = vadd.f32 %v1151, %v1446
        %v1448 = vpop.f32.mrb[0].mxu0
        %v1449 = vpop.f32.mrb[0].mxu0
        %v1450 = vadd.f32 %v1151, %v1449
        %v1451 = vpop.f32.mrb[0].mxu0
        %1452 = vmatprep.mubr.bf16.mxu0 0
        %1453 = vmatmul.mubr.bf16.gmra.mrb[0].mxu0 %v1101
        %v1454 = vpop.f32.mrb[0].mxu0
        %v1455 = vadd.f32 %v1151, %v1454
        %v1456 = vpop.f32.mrb[0].mxu0
        %v1457 = vpop.f32.mrb[0].mxu0
        %v1458 = vadd.f32 %v1151, %v1457
        %v1459 = vpop.f32.mrb[0].mxu0
        %1460 = vmatprep.mubr.bf16.mxu0 0
        %1461 = vmatmul.mubr.bf16.gmra.mrb[0].mxu0 %v1102
        %v1462 = vpop.f32.mrb[0].mxu0
        %v1463 = vadd.f32 %v1151, %v1462
        %v1464 = vpop.f32.mrb[0].mxu0
        %v1465 = vpop.f32.mrb[0].mxu0
        %v1466 = vadd.f32 %v1151, %v1465
        %v1467 = vpop.f32.mrb[0].mxu0
        %1468 = vmatprep.mubr.bf16.mxu0 0
        %1469 = vmatmul.mubr.bf16.gmra.mrb[0].mxu0 %v1103
        %v1470 = vpop.f32.mrb[0].mxu0
        %v1471 = vadd.f32 %v1151, %v1470
        %v1472 = vpop.f32.mrb[0].mxu0
        %v1473 = vpop.f32.mrb[0].mxu0
        %v1474 = vadd.f32 %v1151, %v1473
        %v1475 = vpop.f32.mrb[0].mxu0
        %1476 = vmatprep.mubr.bf16.mxu0 0
        %1477 = vmatmul.mubr.bf16.gmra.mrb[0].mxu0 %v1104
        %v1478 = vpop.f32.mrb[0].mxu0
        %v1479 = vadd.f32 %v1151, %v1478
        %v1480 = vpop.f32.mrb[0].mxu0
        %v1481 = vpop.f32.mrb[0].mxu0
        %v1482 = vadd.f32 %v1151, %v1481
        %v1483 = vpop.f32.mrb[0].mxu0
        %1484 = vmatprep.mubr.bf16.mxu0 0
        %1485 = vmatmul.mubr.bf16.gmra.mrb[0].mxu0 %v1105
        %v1486 = vpop.f32.mrb[0].mxu0
        %v1487 = vadd.f32 %v1151, %v1486
        %v1488 = vpop.f32.mrb[0].mxu0
        %v1489 = vpop.f32.mrb[0].mxu0
        %v1490 = vadd.f32 %v1151, %v1489
        %v1491 = vpop.f32.mrb[0].mxu0
        %1492 = vdwg.mxu0
        %v1493 = vpack.c.bf16 %v1322, %v1318
        %v1494 = vpack.c.bf16 %v1324, %v1320
        %v1495 = vpack.c.bf16 %v1434, %v1431
        %v1496 = vpack.c.bf16 %v1332, %v1328
        %v1497 = vpack.c.bf16 %v1334, %v1330
        %v1498 = vpack.c.bf16 %v1442, %v1439
        %v1499 = vpack.c.bf16 %v1342, %v1338
        %v1500 = vpack.c.bf16 %v1344, %v1340
        %v1501 = vpack.c.bf16 %v1450, %v1447
        %v1502 = vpack.c.bf16 %v1352, %v1348
        %v1503 = vpack.c.bf16 %v1354, %v1350
        %v1504 = vpack.c.bf16 %v1458, %v1455
        %v1505 = vpack.c.bf16 %v1362, %v1358
        %v1506 = vpack.c.bf16 %v1364, %v1360
        %v1507 = vpack.c.bf16 %v1466, %v1463
        %v1508 = vpack.c.bf16 %v1372, %v1368
        %v1509 = vpack.c.bf16 %v1374, %v1370
        %v1510 = vpack.c.bf16 %v1474, %v1471
        %v1511 = vpack.c.bf16 %v1382, %v1378
        %v1512 = vpack.c.bf16 %v1384, %v1380
        %v1513 = vpack.c.bf16 %v1482, %v1479
        %v1514 = vpack.c.bf16 %v1392, %v1388
        %v1515 = vpack.c.bf16 %v1394, %v1390
        %v1516 = vpack.c.bf16 %v1490, %v1487
        %vm1517 = vcmask 261120
        %v1519 = vsel %vm1517, %v1493, 0
        %v1522 = vsel %vm1517, %v1496, 0
        %v1525 = vsel %vm1517, %v1499, 0
        %v1528 = vsel %vm1517, %v1502, 0
        %v1531 = vsel %vm1517, %v1494, 0
        %v1534 = vsel %vm1517, %v1497, 0
        %v1537 = vsel %vm1517, %v1500, 0
        %v1540 = vsel %vm1517, %v1503, 0
        %1542 = vmatprep.subr.bf16.mxu0 0
        %1543 = vmatpush1.bf16.xpose.msra.mxu0 %v1531
        %1544 = vmatprep.subr.bf16.mxu0 0
        %1545 = vmatpush1.bf16.xpose.msra.mxu0 %v1534
        %1546 = vmatprep.subr.bf16.mxu0 0
        %1547 = vmatpush1.bf16.xpose.msra.mxu0 %v1537
        %1548 = vmatprep.subr.bf16.mxu0 0
        %1549 = vmatpush1.bf16.xpose.msra.mxu0 %v1540
        %1550 = vmatprep.subr.bf16.mxu0 0
        %1551 = vmatpush1.bf16.xpose.msra.mxu0 0
        %1552 = vmatprep.subr.bf16.mxu0 0
        %1553 = vmatpush1.bf16.xpose.msra.mxu0 0
        %1554 = vmatprep.subr.bf16.mxu0 0
        %1555 = vmatpush1.bf16.xpose.msra.mxu0 0
        %1556 = vmatprep.subr.bf16.mxu0 0
        %1557 = vmatpush1.bf16.xpose.msra.mxu0 0
        %1558 = vmatprep.subr.bf16.mxu0 0
        %1559 = vmatpush1.bf16.xpose.msra.mxu0 0
        %1560 = vmatprep.subr.bf16.mxu0 0
        %1561 = vmatpush1.bf16.xpose.msra.mxu0 0
        %1562 = vmatprep.subr.bf16.mxu0 0
        %1563 = vmatpush1.bf16.xpose.msra.mxu0 0
        %1564 = vmatprep.subr.bf16.mxu0 0
        %1565 = vmatpush1.bf16.xpose.msra.mxu0 0
        %1566 = vmatprep.subr.bf16.mxu0 0
        %1567 = vmatpush1.bf16.xpose.msra.mxu0 0
        %1568 = vmatprep.subr.bf16.mxu0 0
        %1569 = vmatpush1.bf16.xpose.msra.mxu0 0
        %1570 = vmatprep.subr.bf16.mxu0 0
        %1571 = vmatpush1.bf16.xpose.msra.mxu0 0
        %1572 = vmatprep.subr.bf16.mxu0 0
        %1573 = vmatpush1.bf16.xpose.msra.mxu0 0
        %1574 = vmatprep.mubr.bf16.mxu0 0
        %1575 = vmatmul.mubr.bf16.gmra.mrb[0].mxu0 %v1519
        %v1576 = vpop.f32.mrb[0].mxu0
        %v1577 = vadd.f32 0.0, %v1576
        %v1578 = vpop.f32.mrb[0].mxu0
        %v1579 = vpop.f32.mrb[0].mxu0
        %v1580 = vadd.f32 0.0, %v1579
        %v1581 = vpop.f32.mrb[0].mxu0
        %1582 = vmatprep.mubr.bf16.mxu0 0
        %1583 = vmatmul.mubr.bf16.gmra.mrb[0].mxu0 %v1522
        %v1584 = vpop.f32.mrb[0].mxu0
        %v1585 = vadd.f32 0.0, %v1584
        %v1586 = vpop.f32.mrb[0].mxu0
        %v1587 = vpop.f32.mrb[0].mxu0
        %v1588 = vadd.f32 0.0, %v1587
        %v1589 = vpop.f32.mrb[0].mxu0
        %1590 = vmatprep.mubr.bf16.mxu0 0
        %1591 = vmatmul.mubr.bf16.gmra.mrb[0].mxu0 %v1525
        %v1592 = vpop.f32.mrb[0].mxu0
        %v1593 = vadd.f32 0.0, %v1592
        %v1594 = vpop.f32.mrb[0].mxu0
        %v1595 = vpop.f32.mrb[0].mxu0
        %v1596 = vadd.f32 0.0, %v1595
        %v1597 = vpop.f32.mrb[0].mxu0
        %1598 = vmatprep.mubr.bf16.mxu0 0
        %1599 = vmatmul.mubr.bf16.gmra.mrb[0].mxu0 %v1528
        %v1600 = vpop.f32.mrb[0].mxu0
        %v1601 = vadd.f32 0.0, %v1600
        %v1602 = vpop.f32.mrb[0].mxu0
        %v1603 = vpop.f32.mrb[0].mxu0
        %v1604 = vadd.f32 0.0, %v1603
        %v1605 = vpop.f32.mrb[0].mxu0
        %1606 = vdwg.mxu0
        %v1607 = vmul.f32 %v1577, 0.17677669
        %v1608 = vmul.f32 %v1580, 0.17677669
        %v1609 = vmul.f32 %v1585, 0.17677669
        %v1610 = vmul.f32 %v1588, 0.17677669
        %v1611 = vmul.f32 %v1593, 0.17677669
        %v1612 = vmul.f32 %v1596, 0.17677669
        %v1613 = vmul.f32 %v1601, 0.17677669
        %v1614 = vmul.f32 %v1604, 0.17677669
        %vm1615 = vcmask 523264
        %v1616 = vsel %vm1615, %v1607, -inf
        %1617 = vmax.xlane.f32.xlu0 %v1616
        %v1618 = vpop.xlane.xlu0 %1617
        %v1619 = vsel %vm1615, %v1608, -inf
        %1620 = vmax.xlane.f32.xlu0 %v1619
        %v1621 = vpop.xlane.xlu0 %1620
        %v1622 = vsel %vm1615, %v1609, -inf
        %1623 = vmax.xlane.f32.xlu0 %v1622
        %v1624 = vpop.xlane.xlu0 %1623
        %v1625 = vsel %vm1615, %v1610, -inf
        %1626 = vmax.xlane.f32.xlu0 %v1625
        %v1627 = vpop.xlane.xlu0 %1626
        %v1628 = vsel %vm1615, %v1611, -inf
        %1629 = vmax.xlane.f32.xlu0 %v1628
        %v1630 = vpop.xlane.xlu0 %1629
        %v1631 = vsel %vm1615, %v1612, -inf
        %1632 = vmax.xlane.f32.xlu0 %v1631
        %v1633 = vpop.xlane.xlu0 %1632
        %v1634 = vsel %vm1615, %v1613, -inf
        %1635 = vmax.xlane.f32.xlu0 %v1634
        %v1636 = vpop.xlane.xlu0 %1635
        %v1637 = vsel %vm1615, %v1614, -inf
        %1638 = vmax.xlane.f32.xlu0 %v1637
        %v1639 = vpop.xlane.xlu0 %1638
        %v1640 = vsub.f32 %v1607, %v1618
        %v1641 = vsub.f32 %v1608, %v1621
        %v1642 = vsub.f32 %v1609, %v1624
        %v1643 = vsub.f32 %v1610, %v1627
        %v1644 = vsub.f32 %v1611, %v1630
        %v1645 = vsub.f32 %v1612, %v1633
        %v1646 = vsub.f32 %v1613, %v1636
        %v1647 = vsub.f32 %v1614, %v1639
        %v1648 = vmul.f32 %v1640, 1.442695
        %v1649 = vpow.pop %v1648
        %v1650 = vmul.f32 %v1641, 1.442695
        %v1651 = vpow.pop %v1650
        %v1652 = vmul.f32 %v1642, 1.442695
        %v1653 = vpow.pop %v1652
        %v1654 = vmul.f32 %v1643, 1.442695
        %v1655 = vpow.pop %v1654
        %v1656 = vmul.f32 %v1644, 1.442695
        %v1657 = vpow.pop %v1656
        %v1658 = vmul.f32 %v1645, 1.442695
        %v1659 = vpow.pop %v1658
        %v1660 = vmul.f32 %v1646, 1.442695
        %v1661 = vpow.pop %v1660
        %v1662 = vmul.f32 %v1647, 1.442695
        %v1663 = vpow.pop %v1662
        %v1664 = vsel %vm1615, %v1649, 0.0
        %1665 = vadd.xlane.f32.xlu0 %v1664
        %v1666 = vpop.xlane.xlu0 %1665
        %v1667 = vsel %vm1615, %v1651, 0.0
        %1668 = vadd.xlane.f32.xlu0 %v1667
        %v1669 = vpop.xlane.xlu0 %1668
        %v1670 = vsel %vm1615, %v1653, 0.0
        %1671 = vadd.xlane.f32.xlu0 %v1670
        %v1672 = vpop.xlane.xlu0 %1671
        %v1673 = vsel %vm1615, %v1655, 0.0
        %1674 = vadd.xlane.f32.xlu0 %v1673
        %v1675 = vpop.xlane.xlu0 %1674
        %v1676 = vsel %vm1615, %v1657, 0.0
        %1677 = vadd.xlane.f32.xlu0 %v1676
        %v1678 = vpop.xlane.xlu0 %1677
        %v1679 = vsel %vm1615, %v1659, 0.0
        %1680 = vadd.xlane.f32.xlu0 %v1679
        %v1681 = vpop.xlane.xlu0 %1680
        %v1682 = vsel %vm1615, %v1661, 0.0
        %1683 = vadd.xlane.f32.xlu0 %v1682
        %v1684 = vpop.xlane.xlu0 %1683
        %v1685 = vsel %vm1615, %v1663, 0.0
        %1686 = vadd.xlane.f32.xlu0 %v1685
        %v1687 = vpop.xlane.xlu0 %1686
        %v1688 = vrcp.pop %v1666
        %v1689 = vrcp.pop %v1669
        %v1690 = vrcp.pop %v1672
        %v1691 = vrcp.pop %v1675
        %v1692 = vrcp.pop %v1678
        %v1693 = vrcp.pop %v1681
        %v1694 = vrcp.pop %v1684
        %v1695 = vrcp.pop %v1687
        %v1696 = vmul.f32 %v1649, %v1688
        %v1697 = vmul.f32 %v1651, %v1689
        %v1698 = vmul.f32 %v1653, %v1690
        %v1699 = vmul.f32 %v1655, %v1691
        %v1700 = vmul.f32 %v1657, %v1692
        %v1701 = vmul.f32 %v1659, %v1693
        %v1702 = vmul.f32 %v1661, %v1694
        %v1703 = vmul.f32 %v1663, %v1695
        %v1704 = vpack.c.bf16 %v1697, %v1696
        %v1705 = vpack.c.bf16 %v1699, %v1698
        %v1706 = vpack.c.bf16 %v1701, %v1700
        %v1707 = vpack.c.bf16 %v1703, %v1702
        %v1709 = vsel %vm1615, %v1704, 0
        %v1712 = vsel %vm1615, %v1705, 0
        %v1715 = vsel %vm1615, %v1706, 0
        %v1718 = vsel %vm1615, %v1707, 0
        %1720 = vmatprep.subr.bf16.mxu0 0
        %1721 = vmatpush1.bf16.msra.mxu0 %v1495
        %1722 = vmatprep.subr.bf16.mxu0 0
        %1723 = vmatpush1.bf16.msra.mxu0 %v1498
        %1724 = vmatprep.subr.bf16.mxu0 0
        %1725 = vmatpush1.bf16.msra.mxu0 %v1501
        %1726 = vmatprep.subr.bf16.mxu0 0
        %1727 = vmatpush1.bf16.msra.mxu0 %v1504
        %1728 = vmatprep.subr.bf16.mxu0 0
        %1729 = vmatpush1.bf16.msra.mxu0 0
        %1730 = vmatprep.subr.bf16.mxu0 0
        %1731 = vmatpush1.bf16.msra.mxu0 0
        %1732 = vmatprep.subr.bf16.mxu0 0
        %1733 = vmatpush1.bf16.msra.mxu0 0
        %1734 = vmatprep.subr.bf16.mxu0 0
        %1735 = vmatpush1.bf16.msra.mxu0 0
        %1736 = vmatprep.subr.bf16.mxu0 0
        %1737 = vmatpush1.bf16.msra.mxu0 0
        %1738 = vmatprep.subr.bf16.mxu0 0
        %1739 = vmatpush1.bf16.msra.mxu0 0
        %1740 = vmatprep.subr.bf16.mxu0 0
        %1741 = vmatpush1.bf16.msra.mxu0 0
        %1742 = vmatprep.subr.bf16.mxu0 0
        %1743 = vmatpush1.bf16.msra.mxu0 0
        %1744 = vmatprep.subr.bf16.mxu0 0
        %1745 = vmatpush1.bf16.msra.mxu0 0
        %1746 = vmatprep.subr.bf16.mxu0 0
        %1747 = vmatpush1.bf16.msra.mxu0 0
        %1748 = vmatprep.subr.bf16.mxu0 0
        %1749 = vmatpush1.bf16.msra.mxu0 0
        %1750 = vmatprep.subr.bf16.mxu0 0
        %1751 = vmatpush1.bf16.msra.mxu0 0
        %1752 = vmatprep.mubr.bf16.mxu0 0
        %1753 = vmatmul.mubr.bf16.gmra.mrb[0].mxu0 %v1709
        %v1754 = vpop.f32.mrb[0].mxu0
        %v1755 = vadd.f32 0.0, %v1754
        %v1756 = vpop.f32.mrb[0].mxu0
        %v1757 = vpop.f32.mrb[0].mxu0
        %v1758 = vadd.f32 0.0, %v1757
        %v1759 = vpop.f32.mrb[0].mxu0
        %1760 = vmatprep.mubr.bf16.mxu0 0
        %1761 = vmatmul.mubr.bf16.gmra.mrb[0].mxu0 %v1712
        %v1762 = vpop.f32.mrb[0].mxu0
        %v1763 = vadd.f32 0.0, %v1762
        %v1764 = vpop.f32.mrb[0].mxu0
        %v1765 = vpop.f32.mrb[0].mxu0
        %v1766 = vadd.f32 0.0, %v1765
        %v1767 = vpop.f32.mrb[0].mxu0
        %1768 = vmatprep.mubr.bf16.mxu0 0
        %1769 = vmatmul.mubr.bf16.gmra.mrb[0].mxu0 %v1715
        %v1770 = vpop.f32.mrb[0].mxu0
        %v1771 = vadd.f32 0.0, %v1770
        %v1772 = vpop.f32.mrb[0].mxu0
        %v1773 = vpop.f32.mrb[0].mxu0
        %v1774 = vadd.f32 0.0, %v1773
        %v1775 = vpop.f32.mrb[0].mxu0
        %1776 = vmatprep.mubr.bf16.mxu0 0
        %1777 = vmatmul.mubr.bf16.gmra.mrb[0].mxu0 %v1718
        %v1778 = vpop.f32.mrb[0].mxu0
        %v1779 = vadd.f32 0.0, %v1778
        %v1780 = vpop.f32.mrb[0].mxu0
        %v1781 = vpop.f32.mrb[0].mxu0
        %v1782 = vadd.f32 0.0, %v1781
        %v1783 = vpop.f32.mrb[0].mxu0
        %1784 = vdwg.mxu0
        %1789 = vrot.lane.b32.xlu0 %v1493, 96
        %v1790 = vpop.permute.xlu0 %1789
        %1791 = vrot.lane.b32.xlu0 %v1496, 96
        %v1792 = vpop.permute.xlu0 %1791
        %1793 = vrot.lane.b32.xlu0 %v1499, 96
        %v1794 = vpop.permute.xlu0 %1793
        %1795 = vrot.lane.b32.xlu0 %v1502, 96
        %v1796 = vpop.permute.xlu0 %1795
        %1801 = vrot.lane.b32.xlu0 %v1494, 96
        %v1802 = vpop.permute.xlu0 %1801
        %1803 = vrot.lane.b32.xlu0 %v1497, 96
        %v1804 = vpop.permute.xlu0 %1803
        %1805 = vrot.lane.b32.xlu0 %v1500, 96
        %v1806 = vpop.permute.xlu0 %1805
        %1807 = vrot.lane.b32.xlu0 %v1503, 96
        %v1808 = vpop.permute.xlu0 %1807
        %v1810 = vsel %vm1517, %v1790, 0
        %v1813 = vsel %vm1517, %v1792, 0
        %v1816 = vsel %vm1517, %v1794, 0
        %v1819 = vsel %vm1517, %v1796, 0
        %v1822 = vsel %vm1517, %v1802, 0
        %v1825 = vsel %vm1517, %v1804, 0
        %v1828 = vsel %vm1517, %v1806, 0
        %v1831 = vsel %vm1517, %v1808, 0
        %1833 = vmatprep.subr.bf16.mxu0 0
        %1834 = vmatpush1.bf16.xpose.msra.mxu0 %v1822
        %1835 = vmatprep.subr.bf16.mxu0 0
        %1836 = vmatpush1.bf16.xpose.msra.mxu0 %v1825
        %1837 = vmatprep.subr.bf16.mxu0 0
        %1838 = vmatpush1.bf16.xpose.msra.mxu0 %v1828
        %1839 = vmatprep.subr.bf16.mxu0 0
        %1840 = vmatpush1.bf16.xpose.msra.mxu0 %v1831
        %1841 = vmatprep.subr.bf16.mxu0 0
        %1842 = vmatpush1.bf16.xpose.msra.mxu0 0
        %1843 = vmatprep.subr.bf16.mxu0 0
        %1844 = vmatpush1.bf16.xpose.msra.mxu0 0
        %1845 = vmatprep.subr.bf16.mxu0 0
        %1846 = vmatpush1.bf16.xpose.msra.mxu0 0
        %1847 = vmatprep.subr.bf16.mxu0 0
        %1848 = vmatpush1.bf16.xpose.msra.mxu0 0
        %1849 = vmatprep.subr.bf16.mxu0 0
        %1850 = vmatpush1.bf16.xpose.msra.mxu0 0
        %1851 = vmatprep.subr.bf16.mxu0 0
        %1852 = vmatpush1.bf16.xpose.msra.mxu0 0
        %1853 = vmatprep.subr.bf16.mxu0 0
        %1854 = vmatpush1.bf16.xpose.msra.mxu0 0
        %1855 = vmatprep.subr.bf16.mxu0 0
        %1856 = vmatpush1.bf16.xpose.msra.mxu0 0
        %1857 = vmatprep.subr.bf16.mxu0 0
        %1858 = vmatpush1.bf16.xpose.msra.mxu0 0
        %1859 = vmatprep.subr.bf16.mxu0 0
        %1860 = vmatpush1.bf16.xpose.msra.mxu0 0
        %1861 = vmatprep.subr.bf16.mxu0 0
        %1862 = vmatpush1.bf16.xpose.msra.mxu0 0
        %1863 = vmatprep.subr.bf16.mxu0 0
        %1864 = vmatpush1.bf16.xpose.msra.mxu0 0
        %1865 = vmatprep.mubr.bf16.mxu0 0
        %1866 = vmatmul.mubr.bf16.gmra.mrb[0].mxu0 %v1810
        %v1867 = vpop.f32.mrb[0].mxu0
        %v1868 = vadd.f32 0.0, %v1867
        %v1869 = vpop.f32.mrb[0].mxu0
        %v1870 = vpop.f32.mrb[0].mxu0
        %v1871 = vadd.f32 0.0, %v1870
        %v1872 = vpop.f32.mrb[0].mxu0
        %1873 = vmatprep.mubr.bf16.mxu0 0
        %1874 = vmatmul.mubr.bf16.gmra.mrb[0].mxu0 %v1813
        %v1875 = vpop.f32.mrb[0].mxu0
        %v1876 = vadd.f32 0.0, %v1875
        %v1877 = vpop.f32.mrb[0].mxu0
        %v1878 = vpop.f32.mrb[0].mxu0
        %v1879 = vadd.f32 0.0, %v1878
        %v1880 = vpop.f32.mrb[0].mxu0
        %1881 = vmatprep.mubr.bf16.mxu0 0
        %1882 = vmatmul.mubr.bf16.gmra.mrb[0].mxu0 %v1816
        %v1883 = vpop.f32.mrb[0].mxu0
        %v1884 = vadd.f32 0.0, %v1883
        %v1885 = vpop.f32.mrb[0].mxu0
        %v1886 = vpop.f32.mrb[0].mxu0
        %v1887 = vadd.f32 0.0, %v1886
        %v1888 = vpop.f32.mrb[0].mxu0
        %1889 = vmatprep.mubr.bf16.mxu0 0
        %1890 = vmatmul.mubr.bf16.gmra.mrb[0].mxu0 %v1819
        %v1891 = vpop.f32.mrb[0].mxu0
        %v1892 = vadd.f32 0.0, %v1891
        %v1893 = vpop.f32.mrb[0].mxu0
        %v1894 = vpop.f32.mrb[0].mxu0
        %v1895 = vadd.f32 0.0, %v1894
        %v1896 = vpop.f32.mrb[0].mxu0
        %1897 = vdwg.mxu0
        %v1898 = vmul.f32 %v1868, 0.17677669
        %v1899 = vmul.f32 %v1871, 0.17677669
        %v1900 = vmul.f32 %v1876, 0.17677669
        %v1901 = vmul.f32 %v1879, 0.17677669
        %v1902 = vmul.f32 %v1884, 0.17677669
        %v1903 = vmul.f32 %v1887, 0.17677669
        %v1904 = vmul.f32 %v1892, 0.17677669
        %v1905 = vmul.f32 %v1895, 0.17677669
        %v1906 = vsel %vm1615, %v1898, -inf
        %1907 = vmax.xlane.f32.xlu0 %v1906
        %v1908 = vpop.xlane.xlu0 %1907
        %v1909 = vsel %vm1615, %v1899, -inf
        %1910 = vmax.xlane.f32.xlu0 %v1909
        %v1911 = vpop.xlane.xlu0 %1910
        %v1912 = vsel %vm1615, %v1900, -inf
        %1913 = vmax.xlane.f32.xlu0 %v1912
        %v1914 = vpop.xlane.xlu0 %1913
        %v1915 = vsel %vm1615, %v1901, -inf
        %1916 = vmax.xlane.f32.xlu0 %v1915
        %v1917 = vpop.xlane.xlu0 %1916
        %v1918 = vsel %vm1615, %v1902, -inf
        %1919 = vmax.xlane.f32.xlu0 %v1918
        %v1920 = vpop.xlane.xlu0 %1919
        %v1921 = vsel %vm1615, %v1903, -inf
        %1922 = vmax.xlane.f32.xlu0 %v1921
        %v1923 = vpop.xlane.xlu0 %1922
        %v1924 = vsel %vm1615, %v1904, -inf
        %1925 = vmax.xlane.f32.xlu0 %v1924
        %v1926 = vpop.xlane.xlu0 %1925
        %v1927 = vsel %vm1615, %v1905, -inf
        %1928 = vmax.xlane.f32.xlu0 %v1927
        %v1929 = vpop.xlane.xlu0 %1928
        %v1930 = vsub.f32 %v1898, %v1908
        %v1931 = vsub.f32 %v1899, %v1911
        %v1932 = vsub.f32 %v1900, %v1914
        %v1933 = vsub.f32 %v1901, %v1917
        %v1934 = vsub.f32 %v1902, %v1920
        %v1935 = vsub.f32 %v1903, %v1923
        %v1936 = vsub.f32 %v1904, %v1926
        %v1937 = vsub.f32 %v1905, %v1929
        %v1938 = vmul.f32 %v1930, 1.442695
        %v1939 = vpow.pop %v1938
        %v1940 = vmul.f32 %v1931, 1.442695
        %v1941 = vpow.pop %v1940
        %v1942 = vmul.f32 %v1932, 1.442695
        %v1943 = vpow.pop %v1942
        %v1944 = vmul.f32 %v1933, 1.442695
        %v1945 = vpow.pop %v1944
        %v1946 = vmul.f32 %v1934, 1.442695
        %v1947 = vpow.pop %v1946
        %v1948 = vmul.f32 %v1935, 1.442695
        %v1949 = vpow.pop %v1948
        %v1950 = vmul.f32 %v1936, 1.442695
        %v1951 = vpow.pop %v1950
        %v1952 = vmul.f32 %v1937, 1.442695
        %v1953 = vpow.pop %v1952
        %v1954 = vsel %vm1615, %v1939, 0.0
        %1955 = vadd.xlane.f32.xlu0 %v1954
        %v1956 = vpop.xlane.xlu0 %1955
        %v1957 = vsel %vm1615, %v1941, 0.0
        %1958 = vadd.xlane.f32.xlu0 %v1957
        %v1959 = vpop.xlane.xlu0 %1958
        %v1960 = vsel %vm1615, %v1943, 0.0
        %1961 = vadd.xlane.f32.xlu0 %v1960
        %v1962 = vpop.xlane.xlu0 %1961
        %v1963 = vsel %vm1615, %v1945, 0.0
        %1964 = vadd.xlane.f32.xlu0 %v1963
        %v1965 = vpop.xlane.xlu0 %1964
        %v1966 = vsel %vm1615, %v1947, 0.0
        %1967 = vadd.xlane.f32.xlu0 %v1966
        %v1968 = vpop.xlane.xlu0 %1967
        %v1969 = vsel %vm1615, %v1949, 0.0
        %1970 = vadd.xlane.f32.xlu0 %v1969
        %v1971 = vpop.xlane.xlu0 %1970
        %v1972 = vsel %vm1615, %v1951, 0.0
        %1973 = vadd.xlane.f32.xlu0 %v1972
        %v1974 = vpop.xlane.xlu0 %1973
        %v1975 = vsel %vm1615, %v1953, 0.0
        %1976 = vadd.xlane.f32.xlu0 %v1975
        %v1977 = vpop.xlane.xlu0 %1976
        %v1978 = vrcp.pop %v1956
        %v1979 = vrcp.pop %v1959
        %v1980 = vrcp.pop %v1962
        %v1981 = vrcp.pop %v1965
        %v1982 = vrcp.pop %v1968
        %v1983 = vrcp.pop %v1971
        %v1984 = vrcp.pop %v1974
        %v1985 = vrcp.pop %v1977
        %v1986 = vmul.f32 %v1939, %v1978
        %v1987 = vmul.f32 %v1941, %v1979
        %v1988 = vmul.f32 %v1943, %v1980
        %v1989 = vmul.f32 %v1945, %v1981
        %v1990 = vmul.f32 %v1947, %v1982
        %v1991 = vmul.f32 %v1949, %v1983
        %v1992 = vmul.f32 %v1951, %v1984
        %v1993 = vmul.f32 %v1953, %v1985
        %v1994 = vpack.c.bf16 %v1987, %v1986
        %v1995 = vpack.c.bf16 %v1989, %v1988
        %v1996 = vpack.c.bf16 %v1991, %v1990
        %v1997 = vpack.c.bf16 %v1993, %v1992
        %2002 = vrot.lane.b32.xlu0 %v1495, 96
        %v2003 = vpop.permute.xlu0 %2002
        %2004 = vrot.lane.b32.xlu0 %v1498, 96
        %v2005 = vpop.permute.xlu0 %2004
        %2006 = vrot.lane.b32.xlu0 %v1501, 96
        %v2007 = vpop.permute.xlu0 %2006
        %2008 = vrot.lane.b32.xlu0 %v1504, 96
        %v2009 = vpop.permute.xlu0 %2008
        %v2015 = vsel %vm1615, %v1994, 0
        %v2018 = vsel %vm1615, %v1995, 0
        %v2021 = vsel %vm1615, %v1996, 0
        %v2024 = vsel %vm1615, %v1997, 0
        %2026 = vmatprep.subr.bf16.mxu0 0
        %2027 = vmatpush1.bf16.msra.mxu0 %v2003
        %2028 = vmatprep.subr.bf16.mxu0 0
        %2029 = vmatpush1.bf16.msra.mxu0 %v2005
        %2030 = vmatprep.subr.bf16.mxu0 0
        %2031 = vmatpush1.bf16.msra.mxu0 %v2007
        %2032 = vmatprep.subr.bf16.mxu0 0
        %2033 = vmatpush1.bf16.msra.mxu0 %v2009
        %2034 = vmatprep.subr.bf16.mxu0 0
        %2035 = vmatpush1.bf16.msra.mxu0 0
        %2036 = vmatprep.subr.bf16.mxu0 0
        %2037 = vmatpush1.bf16.msra.mxu0 0
        %2038 = vmatprep.subr.bf16.mxu0 0
        %2039 = vmatpush1.bf16.msra.mxu0 0
        %2040 = vmatprep.subr.bf16.mxu0 0
        %2041 = vmatpush1.bf16.msra.mxu0 0
        %2042 = vmatprep.subr.bf16.mxu0 0
        %2043 = vmatpush1.bf16.msra.mxu0 0
        %2044 = vmatprep.subr.bf16.mxu0 0
        %2045 = vmatpush1.bf16.msra.mxu0 0
        %2046 = vmatprep.subr.bf16.mxu0 0
        %2047 = vmatpush1.bf16.msra.mxu0 0
        %2048 = vmatprep.subr.bf16.mxu0 0
        %2049 = vmatpush1.bf16.msra.mxu0 0
        %2050 = vmatprep.subr.bf16.mxu0 0
        %2051 = vmatpush1.bf16.msra.mxu0 0
        %2052 = vmatprep.subr.bf16.mxu0 0
        %2053 = vmatpush1.bf16.msra.mxu0 0
        %2054 = vmatprep.subr.bf16.mxu0 0
        %2055 = vmatpush1.bf16.msra.mxu0 0
        %2056 = vmatprep.subr.bf16.mxu0 0
        %2057 = vmatpush1.bf16.msra.mxu0 0
        %2058 = vmatprep.mubr.bf16.mxu0 0
        %2059 = vmatmul.mubr.bf16.gmra.mrb[0].mxu0 %v2015
        %v2060 = vpop.f32.mrb[0].mxu0
        %v2061 = vadd.f32 0.0, %v2060
        %v2062 = vpop.f32.mrb[0].mxu0
        %v2063 = vpop.f32.mrb[0].mxu0
        %v2064 = vadd.f32 0.0, %v2063
        %v2065 = vpop.f32.mrb[0].mxu0
        %2066 = vmatprep.mubr.bf16.mxu0 0
        %2067 = vmatmul.mubr.bf16.gmra.mrb[0].mxu0 %v2018
        %v2068 = vpop.f32.mrb[0].mxu0
        %v2069 = vadd.f32 0.0, %v2068
        %v2070 = vpop.f32.mrb[0].mxu0
        %v2071 = vpop.f32.mrb[0].mxu0
        %v2072 = vadd.f32 0.0, %v2071
        %v2073 = vpop.f32.mrb[0].mxu0
        %2074 = vmatprep.mubr.bf16.mxu0 0
        %2075 = vmatmul.mubr.bf16.gmra.mrb[0].mxu0 %v2021
        %v2076 = vpop.f32.mrb[0].mxu0
        %v2077 = vadd.f32 0.0, %v2076
        %v2078 = vpop.f32.mrb[0].mxu0
        %v2079 = vpop.f32.mrb[0].mxu0
        %v2080 = vadd.f32 0.0, %v2079
        %v2081 = vpop.f32.mrb[0].mxu0
        %2082 = vmatprep.mubr.bf16.mxu0 0
        %2083 = vmatmul.mubr.bf16.gmra.mrb[0].mxu0 %v2024
        %v2084 = vpop.f32.mrb[0].mxu0
        %v2085 = vadd.f32 0.0, %v2084
        %v2086 = vpop.f32.mrb[0].mxu0
        %v2087 = vpop.f32.mrb[0].mxu0
        %v2088 = vadd.f32 0.0, %v2087
        %v2089 = vpop.f32.mrb[0].mxu0
        %2090 = vdwg.mxu0
        %2091 = vrot.lane.b32.xlu0 %v1493, 64
        %v2092 = vpop.permute.xlu0 %2091
        %2093 = vrot.lane.b32.xlu0 %v1496, 64
        %v2094 = vpop.permute.xlu0 %2093
        %2095 = vrot.lane.b32.xlu0 %v1499, 64
        %v2096 = vpop.permute.xlu0 %2095
        %2097 = vrot.lane.b32.xlu0 %v1502, 64
        %v2098 = vpop.permute.xlu0 %2097
        %2099 = vrot.lane.b32.xlu0 %v1494, 64
        %v2100 = vpop.permute.xlu0 %2099
        %2101 = vrot.lane.b32.xlu0 %v1497, 64
        %v2102 = vpop.permute.xlu0 %2101
        %2103 = vrot.lane.b32.xlu0 %v1500, 64
        %v2104 = vpop.permute.xlu0 %2103
        %2105 = vrot.lane.b32.xlu0 %v1503, 64
        %v2106 = vpop.permute.xlu0 %2105
        %v2108 = vsel %vm1517, %v2092, 0
        %v2111 = vsel %vm1517, %v2094, 0
        %v2114 = vsel %vm1517, %v2096, 0
        %v2117 = vsel %vm1517, %v2098, 0
        %v2120 = vsel %vm1517, %v2100, 0
        %v2123 = vsel %vm1517, %v2102, 0
        %v2126 = vsel %vm1517, %v2104, 0
        %v2129 = vsel %vm1517, %v2106, 0
        %2131 = vmatprep.subr.bf16.mxu0 0
        %2132 = vmatpush1.bf16.xpose.msra.mxu0 %v2120
        %2133 = vmatprep.subr.bf16.mxu0 0
        %2134 = vmatpush1.bf16.xpose.msra.mxu0 %v2123
        %2135 = vmatprep.subr.bf16.mxu0 0
        %2136 = vmatpush1.bf16.xpose.msra.mxu0 %v2126
        %2137 = vmatprep.subr.bf16.mxu0 0
        %2138 = vmatpush1.bf16.xpose.msra.mxu0 %v2129
        %2139 = vmatprep.subr.bf16.mxu0 0
        %2140 = vmatpush1.bf16.xpose.msra.mxu0 0
        %2141 = vmatprep.subr.bf16.mxu0 0
        %2142 = vmatpush1.bf16.xpose.msra.mxu0 0
        %2143 = vmatprep.subr.bf16.mxu0 0
        %2144 = vmatpush1.bf16.xpose.msra.mxu0 0
        %2145 = vmatprep.subr.bf16.mxu0 0
        %2146 = vmatpush1.bf16.xpose.msra.mxu0 0
        %2147 = vmatprep.subr.bf16.mxu0 0
        %2148 = vmatpush1.bf16.xpose.msra.mxu0 0
        %2149 = vmatprep.subr.bf16.mxu0 0
        %2150 = vmatpush1.bf16.xpose.msra.mxu0 0
        %2151 = vmatprep.subr.bf16.mxu0 0
        %2152 = vmatpush1.bf16.xpose.msra.mxu0 0
        %2153 = vmatprep.subr.bf16.mxu0 0
        %2154 = vmatpush1.bf16.xpose.msra.mxu0 0
        %2155 = vmatprep.subr.bf16.mxu0 0
        %2156 = vmatpush1.bf16.xpose.msra.mxu0 0
        %2157 = vmatprep.subr.bf16.mxu0 0
        %2158 = vmatpush1.bf16.xpose.msra.mxu0 0
        %2159 = vmatprep.subr.bf16.mxu0 0
        %2160 = vmatpush1.bf16.xpose.msra.mxu0 0
        %2161 = vmatprep.subr.bf16.mxu0 0
        %2162 = vmatpush1.bf16.xpose.msra.mxu0 0
        %2163 = vmatprep.mubr.bf16.mxu0 0
        %2164 = vmatmul.mubr.bf16.gmra.mrb[0].mxu0 %v2108
        %v2165 = vpop.f32.mrb[0].mxu0
        %v2166 = vadd.f32 0.0, %v2165
        %v2167 = vpop.f32.mrb[0].mxu0
        %v2168 = vpop.f32.mrb[0].mxu0
        %v2169 = vadd.f32 0.0, %v2168
        %v2170 = vpop.f32.mrb[0].mxu0
        %2171 = vmatprep.mubr.bf16.mxu0 0
        %2172 = vmatmul.mubr.bf16.gmra.mrb[0].mxu0 %v2111
        %v2173 = vpop.f32.mrb[0].mxu0
        %v2174 = vadd.f32 0.0, %v2173
        %v2175 = vpop.f32.mrb[0].mxu0
        %v2176 = vpop.f32.mrb[0].mxu0
        %v2177 = vadd.f32 0.0, %v2176
        %v2178 = vpop.f32.mrb[0].mxu0
        %2179 = vmatprep.mubr.bf16.mxu0 0
        %2180 = vmatmul.mubr.bf16.gmra.mrb[0].mxu0 %v2114
        %v2181 = vpop.f32.mrb[0].mxu0
        %v2182 = vadd.f32 0.0, %v2181
        %v2183 = vpop.f32.mrb[0].mxu0
        %v2184 = vpop.f32.mrb[0].mxu0
        %v2185 = vadd.f32 0.0, %v2184
        %v2186 = vpop.f32.mrb[0].mxu0
        %2187 = vmatprep.mubr.bf16.mxu0 0
        %2188 = vmatmul.mubr.bf16.gmra.mrb[0].mxu0 %v2117
        %v2189 = vpop.f32.mrb[0].mxu0
        %v2190 = vadd.f32 0.0, %v2189
        %v2191 = vpop.f32.mrb[0].mxu0
        %v2192 = vpop.f32.mrb[0].mxu0
        %v2193 = vadd.f32 0.0, %v2192
        %v2194 = vpop.f32.mrb[0].mxu0
        %2195 = vdwg.mxu0
        %v2196 = vmul.f32 %v2166, 0.17677669
        %v2197 = vmul.f32 %v2169, 0.17677669
        %v2198 = vmul.f32 %v2174, 0.17677669
        %v2199 = vmul.f32 %v2177, 0.17677669
        %v2200 = vmul.f32 %v2182, 0.17677669
        %v2201 = vmul.f32 %v2185, 0.17677669
        %v2202 = vmul.f32 %v2190, 0.17677669
        %v2203 = vmul.f32 %v2193, 0.17677669
        %v2204 = vsel %vm1615, %v2196, -inf
        %2205 = vmax.xlane.f32.xlu0 %v2204
        %v2206 = vpop.xlane.xlu0 %2205
        %v2207 = vsel %vm1615, %v2197, -inf
        %2208 = vmax.xlane.f32.xlu0 %v2207
        %v2209 = vpop.xlane.xlu0 %2208
        %v2210 = vsel %vm1615, %v2198, -inf
        %2211 = vmax.xlane.f32.xlu0 %v2210
        %v2212 = vpop.xlane.xlu0 %2211
        %v2213 = vsel %vm1615, %v2199, -inf
        %2214 = vmax.xlane.f32.xlu0 %v2213
        %v2215 = vpop.xlane.xlu0 %2214
        %v2216 = vsel %vm1615, %v2200, -inf
        %2217 = vmax.xlane.f32.xlu0 %v2216
        %v2218 = vpop.xlane.xlu0 %2217
        %v2219 = vsel %vm1615, %v2201, -inf
        %2220 = vmax.xlane.f32.xlu0 %v2219
        %v2221 = vpop.xlane.xlu0 %2220
        %v2222 = vsel %vm1615, %v2202, -inf
        %2223 = vmax.xlane.f32.xlu0 %v2222
        %v2224 = vpop.xlane.xlu0 %2223
        %v2225 = vsel %vm1615, %v2203, -inf
        %2226 = vmax.xlane.f32.xlu0 %v2225
        %v2227 = vpop.xlane.xlu0 %2226
        %v2228 = vsub.f32 %v2196, %v2206
        %v2229 = vsub.f32 %v2197, %v2209
        %v2230 = vsub.f32 %v2198, %v2212
        %v2231 = vsub.f32 %v2199, %v2215
        %v2232 = vsub.f32 %v2200, %v2218
        %v2233 = vsub.f32 %v2201, %v2221
        %v2234 = vsub.f32 %v2202, %v2224
        %v2235 = vsub.f32 %v2203, %v2227
        %v2236 = vmul.f32 %v2228, 1.442695
        %v2237 = vpow.pop %v2236
        %v2238 = vmul.f32 %v2229, 1.442695
        %v2239 = vpow.pop %v2238
        %v2240 = vmul.f32 %v2230, 1.442695
        %v2241 = vpow.pop %v2240
        %v2242 = vmul.f32 %v2231, 1.442695
        %v2243 = vpow.pop %v2242
        %v2244 = vmul.f32 %v2232, 1.442695
        %v2245 = vpow.pop %v2244
        %v2246 = vmul.f32 %v2233, 1.442695
        %v2247 = vpow.pop %v2246
        %v2248 = vmul.f32 %v2234, 1.442695
        %v2249 = vpow.pop %v2248
        %v2250 = vmul.f32 %v2235, 1.442695
        %v2251 = vpow.pop %v2250
        %v2252 = vsel %vm1615, %v2237, 0.0
        %2253 = vadd.xlane.f32.xlu0 %v2252
        %v2254 = vpop.xlane.xlu0 %2253
        %v2255 = vsel %vm1615, %v2239, 0.0
        %2256 = vadd.xlane.f32.xlu0 %v2255
        %v2257 = vpop.xlane.xlu0 %2256
        %v2258 = vsel %vm1615, %v2241, 0.0
        %2259 = vadd.xlane.f32.xlu0 %v2258
        %v2260 = vpop.xlane.xlu0 %2259
        %v2261 = vsel %vm1615, %v2243, 0.0
        %2262 = vadd.xlane.f32.xlu0 %v2261
        %v2263 = vpop.xlane.xlu0 %2262
        %v2264 = vsel %vm1615, %v2245, 0.0
        %2265 = vadd.xlane.f32.xlu0 %v2264
        %v2266 = vpop.xlane.xlu0 %2265
        %v2267 = vsel %vm1615, %v2247, 0.0
        %2268 = vadd.xlane.f32.xlu0 %v2267
        %v2269 = vpop.xlane.xlu0 %2268
        %v2270 = vsel %vm1615, %v2249, 0.0
        %2271 = vadd.xlane.f32.xlu0 %v2270
        %v2272 = vpop.xlane.xlu0 %2271
        %v2273 = vsel %vm1615, %v2251, 0.0
        %2274 = vadd.xlane.f32.xlu0 %v2273
        %v2275 = vpop.xlane.xlu0 %2274
        %v2276 = vrcp.pop %v2254
        %v2277 = vrcp.pop %v2257
        %v2278 = vrcp.pop %v2260
        %v2279 = vrcp.pop %v2263
        %v2280 = vrcp.pop %v2266
        %v2281 = vrcp.pop %v2269
        %v2282 = vrcp.pop %v2272
        %v2283 = vrcp.pop %v2275
        %v2284 = vmul.f32 %v2237, %v2276
        %v2285 = vmul.f32 %v2239, %v2277
        %v2286 = vmul.f32 %v2241, %v2278
        %v2287 = vmul.f32 %v2243, %v2279
        %v2288 = vmul.f32 %v2245, %v2280
        %v2289 = vmul.f32 %v2247, %v2281
        %v2290 = vmul.f32 %v2249, %v2282
        %v2291 = vmul.f32 %v2251, %v2283
        %v2292 = vpack.c.bf16 %v2285, %v2284
        %v2293 = vpack.c.bf16 %v2287, %v2286
        %v2294 = vpack.c.bf16 %v2289, %v2288
        %v2295 = vpack.c.bf16 %v2291, %v2290
        %2296 = vrot.lane.b32.xlu0 %v1495, 64
        %v2297 = vpop.permute.xlu0 %2296
        %2298 = vrot.lane.b32.xlu0 %v1498, 64
        %v2299 = vpop.permute.xlu0 %2298
        %2300 = vrot.lane.b32.xlu0 %v1501, 64
        %v2301 = vpop.permute.xlu0 %2300
        %2302 = vrot.lane.b32.xlu0 %v1504, 64
        %v2303 = vpop.permute.xlu0 %2302
        %v2309 = vsel %vm1615, %v2292, 0
        %v2312 = vsel %vm1615, %v2293, 0
        %v2315 = vsel %vm1615, %v2294, 0
        %v2318 = vsel %vm1615, %v2295, 0
        %2320 = vmatprep.subr.bf16.mxu0 0
        %2321 = vmatpush1.bf16.msra.mxu0 %v2297
        %2322 = vmatprep.subr.bf16.mxu0 0
        %2323 = vmatpush1.bf16.msra.mxu0 %v2299
        %2324 = vmatprep.subr.bf16.mxu0 0
        %2325 = vmatpush1.bf16.msra.mxu0 %v2301
        %2326 = vmatprep.subr.bf16.mxu0 0
        %2327 = vmatpush1.bf16.msra.mxu0 %v2303
        %2328 = vmatprep.subr.bf16.mxu0 0
        %2329 = vmatpush1.bf16.msra.mxu0 0
        %2330 = vmatprep.subr.bf16.mxu0 0
        %2331 = vmatpush1.bf16.msra.mxu0 0
        %2332 = vmatprep.subr.bf16.mxu0 0
        %2333 = vmatpush1.bf16.msra.mxu0 0
        %2334 = vmatprep.subr.bf16.mxu0 0
        %2335 = vmatpush1.bf16.msra.mxu0 0
        %2336 = vmatprep.subr.bf16.mxu0 0
        %2337 = vmatpush1.bf16.msra.mxu0 0
        %2338 = vmatprep.subr.bf16.mxu0 0
        %2339 = vmatpush1.bf16.msra.mxu0 0
        %2340 = vmatprep.subr.bf16.mxu0 0
        %2341 = vmatpush1.bf16.msra.mxu0 0
        %2342 = vmatprep.subr.bf16.mxu0 0
        %2343 = vmatpush1.bf16.msra.mxu0 0
        %2344 = vmatprep.subr.bf16.mxu0 0
        %2345 = vmatpush1.bf16.msra.mxu0 0
        %2346 = vmatprep.subr.bf16.mxu0 0
        %2347 = vmatpush1.bf16.msra.mxu0 0
        %2348 = vmatprep.subr.bf16.mxu0 0
        %2349 = vmatpush1.bf16.msra.mxu0 0
        %2350 = vmatprep.subr.bf16.mxu0 0
        %2351 = vmatpush1.bf16.msra.mxu0 0
        %2352 = vmatprep.mubr.bf16.mxu0 0
        %2353 = vmatmul.mubr.bf16.gmra.mrb[0].mxu0 %v2309
        %v2354 = vpop.f32.mrb[0].mxu0
        %v2355 = vadd.f32 0.0, %v2354
        %v2356 = vpop.f32.mrb[0].mxu0
        %v2357 = vpop.f32.mrb[0].mxu0
        %v2358 = vadd.f32 0.0, %v2357
        %v2359 = vpop.f32.mrb[0].mxu0
        %2360 = vmatprep.mubr.bf16.mxu0 0
        %2361 = vmatmul.mubr.bf16.gmra.mrb[0].mxu0 %v2312
        %v2362 = vpop.f32.mrb[0].mxu0
        %v2363 = vadd.f32 0.0, %v2362
        %v2364 = vpop.f32.mrb[0].mxu0
        %v2365 = vpop.f32.mrb[0].mxu0
        %v2366 = vadd.f32 0.0, %v2365
        %v2367 = vpop.f32.mrb[0].mxu0
        %2368 = vmatprep.mubr.bf16.mxu0 0
        %2369 = vmatmul.mubr.bf16.gmra.mrb[0].mxu0 %v2315
        %v2370 = vpop.f32.mrb[0].mxu0
        %v2371 = vadd.f32 0.0, %v2370
        %v2372 = vpop.f32.mrb[0].mxu0
        %v2373 = vpop.f32.mrb[0].mxu0
        %v2374 = vadd.f32 0.0, %v2373
        %v2375 = vpop.f32.mrb[0].mxu0
        %2376 = vmatprep.mubr.bf16.mxu0 0
        %2377 = vmatmul.mubr.bf16.gmra.mrb[0].mxu0 %v2318
        %v2378 = vpop.f32.mrb[0].mxu0
        %v2379 = vadd.f32 0.0, %v2378
        %v2380 = vpop.f32.mrb[0].mxu0
        %v2381 = vpop.f32.mrb[0].mxu0
        %v2382 = vadd.f32 0.0, %v2381
        %v2383 = vpop.f32.mrb[0].mxu0
        %2384 = vdwg.mxu0
        %2385 = vrot.lane.b32.xlu0 %v1493, 32
        %v2386 = vpop.permute.xlu0 %2385
        %2387 = vrot.lane.b32.xlu0 %v1496, 32
        %v2388 = vpop.permute.xlu0 %2387
        %2389 = vrot.lane.b32.xlu0 %v1499, 32
        %v2390 = vpop.permute.xlu0 %2389
        %2391 = vrot.lane.b32.xlu0 %v1502, 32
        %v2392 = vpop.permute.xlu0 %2391
        %2393 = vrot.lane.b32.xlu0 %v1494, 32
        %v2394 = vpop.permute.xlu0 %2393
        %2395 = vrot.lane.b32.xlu0 %v1497, 32
        %v2396 = vpop.permute.xlu0 %2395
        %2397 = vrot.lane.b32.xlu0 %v1500, 32
        %v2398 = vpop.permute.xlu0 %2397
        %2399 = vrot.lane.b32.xlu0 %v1503, 32
        %v2400 = vpop.permute.xlu0 %2399
        %v2402 = vsel %vm1517, %v2386, 0
        %v2405 = vsel %vm1517, %v2388, 0
        %v2408 = vsel %vm1517, %v2390, 0
        %v2411 = vsel %vm1517, %v2392, 0
        %v2414 = vsel %vm1517, %v2394, 0
        %v2417 = vsel %vm1517, %v2396, 0
        %v2420 = vsel %vm1517, %v2398, 0
        %v2423 = vsel %vm1517, %v2400, 0
        %2425 = vmatprep.subr.bf16.mxu0 0
        %2426 = vmatpush1.bf16.xpose.msra.mxu0 %v2414
        %2427 = vmatprep.subr.bf16.mxu0 0
        %2428 = vmatpush1.bf16.xpose.msra.mxu0 %v2417
        %2429 = vmatprep.subr.bf16.mxu0 0
        %2430 = vmatpush1.bf16.xpose.msra.mxu0 %v2420
        %2431 = vmatprep.subr.bf16.mxu0 0
        %2432 = vmatpush1.bf16.xpose.msra.mxu0 %v2423
        %2433 = vmatprep.subr.bf16.mxu0 0
        %2434 = vmatpush1.bf16.xpose.msra.mxu0 0
        %2435 = vmatprep.subr.bf16.mxu0 0
        %2436 = vmatpush1.bf16.xpose.msra.mxu0 0
        %2437 = vmatprep.subr.bf16.mxu0 0
        %2438 = vmatpush1.bf16.xpose.msra.mxu0 0
        %2439 = vmatprep.subr.bf16.mxu0 0
        %2440 = vmatpush1.bf16.xpose.msra.mxu0 0
        %2441 = vmatprep.subr.bf16.mxu0 0
        %2442 = vmatpush1.bf16.xpose.msra.mxu0 0
        %2443 = vmatprep.subr.bf16.mxu0 0
        %2444 = vmatpush1.bf16.xpose.msra.mxu0 0
        %2445 = vmatprep.subr.bf16.mxu0 0
        %2446 = vmatpush1.bf16.xpose.msra.mxu0 0
        %2447 = vmatprep.subr.bf16.mxu0 0
        %2448 = vmatpush1.bf16.xpose.msra.mxu0 0
        %2449 = vmatprep.subr.bf16.mxu0 0
        %2450 = vmatpush1.bf16.xpose.msra.mxu0 0
        %2451 = vmatprep.subr.bf16.mxu0 0
        %2452 = vmatpush1.bf16.xpose.msra.mxu0 0
        %2453 = vmatprep.subr.bf16.mxu0 0
        %2454 = vmatpush1.bf16.xpose.msra.mxu0 0
        %2455 = vmatprep.subr.bf16.mxu0 0
        %2456 = vmatpush1.bf16.xpose.msra.mxu0 0
        %2457 = vmatprep.mubr.bf16.mxu0 0
        %2458 = vmatmul.mubr.bf16.gmra.mrb[0].mxu0 %v2402
        %v2459 = vpop.f32.mrb[0].mxu0
        %v2460 = vadd.f32 0.0, %v2459
        %v2461 = vpop.f32.mrb[0].mxu0
        %v2462 = vpop.f32.mrb[0].mxu0
        %v2463 = vadd.f32 0.0, %v2462
        %v2464 = vpop.f32.mrb[0].mxu0
        %2465 = vmatprep.mubr.bf16.mxu0 0
        %2466 = vmatmul.mubr.bf16.gmra.mrb[0].mxu0 %v2405
        %v2467 = vpop.f32.mrb[0].mxu0
        %v2468 = vadd.f32 0.0, %v2467
        %v2469 = vpop.f32.mrb[0].mxu0
        %v2470 = vpop.f32.mrb[0].mxu0
        %v2471 = vadd.f32 0.0, %v2470
        %v2472 = vpop.f32.mrb[0].mxu0
        %2473 = vmatprep.mubr.bf16.mxu0 0
        %2474 = vmatmul.mubr.bf16.gmra.mrb[0].mxu0 %v2408
        %v2475 = vpop.f32.mrb[0].mxu0
        %v2476 = vadd.f32 0.0, %v2475
        %v2477 = vpop.f32.mrb[0].mxu0
        %v2478 = vpop.f32.mrb[0].mxu0
        %v2479 = vadd.f32 0.0, %v2478
        %v2480 = vpop.f32.mrb[0].mxu0
        %2481 = vmatprep.mubr.bf16.mxu0 0
        %2482 = vmatmul.mubr.bf16.gmra.mrb[0].mxu0 %v2411
        %v2483 = vpop.f32.mrb[0].mxu0
        %v2484 = vadd.f32 0.0, %v2483
        %v2485 = vpop.f32.mrb[0].mxu0
        %v2486 = vpop.f32.mrb[0].mxu0
        %v2487 = vadd.f32 0.0, %v2486
        %v2488 = vpop.f32.mrb[0].mxu0
        %2489 = vdwg.mxu0
        %v2490 = vmul.f32 %v2460, 0.17677669
        %v2491 = vmul.f32 %v2463, 0.17677669
        %v2492 = vmul.f32 %v2468, 0.17677669
        %v2493 = vmul.f32 %v2471, 0.17677669
        %v2494 = vmul.f32 %v2476, 0.17677669
        %v2495 = vmul.f32 %v2479, 0.17677669
        %v2496 = vmul.f32 %v2484, 0.17677669
        %v2497 = vmul.f32 %v2487, 0.17677669
        %v2498 = vsel %vm1615, %v2490, -inf
        %2499 = vmax.xlane.f32.xlu0 %v2498
        %v2500 = vpop.xlane.xlu0 %2499
        %v2501 = vsel %vm1615, %v2491, -inf
        %2502 = vmax.xlane.f32.xlu0 %v2501
        %v2503 = vpop.xlane.xlu0 %2502
        %v2504 = vsel %vm1615, %v2492, -inf
        %2505 = vmax.xlane.f32.xlu0 %v2504
        %v2506 = vpop.xlane.xlu0 %2505
        %v2507 = vsel %vm1615, %v2493, -inf
        %2508 = vmax.xlane.f32.xlu0 %v2507
        %v2509 = vpop.xlane.xlu0 %2508
        %v2510 = vsel %vm1615, %v2494, -inf
        %2511 = vmax.xlane.f32.xlu0 %v2510
        %v2512 = vpop.xlane.xlu0 %2511
        %v2513 = vsel %vm1615, %v2495, -inf
        %2514 = vmax.xlane.f32.xlu0 %v2513
        %v2515 = vpop.xlane.xlu0 %2514
        %v2516 = vsel %vm1615, %v2496, -inf
        %2517 = vmax.xlane.f32.xlu0 %v2516
        %v2518 = vpop.xlane.xlu0 %2517
        %v2519 = vsel %vm1615, %v2497, -inf
        %2520 = vmax.xlane.f32.xlu0 %v2519
        %v2521 = vpop.xlane.xlu0 %2520
        %v2522 = vsub.f32 %v2490, %v2500
        %v2523 = vsub.f32 %v2491, %v2503
        %v2524 = vsub.f32 %v2492, %v2506
        %v2525 = vsub.f32 %v2493, %v2509
        %v2526 = vsub.f32 %v2494, %v2512
        %v2527 = vsub.f32 %v2495, %v2515
        %v2528 = vsub.f32 %v2496, %v2518
        %v2529 = vsub.f32 %v2497, %v2521
        %v2530 = vmul.f32 %v2522, 1.442695
        %v2531 = vpow.pop %v2530
        %v2532 = vmul.f32 %v2523, 1.442695
        %v2533 = vpow.pop %v2532
        %v2534 = vmul.f32 %v2524, 1.442695
        %v2535 = vpow.pop %v2534
        %v2536 = vmul.f32 %v2525, 1.442695
        %v2537 = vpow.pop %v2536
        %v2538 = vmul.f32 %v2526, 1.442695
        %v2539 = vpow.pop %v2538
        %v2540 = vmul.f32 %v2527, 1.442695
        %v2541 = vpow.pop %v2540
        %v2542 = vmul.f32 %v2528, 1.442695
        %v2543 = vpow.pop %v2542
        %v2544 = vmul.f32 %v2529, 1.442695
        %v2545 = vpow.pop %v2544
        %v2546 = vsel %vm1615, %v2531, 0.0
        %2547 = vadd.xlane.f32.xlu0 %v2546
        %v2548 = vpop.xlane.xlu0 %2547
        %v2549 = vsel %vm1615, %v2533, 0.0
        %2550 = vadd.xlane.f32.xlu0 %v2549
        %v2551 = vpop.xlane.xlu0 %2550
        %v2552 = vsel %vm1615, %v2535, 0.0
        %2553 = vadd.xlane.f32.xlu0 %v2552
        %v2554 = vpop.xlane.xlu0 %2553
        %v2555 = vsel %vm1615, %v2537, 0.0
        %2556 = vadd.xlane.f32.xlu0 %v2555
        %v2557 = vpop.xlane.xlu0 %2556
        %v2558 = vsel %vm1615, %v2539, 0.0
        %2559 = vadd.xlane.f32.xlu0 %v2558
        %v2560 = vpop.xlane.xlu0 %2559
        %v2561 = vsel %vm1615, %v2541, 0.0
        %2562 = vadd.xlane.f32.xlu0 %v2561
        %v2563 = vpop.xlane.xlu0 %2562
        %v2564 = vsel %vm1615, %v2543, 0.0
        %2565 = vadd.xlane.f32.xlu0 %v2564
        %v2566 = vpop.xlane.xlu0 %2565
        %v2567 = vsel %vm1615, %v2545, 0.0
        %2568 = vadd.xlane.f32.xlu0 %v2567
        %v2569 = vpop.xlane.xlu0 %2568
        %v2570 = vrcp.pop %v2548
        %v2571 = vrcp.pop %v2551
        %v2572 = vrcp.pop %v2554
        %v2573 = vrcp.pop %v2557
        %v2574 = vrcp.pop %v2560
        %v2575 = vrcp.pop %v2563
        %v2576 = vrcp.pop %v2566
        %v2577 = vrcp.pop %v2569
        %v2578 = vmul.f32 %v2531, %v2570
        %v2579 = vmul.f32 %v2533, %v2571
        %v2580 = vmul.f32 %v2535, %v2572
        %v2581 = vmul.f32 %v2537, %v2573
        %v2582 = vmul.f32 %v2539, %v2574
        %v2583 = vmul.f32 %v2541, %v2575
        %v2584 = vmul.f32 %v2543, %v2576
        %v2585 = vmul.f32 %v2545, %v2577
        %v2586 = vpack.c.bf16 %v2579, %v2578
        %v2587 = vpack.c.bf16 %v2581, %v2580
        %v2588 = vpack.c.bf16 %v2583, %v2582
        %v2589 = vpack.c.bf16 %v2585, %v2584
        %2590 = vrot.lane.b32.xlu0 %v1495, 32
        %v2591 = vpop.permute.xlu0 %2590
        %2592 = vrot.lane.b32.xlu0 %v1498, 32
        %v2593 = vpop.permute.xlu0 %2592
        %2594 = vrot.lane.b32.xlu0 %v1501, 32
        %v2595 = vpop.permute.xlu0 %2594
        %2596 = vrot.lane.b32.xlu0 %v1504, 32
        %v2597 = vpop.permute.xlu0 %2596
        %v2603 = vsel %vm1615, %v2586, 0
        %v2606 = vsel %vm1615, %v2587, 0
        %v2609 = vsel %vm1615, %v2588, 0
        %v2612 = vsel %vm1615, %v2589, 0
        %2614 = vmatprep.subr.bf16.mxu0 0
        %2615 = vmatpush1.bf16.msra.mxu0 %v2591
        %2616 = vmatprep.subr.bf16.mxu0 0
        %2617 = vmatpush1.bf16.msra.mxu0 %v2593
        %2618 = vmatprep.subr.bf16.mxu0 0
        %2619 = vmatpush1.bf16.msra.mxu0 %v2595
        %2620 = vmatprep.subr.bf16.mxu0 0
        %2621 = vmatpush1.bf16.msra.mxu0 %v2597
        %2622 = vmatprep.subr.bf16.mxu0 0
        %2623 = vmatpush1.bf16.msra.mxu0 0
        %2624 = vmatprep.subr.bf16.mxu0 0
        %2625 = vmatpush1.bf16.msra.mxu0 0
        %2626 = vmatprep.subr.bf16.mxu0 0
        %2627 = vmatpush1.bf16.msra.mxu0 0
        %2628 = vmatprep.subr.bf16.mxu0 0
        %2629 = vmatpush1.bf16.msra.mxu0 0
        %2630 = vmatprep.subr.bf16.mxu0 0
        %2631 = vmatpush1.bf16.msra.mxu0 0
        %2632 = vmatprep.subr.bf16.mxu0 0
        %2633 = vmatpush1.bf16.msra.mxu0 0
        %2634 = vmatprep.subr.bf16.mxu0 0
        %2635 = vmatpush1.bf16.msra.mxu0 0
        %2636 = vmatprep.subr.bf16.mxu0 0
        %2637 = vmatpush1.bf16.msra.mxu0 0
        %2638 = vmatprep.subr.bf16.mxu0 0
        %2639 = vmatpush1.bf16.msra.mxu0 0
        %2640 = vmatprep.subr.bf16.mxu0 0
        %2641 = vmatpush1.bf16.msra.mxu0 0
        %2642 = vmatprep.subr.bf16.mxu0 0
        %2643 = vmatpush1.bf16.msra.mxu0 0
        %2644 = vmatprep.subr.bf16.mxu0 0
        %2645 = vmatpush1.bf16.msra.mxu0 0
        %2646 = vmatprep.mubr.bf16.mxu0 0
        %2647 = vmatmul.mubr.bf16.gmra.mrb[0].mxu0 %v2603
        %v2648 = vpop.f32.mrb[0].mxu0
        %v2649 = vadd.f32 0.0, %v2648
        %v2650 = vpop.f32.mrb[0].mxu0
        %v2651 = vpop.f32.mrb[0].mxu0
        %v2652 = vadd.f32 0.0, %v2651
        %v2653 = vpop.f32.mrb[0].mxu0
        %2654 = vmatprep.mubr.bf16.mxu0 0
        %2655 = vmatmul.mubr.bf16.gmra.mrb[0].mxu0 %v2606
        %v2656 = vpop.f32.mrb[0].mxu0
        %v2657 = vadd.f32 0.0, %v2656
        %v2658 = vpop.f32.mrb[0].mxu0
        %v2659 = vpop.f32.mrb[0].mxu0
        %v2660 = vadd.f32 0.0, %v2659
        %v2661 = vpop.f32.mrb[0].mxu0
        %2662 = vmatprep.mubr.bf16.mxu0 0
        %2663 = vmatmul.mubr.bf16.gmra.mrb[0].mxu0 %v2609
        %v2664 = vpop.f32.mrb[0].mxu0
        %v2665 = vadd.f32 0.0, %v2664
        %v2666 = vpop.f32.mrb[0].mxu0
        %v2667 = vpop.f32.mrb[0].mxu0
        %v2668 = vadd.f32 0.0, %v2667
        %v2669 = vpop.f32.mrb[0].mxu0
        %2670 = vmatprep.mubr.bf16.mxu0 0
        %2671 = vmatmul.mubr.bf16.gmra.mrb[0].mxu0 %v2612
        %v2672 = vpop.f32.mrb[0].mxu0
        %v2673 = vadd.f32 0.0, %v2672
        %v2674 = vpop.f32.mrb[0].mxu0
        %v2675 = vpop.f32.mrb[0].mxu0
        %v2676 = vadd.f32 0.0, %v2675
        %v2677 = vpop.f32.mrb[0].mxu0
        %2678 = vdwg.mxu0
        %2687 = vrot.lane.b32.xlu0 %v2061, 32
        %v2688 = vpop.permute.xlu0 %2687
        %2689 = vrot.lane.b32.xlu0 %v2064, 32
        %v2690 = vpop.permute.xlu0 %2689
        %2691 = vrot.lane.b32.xlu0 %v2069, 32
        %v2692 = vpop.permute.xlu0 %2691
        %2693 = vrot.lane.b32.xlu0 %v2072, 32
        %v2694 = vpop.permute.xlu0 %2693
        %2695 = vrot.lane.b32.xlu0 %v2077, 32
        %v2696 = vpop.permute.xlu0 %2695
        %2697 = vrot.lane.b32.xlu0 %v2080, 32
        %v2698 = vpop.permute.xlu0 %2697
        %2699 = vrot.lane.b32.xlu0 %v2085, 32
        %v2700 = vpop.permute.xlu0 %2699
        %2701 = vrot.lane.b32.xlu0 %v2088, 32
        %v2702 = vpop.permute.xlu0 %2701
        %2719 = vrot.lane.b32.xlu0 %v2355, 64
        %v2720 = vpop.permute.xlu0 %2719
        %2721 = vrot.lane.b32.xlu0 %v2358, 64
        %v2722 = vpop.permute.xlu0 %2721
        %2723 = vrot.lane.b32.xlu0 %v2363, 64
        %v2724 = vpop.permute.xlu0 %2723
        %2725 = vrot.lane.b32.xlu0 %v2366, 64
        %v2726 = vpop.permute.xlu0 %2725
        %2727 = vrot.lane.b32.xlu0 %v2371, 64
        %v2728 = vpop.permute.xlu0 %2727
        %2729 = vrot.lane.b32.xlu0 %v2374, 64
        %v2730 = vpop.permute.xlu0 %2729
        %2731 = vrot.lane.b32.xlu0 %v2379, 64
        %v2732 = vpop.permute.xlu0 %2731
        %2733 = vrot.lane.b32.xlu0 %v2382, 64
        %v2734 = vpop.permute.xlu0 %2733
        %2751 = vrot.lane.b32.xlu0 %v2649, 96
        %v2752 = vpop.permute.xlu0 %2751
        %2753 = vrot.lane.b32.xlu0 %v2652, 96
        %v2754 = vpop.permute.xlu0 %2753
        %2755 = vrot.lane.b32.xlu0 %v2657, 96
        %v2756 = vpop.permute.xlu0 %2755
        %2757 = vrot.lane.b32.xlu0 %v2660, 96
        %v2758 = vpop.permute.xlu0 %2757
        %2759 = vrot.lane.b32.xlu0 %v2665, 96
        %v2760 = vpop.permute.xlu0 %2759
        %2761 = vrot.lane.b32.xlu0 %v2668, 96
        %v2762 = vpop.permute.xlu0 %2761
        %2763 = vrot.lane.b32.xlu0 %v2673, 96
        %v2764 = vpop.permute.xlu0 %2763
        %2765 = vrot.lane.b32.xlu0 %v2676, 96
        %v2766 = vpop.permute.xlu0 %2765
        %v2775 = vsel %vm1517, %v1755, %v2688
        %v2776 = vsel %vm1517, %v1758, %v2690
        %v2777 = vsel %vm1517, %v1763, %v2692
        %v2778 = vsel %vm1517, %v1766, %v2694
        %v2779 = vsel %vm1517, %v1771, %v2696
        %v2780 = vsel %vm1517, %v1774, %v2698
        %v2781 = vsel %vm1517, %v1779, %v2700
        %v2782 = vsel %vm1517, %v1782, %v2702
        %v2783 = vsel %vm1615, %v2775, %v2720
        %v2784 = vsel %vm1615, %v2776, %v2722
        %v2785 = vsel %vm1615, %v2777, %v2724
        %v2786 = vsel %vm1615, %v2778, %v2726
        %v2787 = vsel %vm1615, %v2779, %v2728
        %v2788 = vsel %vm1615, %v2780, %v2730
        %v2789 = vsel %vm1615, %v2781, %v2732
        %v2790 = vsel %vm1615, %v2782, %v2734
        %vm2791 = vcmask 785408
        %v2792 = vsel %vm2791, %v2783, %v2752
        %v2793 = vsel %vm2791, %v2784, %v2754
        %v2794 = vsel %vm2791, %v2785, %v2756
        %v2795 = vsel %vm2791, %v2786, %v2758
        %v2796 = vsel %vm2791, %v2787, %v2760
        %v2797 = vsel %vm2791, %v2788, %v2762
        %v2798 = vsel %vm2791, %v2789, %v2764
        %v2799 = vsel %vm2791, %v2790, %v2766
        %v2801 = vsel %vm1517, %v1505, 0
        %v2804 = vsel %vm1517, %v1508, 0
        %v2807 = vsel %vm1517, %v1511, 0
        %v2810 = vsel %vm1517, %v1514, 0
        %v2813 = vsel %vm1517, %v1506, 0
        %v2816 = vsel %vm1517, %v1509, 0
        %v2819 = vsel %vm1517, %v1512, 0
        %v2822 = vsel %vm1517, %v1515, 0
        %2824 = vmatprep.subr.bf16.mxu0 0
        %2825 = vmatpush1.bf16.xpose.msra.mxu0 %v2813
        %2826 = vmatprep.subr.bf16.mxu0 0
        %2827 = vmatpush1.bf16.xpose.msra.mxu0 %v2816
        %2828 = vmatprep.subr.bf16.mxu0 0
        %2829 = vmatpush1.bf16.xpose.msra.mxu0 %v2819
        %2830 = vmatprep.subr.bf16.mxu0 0
        %2831 = vmatpush1.bf16.xpose.msra.mxu0 %v2822
        %2832 = vmatprep.subr.bf16.mxu0 0
        %2833 = vmatpush1.bf16.xpose.msra.mxu0 0
        %2834 = vmatprep.subr.bf16.mxu0 0
        %2835 = vmatpush1.bf16.xpose.msra.mxu0 0
        %2836 = vmatprep.subr.bf16.mxu0 0
        %2837 = vmatpush1.bf16.xpose.msra.mxu0 0
        %2838 = vmatprep.subr.bf16.mxu0 0
        %2839 = vmatpush1.bf16.xpose.msra.mxu0 0
        %2840 = vmatprep.subr.bf16.mxu0 0
        %2841 = vmatpush1.bf16.xpose.msra.mxu0 0
        %2842 = vmatprep.subr.bf16.mxu0 0
        %2843 = vmatpush1.bf16.xpose.msra.mxu0 0
        %2844 = vmatprep.subr.bf16.mxu0 0
        %2845 = vmatpush1.bf16.xpose.msra.mxu0 0
        %2846 = vmatprep.subr.bf16.mxu0 0
        %2847 = vmatpush1.bf16.xpose.msra.mxu0 0
        %2848 = vmatprep.subr.bf16.mxu0 0
        %2849 = vmatpush1.bf16.xpose.msra.mxu0 0
        %2850 = vmatprep.subr.bf16.mxu0 0
        %2851 = vmatpush1.bf16.xpose.msra.mxu0 0
        %2852 = vmatprep.subr.bf16.mxu0 0
        %2853 = vmatpush1.bf16.xpose.msra.mxu0 0
        %2854 = vmatprep.subr.bf16.mxu0 0
        %2855 = vmatpush1.bf16.xpose.msra.mxu0 0
        %2856 = vmatprep.mubr.bf16.mxu0 0
        %2857 = vmatmul.mubr.bf16.gmra.mrb[0].mxu0 %v2801
        %v2858 = vpop.f32.mrb[0].mxu0
        %v2859 = vadd.f32 0.0, %v2858
        %v2860 = vpop.f32.mrb[0].mxu0
        %v2861 = vpop.f32.mrb[0].mxu0
        %v2862 = vadd.f32 0.0, %v2861
        %v2863 = vpop.f32.mrb[0].mxu0
        %2864 = vmatprep.mubr.bf16.mxu0 0
        %2865 = vmatmul.mubr.bf16.gmra.mrb[0].mxu0 %v2804
        %v2866 = vpop.f32.mrb[0].mxu0
        %v2867 = vadd.f32 0.0, %v2866
        %v2868 = vpop.f32.mrb[0].mxu0
        %v2869 = vpop.f32.mrb[0].mxu0
        %v2870 = vadd.f32 0.0, %v2869
        %v2871 = vpop.f32.mrb[0].mxu0
        %2872 = vmatprep.mubr.bf16.mxu0 0
        %2873 = vmatmul.mubr.bf16.gmra.mrb[0].mxu0 %v2807
        %v2874 = vpop.f32.mrb[0].mxu0
        %v2875 = vadd.f32 0.0, %v2874
        %v2876 = vpop.f32.mrb[0].mxu0
        %v2877 = vpop.f32.mrb[0].mxu0
        %v2878 = vadd.f32 0.0, %v2877
        %v2879 = vpop.f32.mrb[0].mxu0
        %2880 = vmatprep.mubr.bf16.mxu0 0
        %2881 = vmatmul.mubr.bf16.gmra.mrb[0].mxu0 %v2810
        %v2882 = vpop.f32.mrb[0].mxu0
        %v2883 = vadd.f32 0.0, %v2882
        %v2884 = vpop.f32.mrb[0].mxu0
        %v2885 = vpop.f32.mrb[0].mxu0
        %v2886 = vadd.f32 0.0, %v2885
        %v2887 = vpop.f32.mrb[0].mxu0
        %2888 = vdwg.mxu0
        %v2889 = vmul.f32 %v2859, 0.17677669
        %v2890 = vmul.f32 %v2862, 0.17677669
        %v2891 = vmul.f32 %v2867, 0.17677669
        %v2892 = vmul.f32 %v2870, 0.17677669
        %v2893 = vmul.f32 %v2875, 0.17677669
        %v2894 = vmul.f32 %v2878, 0.17677669
        %v2895 = vmul.f32 %v2883, 0.17677669
        %v2896 = vmul.f32 %v2886, 0.17677669
        %v2897 = vsel %vm1615, %v2889, -inf
        %2898 = vmax.xlane.f32.xlu0 %v2897
        %v2899 = vpop.xlane.xlu0 %2898
        %v2900 = vsel %vm1615, %v2890, -inf
        %2901 = vmax.xlane.f32.xlu0 %v2900
        %v2902 = vpop.xlane.xlu0 %2901
        %v2903 = vsel %vm1615, %v2891, -inf
        %2904 = vmax.xlane.f32.xlu0 %v2903
        %v2905 = vpop.xlane.xlu0 %2904
        %v2906 = vsel %vm1615, %v2892, -inf
        %2907 = vmax.xlane.f32.xlu0 %v2906
        %v2908 = vpop.xlane.xlu0 %2907
        %v2909 = vsel %vm1615, %v2893, -inf
        %2910 = vmax.xlane.f32.xlu0 %v2909
        %v2911 = vpop.xlane.xlu0 %2910
        %v2912 = vsel %vm1615, %v2894, -inf
        %2913 = vmax.xlane.f32.xlu0 %v2912
        %v2914 = vpop.xlane.xlu0 %2913
        %v2915 = vsel %vm1615, %v2895, -inf
        %2916 = vmax.xlane.f32.xlu0 %v2915
        %v2917 = vpop.xlane.xlu0 %2916
        %v2918 = vsel %vm1615, %v2896, -inf
        %2919 = vmax.xlane.f32.xlu0 %v2918
        %v2920 = vpop.xlane.xlu0 %2919
        %v2921 = vsub.f32 %v2889, %v2899
        %v2922 = vsub.f32 %v2890, %v2902
        %v2923 = vsub.f32 %v2891, %v2905
        %v2924 = vsub.f32 %v2892, %v2908
        %v2925 = vsub.f32 %v2893, %v2911
        %v2926 = vsub.f32 %v2894, %v2914
        %v2927 = vsub.f32 %v2895, %v2917
        %v2928 = vsub.f32 %v2896, %v2920
        %v2929 = vmul.f32 %v2921, 1.442695
        %v2930 = vpow.pop %v2929
        %v2931 = vmul.f32 %v2922, 1.442695
        %v2932 = vpow.pop %v2931
        %v2933 = vmul.f32 %v2923, 1.442695
        %v2934 = vpow.pop %v2933
        %v2935 = vmul.f32 %v2924, 1.442695
        %v2936 = vpow.pop %v2935
        %v2937 = vmul.f32 %v2925, 1.442695
        %v2938 = vpow.pop %v2937
        %v2939 = vmul.f32 %v2926, 1.442695
        %v2940 = vpow.pop %v2939
        %v2941 = vmul.f32 %v2927, 1.442695
        %v2942 = vpow.pop %v2941
        %v2943 = vmul.f32 %v2928, 1.442695
        %v2944 = vpow.pop %v2943
        %v2945 = vsel %vm1615, %v2930, 0.0
        %2946 = vadd.xlane.f32.xlu0 %v2945
        %v2947 = vpop.xlane.xlu0 %2946
        %v2948 = vsel %vm1615, %v2932, 0.0
        %2949 = vadd.xlane.f32.xlu0 %v2948
        %v2950 = vpop.xlane.xlu0 %2949
        %v2951 = vsel %vm1615, %v2934, 0.0
        %2952 = vadd.xlane.f32.xlu0 %v2951
        %v2953 = vpop.xlane.xlu0 %2952
        %v2954 = vsel %vm1615, %v2936, 0.0
        %2955 = vadd.xlane.f32.xlu0 %v2954
        %v2956 = vpop.xlane.xlu0 %2955
        %v2957 = vsel %vm1615, %v2938, 0.0
        %2958 = vadd.xlane.f32.xlu0 %v2957
        %v2959 = vpop.xlane.xlu0 %2958
        %v2960 = vsel %vm1615, %v2940, 0.0
        %2961 = vadd.xlane.f32.xlu0 %v2960
        %v2962 = vpop.xlane.xlu0 %2961
        %v2963 = vsel %vm1615, %v2942, 0.0
        %2964 = vadd.xlane.f32.xlu0 %v2963
        %v2965 = vpop.xlane.xlu0 %2964
        %v2966 = vsel %vm1615, %v2944, 0.0
        %2967 = vadd.xlane.f32.xlu0 %v2966
        %v2968 = vpop.xlane.xlu0 %2967
        %v2969 = vrcp.pop %v2947
        %v2970 = vrcp.pop %v2950
        %v2971 = vrcp.pop %v2953
        %v2972 = vrcp.pop %v2956
        %v2973 = vrcp.pop %v2959
        %v2974 = vrcp.pop %v2962
        %v2975 = vrcp.pop %v2965
        %v2976 = vrcp.pop %v2968
        %v2977 = vmul.f32 %v2930, %v2969
        %v2978 = vmul.f32 %v2932, %v2970
        %v2979 = vmul.f32 %v2934, %v2971
        %v2980 = vmul.f32 %v2936, %v2972
        %v2981 = vmul.f32 %v2938, %v2973
        %v2982 = vmul.f32 %v2940, %v2974
        %v2983 = vmul.f32 %v2942, %v2975
        %v2984 = vmul.f32 %v2944, %v2976
        %v2985 = vpack.c.bf16 %v2978, %v2977
        %v2986 = vpack.c.bf16 %v2980, %v2979
        %v2987 = vpack.c.bf16 %v2982, %v2981
        %v2988 = vpack.c.bf16 %v2984, %v2983
        %v2990 = vsel %vm1615, %v2985, 0
        %v2993 = vsel %vm1615, %v2986, 0
        %v2996 = vsel %vm1615, %v2987, 0
        %v2999 = vsel %vm1615, %v2988, 0
        %3001 = vmatprep.subr.bf16.mxu0 0
        %3002 = vmatpush1.bf16.msra.mxu0 %v1507
        %3003 = vmatprep.subr.bf16.mxu0 0
        %3004 = vmatpush1.bf16.msra.mxu0 %v1510
        %3005 = vmatprep.subr.bf16.mxu0 0
        %3006 = vmatpush1.bf16.msra.mxu0 %v1513
        %3007 = vmatprep.subr.bf16.mxu0 0
        %3008 = vmatpush1.bf16.msra.mxu0 %v1516
        %3009 = vmatprep.subr.bf16.mxu0 0
        %3010 = vmatpush1.bf16.msra.mxu0 0
        %3011 = vmatprep.subr.bf16.mxu0 0
        %3012 = vmatpush1.bf16.msra.mxu0 0
        %3013 = vmatprep.subr.bf16.mxu0 0
        %3014 = vmatpush1.bf16.msra.mxu0 0
        %3015 = vmatprep.subr.bf16.mxu0 0
        %3016 = vmatpush1.bf16.msra.mxu0 0
        %3017 = vmatprep.subr.bf16.mxu0 0
        %3018 = vmatpush1.bf16.msra.mxu0 0
        %3019 = vmatprep.subr.bf16.mxu0 0
        %3020 = vmatpush1.bf16.msra.mxu0 0
        %3021 = vmatprep.subr.bf16.mxu0 0
        %3022 = vmatpush1.bf16.msra.mxu0 0
        %3023 = vmatprep.subr.bf16.mxu0 0
        %3024 = vmatpush1.bf16.msra.mxu0 0
        %3025 = vmatprep.subr.bf16.mxu0 0
        %3026 = vmatpush1.bf16.msra.mxu0 0
        %3027 = vmatprep.subr.bf16.mxu0 0
        %3028 = vmatpush1.bf16.msra.mxu0 0
        %3029 = vmatprep.subr.bf16.mxu0 0
        %3030 = vmatpush1.bf16.msra.mxu0 0
        %3031 = vmatprep.subr.bf16.mxu0 0
        %3032 = vmatpush1.bf16.msra.mxu0 0
        %3033 = vmatprep.mubr.bf16.mxu0 0
        %3034 = vmatmul.mubr.bf16.gmra.mrb[0].mxu0 %v2990
        %v3035 = vpop.f32.mrb[0].mxu0
        %v3036 = vadd.f32 0.0, %v3035
        %v3037 = vpop.f32.mrb[0].mxu0
        %v3038 = vpop.f32.mrb[0].mxu0
        %v3039 = vadd.f32 0.0, %v3038
        %v3040 = vpop.f32.mrb[0].mxu0
        %3041 = vmatprep.mubr.bf16.mxu0 0
        %3042 = vmatmul.mubr.bf16.gmra.mrb[0].mxu0 %v2993
        %v3043 = vpop.f32.mrb[0].mxu0
        %v3044 = vadd.f32 0.0, %v3043
        %v3045 = vpop.f32.mrb[0].mxu0
        %v3046 = vpop.f32.mrb[0].mxu0
        %v3047 = vadd.f32 0.0, %v3046
        %v3048 = vpop.f32.mrb[0].mxu0
        %3049 = vmatprep.mubr.bf16.mxu0 0
        %3050 = vmatmul.mubr.bf16.gmra.mrb[0].mxu0 %v2996
        %v3051 = vpop.f32.mrb[0].mxu0
        %v3052 = vadd.f32 0.0, %v3051
        %v3053 = vpop.f32.mrb[0].mxu0
        %v3054 = vpop.f32.mrb[0].mxu0
        %v3055 = vadd.f32 0.0, %v3054
        %v3056 = vpop.f32.mrb[0].mxu0
        %3057 = vmatprep.mubr.bf16.mxu0 0
        %3058 = vmatmul.mubr.bf16.gmra.mrb[0].mxu0 %v2999
        %v3059 = vpop.f32.mrb[0].mxu0
        %v3060 = vadd.f32 0.0, %v3059
        %v3061 = vpop.f32.mrb[0].mxu0
        %v3062 = vpop.f32.mrb[0].mxu0
        %v3063 = vadd.f32 0.0, %v3062
        %v3064 = vpop.f32.mrb[0].mxu0
        %3065 = vdwg.mxu0
        %3070 = vrot.lane.b32.xlu0 %v1505, 96
        %v3071 = vpop.permute.xlu0 %3070
        %3072 = vrot.lane.b32.xlu0 %v1508, 96
        %v3073 = vpop.permute.xlu0 %3072
        %3074 = vrot.lane.b32.xlu0 %v1511, 96
        %v3075 = vpop.permute.xlu0 %3074
        %3076 = vrot.lane.b32.xlu0 %v1514, 96
        %v3077 = vpop.permute.xlu0 %3076
        %3082 = vrot.lane.b32.xlu0 %v1506, 96
        %v3083 = vpop.permute.xlu0 %3082
        %3084 = vrot.lane.b32.xlu0 %v1509, 96
        %v3085 = vpop.permute.xlu0 %3084
        %3086 = vrot.lane.b32.xlu0 %v1512, 96
        %v3087 = vpop.permute.xlu0 %3086
        %3088 = vrot.lane.b32.xlu0 %v1515, 96
        %v3089 = vpop.permute.xlu0 %3088
        %v3091 = vsel %vm1517, %v3071, 0
        %v3094 = vsel %vm1517, %v3073, 0
        %v3097 = vsel %vm1517, %v3075, 0
        %v3100 = vsel %vm1517, %v3077, 0
        %v3103 = vsel %vm1517, %v3083, 0
        %v3106 = vsel %vm1517, %v3085, 0
        %v3109 = vsel %vm1517, %v3087, 0
        %v3112 = vsel %vm1517, %v3089, 0
        %3114 = vmatprep.subr.bf16.mxu0 0
        %3115 = vmatpush1.bf16.xpose.msra.mxu0 %v3103
        %3116 = vmatprep.subr.bf16.mxu0 0
        %3117 = vmatpush1.bf16.xpose.msra.mxu0 %v3106
        %3118 = vmatprep.subr.bf16.mxu0 0
        %3119 = vmatpush1.bf16.xpose.msra.mxu0 %v3109
        %3120 = vmatprep.subr.bf16.mxu0 0
        %3121 = vmatpush1.bf16.xpose.msra.mxu0 %v3112
        %3122 = vmatprep.subr.bf16.mxu0 0
        %3123 = vmatpush1.bf16.xpose.msra.mxu0 0
        %3124 = vmatprep.subr.bf16.mxu0 0
        %3125 = vmatpush1.bf16.xpose.msra.mxu0 0
        %3126 = vmatprep.subr.bf16.mxu0 0
        %3127 = vmatpush1.bf16.xpose.msra.mxu0 0
        %3128 = vmatprep.subr.bf16.mxu0 0
        %3129 = vmatpush1.bf16.xpose.msra.mxu0 0
        %3130 = vmatprep.subr.bf16.mxu0 0
        %3131 = vmatpush1.bf16.xpose.msra.mxu0 0
        %3132 = vmatprep.subr.bf16.mxu0 0
        %3133 = vmatpush1.bf16.xpose.msra.mxu0 0
        %3134 = vmatprep.subr.bf16.mxu0 0
        %3135 = vmatpush1.bf16.xpose.msra.mxu0 0
        %3136 = vmatprep.subr.bf16.mxu0 0
        %3137 = vmatpush1.bf16.xpose.msra.mxu0 0
        %3138 = vmatprep.subr.bf16.mxu0 0
        %3139 = vmatpush1.bf16.xpose.msra.mxu0 0
        %3140 = vmatprep.subr.bf16.mxu0 0
        %3141 = vmatpush1.bf16.xpose.msra.mxu0 0
        %3142 = vmatprep.subr.bf16.mxu0 0
        %3143 = vmatpush1.bf16.xpose.msra.mxu0 0
        %3144 = vmatprep.subr.bf16.mxu0 0
        %3145 = vmatpush1.bf16.xpose.msra.mxu0 0
        %3146 = vmatprep.mubr.bf16.mxu0 0
        %3147 = vmatmul.mubr.bf16.gmra.mrb[0].mxu0 %v3091
        %v3148 = vpop.f32.mrb[0].mxu0
        %v3149 = vadd.f32 0.0, %v3148
        %v3150 = vpop.f32.mrb[0].mxu0
        %v3151 = vpop.f32.mrb[0].mxu0
        %v3152 = vadd.f32 0.0, %v3151
        %v3153 = vpop.f32.mrb[0].mxu0
        %3154 = vmatprep.mubr.bf16.mxu0 0
        %3155 = vmatmul.mubr.bf16.gmra.mrb[0].mxu0 %v3094
        %v3156 = vpop.f32.mrb[0].mxu0
        %v3157 = vadd.f32 0.0, %v3156
        %v3158 = vpop.f32.mrb[0].mxu0
        %v3159 = vpop.f32.mrb[0].mxu0
        %v3160 = vadd.f32 0.0, %v3159
        %v3161 = vpop.f32.mrb[0].mxu0
        %3162 = vmatprep.mubr.bf16.mxu0 0
        %3163 = vmatmul.mubr.bf16.gmra.mrb[0].mxu0 %v3097
        %v3164 = vpop.f32.mrb[0].mxu0
        %v3165 = vadd.f32 0.0, %v3164
        %v3166 = vpop.f32.mrb[0].mxu0
        %v3167 = vpop.f32.mrb[0].mxu0
        %v3168 = vadd.f32 0.0, %v3167
        %v3169 = vpop.f32.mrb[0].mxu0
        %3170 = vmatprep.mubr.bf16.mxu0 0
        %3171 = vmatmul.mubr.bf16.gmra.mrb[0].mxu0 %v3100
        %v3172 = vpop.f32.mrb[0].mxu0
        %v3173 = vadd.f32 0.0, %v3172
        %v3174 = vpop.f32.mrb[0].mxu0
        %v3175 = vpop.f32.mrb[0].mxu0
        %v3176 = vadd.f32 0.0, %v3175
        %v3177 = vpop.f32.mrb[0].mxu0
        %3178 = vdwg.mxu0
        %v3179 = vmul.f32 %v3149, 0.17677669
        %v3180 = vmul.f32 %v3152, 0.17677669
        %v3181 = vmul.f32 %v3157, 0.17677669
        %v3182 = vmul.f32 %v3160, 0.17677669
        %v3183 = vmul.f32 %v3165, 0.17677669
        %v3184 = vmul.f32 %v3168, 0.17677669
        %v3185 = vmul.f32 %v3173, 0.17677669
        %v3186 = vmul.f32 %v3176, 0.17677669
        %v3187 = vsel %vm1615, %v3179, -inf
        %3188 = vmax.xlane.f32.xlu0 %v3187
        %v3189 = vpop.xlane.xlu0 %3188
        %v3190 = vsel %vm1615, %v3180, -inf
        %3191 = vmax.xlane.f32.xlu0 %v3190
        %v3192 = vpop.xlane.xlu0 %3191
        %v3193 = vsel %vm1615, %v3181, -inf
        %3194 = vmax.xlane.f32.xlu0 %v3193
        %v3195 = vpop.xlane.xlu0 %3194
        %v3196 = vsel %vm1615, %v3182, -inf
        %3197 = vmax.xlane.f32.xlu0 %v3196
        %v3198 = vpop.xlane.xlu0 %3197
        %v3199 = vsel %vm1615, %v3183, -inf
        %3200 = vmax.xlane.f32.xlu0 %v3199
        %v3201 = vpop.xlane.xlu0 %3200
        %v3202 = vsel %vm1615, %v3184, -inf
        %3203 = vmax.xlane.f32.xlu0 %v3202
        %v3204 = vpop.xlane.xlu0 %3203
        %v3205 = vsel %vm1615, %v3185, -inf
        %3206 = vmax.xlane.f32.xlu0 %v3205
        %v3207 = vpop.xlane.xlu0 %3206
        %v3208 = vsel %vm1615, %v3186, -inf
        %3209 = vmax.xlane.f32.xlu0 %v3208
        %v3210 = vpop.xlane.xlu0 %3209
        %v3211 = vsub.f32 %v3179, %v3189
        %v3212 = vsub.f32 %v3180, %v3192
        %v3213 = vsub.f32 %v3181, %v3195
        %v3214 = vsub.f32 %v3182, %v3198
        %v3215 = vsub.f32 %v3183, %v3201
        %v3216 = vsub.f32 %v3184, %v3204
        %v3217 = vsub.f32 %v3185, %v3207
        %v3218 = vsub.f32 %v3186, %v3210
        %v3219 = vmul.f32 %v3211, 1.442695
        %v3220 = vpow.pop %v3219
        %v3221 = vmul.f32 %v3212, 1.442695
        %v3222 = vpow.pop %v3221
        %v3223 = vmul.f32 %v3213, 1.442695
        %v3224 = vpow.pop %v3223
        %v3225 = vmul.f32 %v3214, 1.442695
        %v3226 = vpow.pop %v3225
        %v3227 = vmul.f32 %v3215, 1.442695
        %v3228 = vpow.pop %v3227
        %v3229 = vmul.f32 %v3216, 1.442695
        %v3230 = vpow.pop %v3229
        %v3231 = vmul.f32 %v3217, 1.442695
        %v3232 = vpow.pop %v3231
        %v3233 = vmul.f32 %v3218, 1.442695
        %v3234 = vpow.pop %v3233
        %v3235 = vsel %vm1615, %v3220, 0.0
        %3236 = vadd.xlane.f32.xlu0 %v3235
        %v3237 = vpop.xlane.xlu0 %3236
        %v3238 = vsel %vm1615, %v3222, 0.0
        %3239 = vadd.xlane.f32.xlu0 %v3238
        %v3240 = vpop.xlane.xlu0 %3239
        %v3241 = vsel %vm1615, %v3224, 0.0
        %3242 = vadd.xlane.f32.xlu0 %v3241
        %v3243 = vpop.xlane.xlu0 %3242
        %v3244 = vsel %vm1615, %v3226, 0.0
        %3245 = vadd.xlane.f32.xlu0 %v3244
        %v3246 = vpop.xlane.xlu0 %3245
        %v3247 = vsel %vm1615, %v3228, 0.0
        %3248 = vadd.xlane.f32.xlu0 %v3247
        %v3249 = vpop.xlane.xlu0 %3248
        %v3250 = vsel %vm1615, %v3230, 0.0
        %3251 = vadd.xlane.f32.xlu0 %v3250
        %v3252 = vpop.xlane.xlu0 %3251
        %v3253 = vsel %vm1615, %v3232, 0.0
        %3254 = vadd.xlane.f32.xlu0 %v3253
        %v3255 = vpop.xlane.xlu0 %3254
        %v3256 = vsel %vm1615, %v3234, 0.0
        %3257 = vadd.xlane.f32.xlu0 %v3256
        %v3258 = vpop.xlane.xlu0 %3257
        %v3259 = vrcp.pop %v3237
        %v3260 = vrcp.pop %v3240
        %v3261 = vrcp.pop %v3243
        %v3262 = vrcp.pop %v3246
        %v3263 = vrcp.pop %v3249
        %v3264 = vrcp.pop %v3252
        %v3265 = vrcp.pop %v3255
        %v3266 = vrcp.pop %v3258
        %v3267 = vmul.f32 %v3220, %v3259
        %v3268 = vmul.f32 %v3222, %v3260
        %v3269 = vmul.f32 %v3224, %v3261
        %v3270 = vmul.f32 %v3226, %v3262
        %v3271 = vmul.f32 %v3228, %v3263
        %v3272 = vmul.f32 %v3230, %v3264
        %v3273 = vmul.f32 %v3232, %v3265
        %v3274 = vmul.f32 %v3234, %v3266
        %v3275 = vpack.c.bf16 %v3268, %v3267
        %v3276 = vpack.c.bf16 %v3270, %v3269
        %v3277 = vpack.c.bf16 %v3272, %v3271
        %v3278 = vpack.c.bf16 %v3274, %v3273
        %3283 = vrot.lane.b32.xlu0 %v1507, 96
        %v3284 = vpop.permute.xlu0 %3283
        %3285 = vrot.lane.b32.xlu0 %v1510, 96
        %v3286 = vpop.permute.xlu0 %3285
        %3287 = vrot.lane.b32.xlu0 %v1513, 96
        %v3288 = vpop.permute.xlu0 %3287
        %3289 = vrot.lane.b32.xlu0 %v1516, 96
        %v3290 = vpop.permute.xlu0 %3289
        %v3296 = vsel %vm1615, %v3275, 0
        %v3299 = vsel %vm1615, %v3276, 0
        %v3302 = vsel %vm1615, %v3277, 0
        %v3305 = vsel %vm1615, %v3278, 0
        %3307 = vmatprep.subr.bf16.mxu0 0
        %3308 = vmatpush1.bf16.msra.mxu0 %v3284
        %3309 = vmatprep.subr.bf16.mxu0 0
        %3310 = vmatpush1.bf16.msra.mxu0 %v3286
        %3311 = vmatprep.subr.bf16.mxu0 0
        %3312 = vmatpush1.bf16.msra.mxu0 %v3288
        %3313 = vmatprep.subr.bf16.mxu0 0
        %3314 = vmatpush1.bf16.msra.mxu0 %v3290
        %3315 = vmatprep.subr.bf16.mxu0 0
        %3316 = vmatpush1.bf16.msra.mxu0 0
        %3317 = vmatprep.subr.bf16.mxu0 0
        %3318 = vmatpush1.bf16.msra.mxu0 0
        %3319 = vmatprep.subr.bf16.mxu0 0
        %3320 = vmatpush1.bf16.msra.mxu0 0
        %3321 = vmatprep.subr.bf16.mxu0 0
        %3322 = vmatpush1.bf16.msra.mxu0 0
        %3323 = vmatprep.subr.bf16.mxu0 0
        %3324 = vmatpush1.bf16.msra.mxu0 0
        %3325 = vmatprep.subr.bf16.mxu0 0
        %3326 = vmatpush1.bf16.msra.mxu0 0
        %3327 = vmatprep.subr.bf16.mxu0 0
        %3328 = vmatpush1.bf16.msra.mxu0 0
        %3329 = vmatprep.subr.bf16.mxu0 0
        %3330 = vmatpush1.bf16.msra.mxu0 0
        %3331 = vmatprep.subr.bf16.mxu0 0
        %3332 = vmatpush1.bf16.msra.mxu0 0
        %3333 = vmatprep.subr.bf16.mxu0 0
        %3334 = vmatpush1.bf16.msra.mxu0 0
        %3335 = vmatprep.subr.bf16.mxu0 0
        %3336 = vmatpush1.bf16.msra.mxu0 0
        %3337 = vmatprep.subr.bf16.mxu0 0
        %3338 = vmatpush1.bf16.msra.mxu0 0
        %3339 = vmatprep.mubr.bf16.mxu0 0
        %3340 = vmatmul.mubr.bf16.gmra.mrb[0].mxu0 %v3296
        %v3341 = vpop.f32.mrb[0].mxu0
        %v3342 = vadd.f32 0.0, %v3341
        %v3343 = vpop.f32.mrb[0].mxu0
        %v3344 = vpop.f32.mrb[0].mxu0
        %v3345 = vadd.f32 0.0, %v3344
        %v3346 = vpop.f32.mrb[0].mxu0
        %3347 = vmatprep.mubr.bf16.mxu0 0
        %3348 = vmatmul.mubr.bf16.gmra.mrb[0].mxu0 %v3299
        %v3349 = vpop.f32.mrb[0].mxu0
        %v3350 = vadd.f32 0.0, %v3349
        %v3351 = vpop.f32.mrb[0].mxu0
        %v3352 = vpop.f32.mrb[0].mxu0
        %v3353 = vadd.f32 0.0, %v3352
        %v3354 = vpop.f32.mrb[0].mxu0
        %3355 = vmatprep.mubr.bf16.mxu0 0
        %3356 = vmatmul.mubr.bf16.gmra.mrb[0].mxu0 %v3302
        %v3357 = vpop.f32.mrb[0].mxu0
        %v3358 = vadd.f32 0.0, %v3357
        %v3359 = vpop.f32.mrb[0].mxu0
        %v3360 = vpop.f32.mrb[0].mxu0
        %v3361 = vadd.f32 0.0, %v3360
        %v3362 = vpop.f32.mrb[0].mxu0
        %3363 = vmatprep.mubr.bf16.mxu0 0
        %3364 = vmatmul.mubr.bf16.gmra.mrb[0].mxu0 %v3305
        %v3365 = vpop.f32.mrb[0].mxu0
        %v3366 = vadd.f32 0.0, %v3365
        %v3367 = vpop.f32.mrb[0].mxu0
        %v3368 = vpop.f32.mrb[0].mxu0
        %v3369 = vadd.f32 0.0, %v3368
        %v3370 = vpop.f32.mrb[0].mxu0
        %3371 = vdwg.mxu0
        %3372 = vrot.lane.b32.xlu0 %v1505, 64
        %v3373 = vpop.permute.xlu0 %3372
        %3374 = vrot.lane.b32.xlu0 %v1508, 64
        %v3375 = vpop.permute.xlu0 %3374
        %3376 = vrot.lane.b32.xlu0 %v1511, 64
        %v3377 = vpop.permute.xlu0 %3376
        %3378 = vrot.lane.b32.xlu0 %v1514, 64
        %v3379 = vpop.permute.xlu0 %3378
        %3380 = vrot.lane.b32.xlu0 %v1506, 64
        %v3381 = vpop.permute.xlu0 %3380
        %3382 = vrot.lane.b32.xlu0 %v1509, 64
        %v3383 = vpop.permute.xlu0 %3382
        %3384 = vrot.lane.b32.xlu0 %v1512, 64
        %v3385 = vpop.permute.xlu0 %3384
        %3386 = vrot.lane.b32.xlu0 %v1515, 64
        %v3387 = vpop.permute.xlu0 %3386
        %v3389 = vsel %vm1517, %v3373, 0
        %v3392 = vsel %vm1517, %v3375, 0
        %v3395 = vsel %vm1517, %v3377, 0
        %v3398 = vsel %vm1517, %v3379, 0
        %v3401 = vsel %vm1517, %v3381, 0
        %v3404 = vsel %vm1517, %v3383, 0
        %v3407 = vsel %vm1517, %v3385, 0
        %v3410 = vsel %vm1517, %v3387, 0
        %3412 = vmatprep.subr.bf16.mxu0 0
        %3413 = vmatpush1.bf16.xpose.msra.mxu0 %v3401
        %3414 = vmatprep.subr.bf16.mxu0 0
        %3415 = vmatpush1.bf16.xpose.msra.mxu0 %v3404
        %3416 = vmatprep.subr.bf16.mxu0 0
        %3417 = vmatpush1.bf16.xpose.msra.mxu0 %v3407
        %3418 = vmatprep.subr.bf16.mxu0 0
        %3419 = vmatpush1.bf16.xpose.msra.mxu0 %v3410
        %3420 = vmatprep.subr.bf16.mxu0 0
        %3421 = vmatpush1.bf16.xpose.msra.mxu0 0
        %3422 = vmatprep.subr.bf16.mxu0 0
        %3423 = vmatpush1.bf16.xpose.msra.mxu0 0
        %3424 = vmatprep.subr.bf16.mxu0 0
        %3425 = vmatpush1.bf16.xpose.msra.mxu0 0
        %3426 = vmatprep.subr.bf16.mxu0 0
        %3427 = vmatpush1.bf16.xpose.msra.mxu0 0
        %3428 = vmatprep.subr.bf16.mxu0 0
        %3429 = vmatpush1.bf16.xpose.msra.mxu0 0
        %3430 = vmatprep.subr.bf16.mxu0 0
        %3431 = vmatpush1.bf16.xpose.msra.mxu0 0
        %3432 = vmatprep.subr.bf16.mxu0 0
        %3433 = vmatpush1.bf16.xpose.msra.mxu0 0
        %3434 = vmatprep.subr.bf16.mxu0 0
        %3435 = vmatpush1.bf16.xpose.msra.mxu0 0
        %3436 = vmatprep.subr.bf16.mxu0 0
        %3437 = vmatpush1.bf16.xpose.msra.mxu0 0
        %3438 = vmatprep.subr.bf16.mxu0 0
        %3439 = vmatpush1.bf16.xpose.msra.mxu0 0
        %3440 = vmatprep.subr.bf16.mxu0 0
        %3441 = vmatpush1.bf16.xpose.msra.mxu0 0
        %3442 = vmatprep.subr.bf16.mxu0 0
        %3443 = vmatpush1.bf16.xpose.msra.mxu0 0
        %3444 = vmatprep.mubr.bf16.mxu0 0
        %3445 = vmatmul.mubr.bf16.gmra.mrb[0].mxu0 %v3389
        %v3446 = vpop.f32.mrb[0].mxu0
        %v3447 = vadd.f32 0.0, %v3446
        %v3448 = vpop.f32.mrb[0].mxu0
        %v3449 = vpop.f32.mrb[0].mxu0
        %v3450 = vadd.f32 0.0, %v3449
        %v3451 = vpop.f32.mrb[0].mxu0
        %3452 = vmatprep.mubr.bf16.mxu0 0
        %3453 = vmatmul.mubr.bf16.gmra.mrb[0].mxu0 %v3392
        %v3454 = vpop.f32.mrb[0].mxu0
        %v3455 = vadd.f32 0.0, %v3454
        %v3456 = vpop.f32.mrb[0].mxu0
        %v3457 = vpop.f32.mrb[0].mxu0
        %v3458 = vadd.f32 0.0, %v3457
        %v3459 = vpop.f32.mrb[0].mxu0
        %3460 = vmatprep.mubr.bf16.mxu0 0
        %3461 = vmatmul.mubr.bf16.gmra.mrb[0].mxu0 %v3395
        %v3462 = vpop.f32.mrb[0].mxu0
        %v3463 = vadd.f32 0.0, %v3462
        %v3464 = vpop.f32.mrb[0].mxu0
        %v3465 = vpop.f32.mrb[0].mxu0
        %v3466 = vadd.f32 0.0, %v3465
        %v3467 = vpop.f32.mrb[0].mxu0
        %3468 = vmatprep.mubr.bf16.mxu0 0
        %3469 = vmatmul.mubr.bf16.gmra.mrb[0].mxu0 %v3398
        %v3470 = vpop.f32.mrb[0].mxu0
        %v3471 = vadd.f32 0.0, %v3470
        %v3472 = vpop.f32.mrb[0].mxu0
        %v3473 = vpop.f32.mrb[0].mxu0
        %v3474 = vadd.f32 0.0, %v3473
        %v3475 = vpop.f32.mrb[0].mxu0
        %3476 = vdwg.mxu0
        %v3477 = vmul.f32 %v3447, 0.17677669
        %v3478 = vmul.f32 %v3450, 0.17677669
        %v3479 = vmul.f32 %v3455, 0.17677669
        %v3480 = vmul.f32 %v3458, 0.17677669
        %v3481 = vmul.f32 %v3463, 0.17677669
        %v3482 = vmul.f32 %v3466, 0.17677669
        %v3483 = vmul.f32 %v3471, 0.17677669
        %v3484 = vmul.f32 %v3474, 0.17677669
        %v3485 = vsel %vm1615, %v3477, -inf
        %3486 = vmax.xlane.f32.xlu0 %v3485
        %v3487 = vpop.xlane.xlu0 %3486
        %v3488 = vsel %vm1615, %v3478, -inf
        %3489 = vmax.xlane.f32.xlu0 %v3488
        %v3490 = vpop.xlane.xlu0 %3489
        %v3491 = vsel %vm1615, %v3479, -inf
        %3492 = vmax.xlane.f32.xlu0 %v3491
        %v3493 = vpop.xlane.xlu0 %3492
        %v3494 = vsel %vm1615, %v3480, -inf
        %3495 = vmax.xlane.f32.xlu0 %v3494
        %v3496 = vpop.xlane.xlu0 %3495
        %v3497 = vsel %vm1615, %v3481, -inf
        %3498 = vmax.xlane.f32.xlu0 %v3497
        %v3499 = vpop.xlane.xlu0 %3498
        %v3500 = vsel %vm1615, %v3482, -inf
        %3501 = vmax.xlane.f32.xlu0 %v3500
        %v3502 = vpop.xlane.xlu0 %3501
        %v3503 = vsel %vm1615, %v3483, -inf
        %3504 = vmax.xlane.f32.xlu0 %v3503
        %v3505 = vpop.xlane.xlu0 %3504
        %v3506 = vsel %vm1615, %v3484, -inf
        %3507 = vmax.xlane.f32.xlu0 %v3506
        %v3508 = vpop.xlane.xlu0 %3507
        %v3509 = vsub.f32 %v3477, %v3487
        %v3510 = vsub.f32 %v3478, %v3490
        %v3511 = vsub.f32 %v3479, %v3493
        %v3512 = vsub.f32 %v3480, %v3496
        %v3513 = vsub.f32 %v3481, %v3499
        %v3514 = vsub.f32 %v3482, %v3502
        %v3515 = vsub.f32 %v3483, %v3505
        %v3516 = vsub.f32 %v3484, %v3508
        %v3517 = vmul.f32 %v3509, 1.442695
        %v3518 = vpow.pop %v3517
        %v3519 = vmul.f32 %v3510, 1.442695
        %v3520 = vpow.pop %v3519
        %v3521 = vmul.f32 %v3511, 1.442695
        %v3522 = vpow.pop %v3521
        %v3523 = vmul.f32 %v3512, 1.442695
        %v3524 = vpow.pop %v3523
        %v3525 = vmul.f32 %v3513, 1.442695
        %v3526 = vpow.pop %v3525
        %v3527 = vmul.f32 %v3514, 1.442695
        %v3528 = vpow.pop %v3527
        %v3529 = vmul.f32 %v3515, 1.442695
        %v3530 = vpow.pop %v3529
        %v3531 = vmul.f32 %v3516, 1.442695
        %v3532 = vpow.pop %v3531
        %v3533 = vsel %vm1615, %v3518, 0.0
        %3534 = vadd.xlane.f32.xlu0 %v3533
        %v3535 = vpop.xlane.xlu0 %3534
        %v3536 = vsel %vm1615, %v3520, 0.0
        %3537 = vadd.xlane.f32.xlu0 %v3536
        %v3538 = vpop.xlane.xlu0 %3537
        %v3539 = vsel %vm1615, %v3522, 0.0
        %3540 = vadd.xlane.f32.xlu0 %v3539
        %v3541 = vpop.xlane.xlu0 %3540
        %v3542 = vsel %vm1615, %v3524, 0.0
        %3543 = vadd.xlane.f32.xlu0 %v3542
        %v3544 = vpop.xlane.xlu0 %3543
        %v3545 = vsel %vm1615, %v3526, 0.0
        %3546 = vadd.xlane.f32.xlu0 %v3545
        %v3547 = vpop.xlane.xlu0 %3546
        %v3548 = vsel %vm1615, %v3528, 0.0
        %3549 = vadd.xlane.f32.xlu0 %v3548
        %v3550 = vpop.xlane.xlu0 %3549
        %v3551 = vsel %vm1615, %v3530, 0.0
        %3552 = vadd.xlane.f32.xlu0 %v3551
        %v3553 = vpop.xlane.xlu0 %3552
        %v3554 = vsel %vm1615, %v3532, 0.0
        %3555 = vadd.xlane.f32.xlu0 %v3554
        %v3556 = vpop.xlane.xlu0 %3555
        %v3557 = vrcp.pop %v3535
        %v3558 = vrcp.pop %v3538
        %v3559 = vrcp.pop %v3541
        %v3560 = vrcp.pop %v3544
        %v3561 = vrcp.pop %v3547
        %v3562 = vrcp.pop %v3550
        %v3563 = vrcp.pop %v3553
        %v3564 = vrcp.pop %v3556
        %v3565 = vmul.f32 %v3518, %v3557
        %v3566 = vmul.f32 %v3520, %v3558
        %v3567 = vmul.f32 %v3522, %v3559
        %v3568 = vmul.f32 %v3524, %v3560
        %v3569 = vmul.f32 %v3526, %v3561
        %v3570 = vmul.f32 %v3528, %v3562
        %v3571 = vmul.f32 %v3530, %v3563
        %v3572 = vmul.f32 %v3532, %v3564
        %v3573 = vpack.c.bf16 %v3566, %v3565
        %v3574 = vpack.c.bf16 %v3568, %v3567
        %v3575 = vpack.c.bf16 %v3570, %v3569
        %v3576 = vpack.c.bf16 %v3572, %v3571
        %3577 = vrot.lane.b32.xlu0 %v1507, 64
        %v3578 = vpop.permute.xlu0 %3577
        %3579 = vrot.lane.b32.xlu0 %v1510, 64
        %v3580 = vpop.permute.xlu0 %3579
        %3581 = vrot.lane.b32.xlu0 %v1513, 64
        %v3582 = vpop.permute.xlu0 %3581
        %3583 = vrot.lane.b32.xlu0 %v1516, 64
        %v3584 = vpop.permute.xlu0 %3583
        %v3590 = vsel %vm1615, %v3573, 0
        %v3593 = vsel %vm1615, %v3574, 0
        %v3596 = vsel %vm1615, %v3575, 0
        %v3599 = vsel %vm1615, %v3576, 0
        %3601 = vmatprep.subr.bf16.mxu0 0
        %3602 = vmatpush1.bf16.msra.mxu0 %v3578
        %3603 = vmatprep.subr.bf16.mxu0 0
        %3604 = vmatpush1.bf16.msra.mxu0 %v3580
        %3605 = vmatprep.subr.bf16.mxu0 0
        %3606 = vmatpush1.bf16.msra.mxu0 %v3582
        %3607 = vmatprep.subr.bf16.mxu0 0
        %3608 = vmatpush1.bf16.msra.mxu0 %v3584
        %3609 = vmatprep.subr.bf16.mxu0 0
        %3610 = vmatpush1.bf16.msra.mxu0 0
        %3611 = vmatprep.subr.bf16.mxu0 0
        %3612 = vmatpush1.bf16.msra.mxu0 0
        %3613 = vmatprep.subr.bf16.mxu0 0
        %3614 = vmatpush1.bf16.msra.mxu0 0
        %3615 = vmatprep.subr.bf16.mxu0 0
        %3616 = vmatpush1.bf16.msra.mxu0 0
        %3617 = vmatprep.subr.bf16.mxu0 0
        %3618 = vmatpush1.bf16.msra.mxu0 0
        %3619 = vmatprep.subr.bf16.mxu0 0
        %3620 = vmatpush1.bf16.msra.mxu0 0
        %3621 = vmatprep.subr.bf16.mxu0 0
        %3622 = vmatpush1.bf16.msra.mxu0 0
        %3623 = vmatprep.subr.bf16.mxu0 0
        %3624 = vmatpush1.bf16.msra.mxu0 0
        %3625 = vmatprep.subr.bf16.mxu0 0
        %3626 = vmatpush1.bf16.msra.mxu0 0
        %3627 = vmatprep.subr.bf16.mxu0 0
        %3628 = vmatpush1.bf16.msra.mxu0 0
        %3629 = vmatprep.subr.bf16.mxu0 0
        %3630 = vmatpush1.bf16.msra.mxu0 0
        %3631 = vmatprep.subr.bf16.mxu0 0
        %3632 = vmatpush1.bf16.msra.mxu0 0
        %3633 = vmatprep.mubr.bf16.mxu0 0
        %3634 = vmatmul.mubr.bf16.gmra.mrb[0].mxu0 %v3590
        %v3635 = vpop.f32.mrb[0].mxu0
        %v3636 = vadd.f32 0.0, %v3635
        %v3637 = vpop.f32.mrb[0].mxu0
        %v3638 = vpop.f32.mrb[0].mxu0
        %v3639 = vadd.f32 0.0, %v3638
        %v3640 = vpop.f32.mrb[0].mxu0
        %3641 = vmatprep.mubr.bf16.mxu0 0
        %3642 = vmatmul.mubr.bf16.gmra.mrb[0].mxu0 %v3593
        %v3643 = vpop.f32.mrb[0].mxu0
        %v3644 = vadd.f32 0.0, %v3643
        %v3645 = vpop.f32.mrb[0].mxu0
        %v3646 = vpop.f32.mrb[0].mxu0
        %v3647 = vadd.f32 0.0, %v3646
        %v3648 = vpop.f32.mrb[0].mxu0
        %3649 = vmatprep.mubr.bf16.mxu0 0
        %3650 = vmatmul.mubr.bf16.gmra.mrb[0].mxu0 %v3596
        %v3651 = vpop.f32.mrb[0].mxu0
        %v3652 = vadd.f32 0.0, %v3651
        %v3653 = vpop.f32.mrb[0].mxu0
        %v3654 = vpop.f32.mrb[0].mxu0
        %v3655 = vadd.f32 0.0, %v3654
        %v3656 = vpop.f32.mrb[0].mxu0
        %3657 = vmatprep.mubr.bf16.mxu0 0
        %3658 = vmatmul.mubr.bf16.gmra.mrb[0].mxu0 %v3599
        %v3659 = vpop.f32.mrb[0].mxu0
        %v3660 = vadd.f32 0.0, %v3659
        %v3661 = vpop.f32.mrb[0].mxu0
        %v3662 = vpop.f32.mrb[0].mxu0
        %v3663 = vadd.f32 0.0, %v3662
        %v3664 = vpop.f32.mrb[0].mxu0
        %3665 = vdwg.mxu0
        %3666 = vrot.lane.b32.xlu0 %v1505, 32
        %v3667 = vpop.permute.xlu0 %3666
        %3668 = vrot.lane.b32.xlu0 %v1508, 32
        %v3669 = vpop.permute.xlu0 %3668
        %3670 = vrot.lane.b32.xlu0 %v1511, 32
        %v3671 = vpop.permute.xlu0 %3670
        %3672 = vrot.lane.b32.xlu0 %v1514, 32
        %v3673 = vpop.permute.xlu0 %3672
        %3674 = vrot.lane.b32.xlu0 %v1506, 32
        %v3675 = vpop.permute.xlu0 %3674
        %3676 = vrot.lane.b32.xlu0 %v1509, 32
        %v3677 = vpop.permute.xlu0 %3676
        %3678 = vrot.lane.b32.xlu0 %v1512, 32
        %v3679 = vpop.permute.xlu0 %3678
        %3680 = vrot.lane.b32.xlu0 %v1515, 32
        %v3681 = vpop.permute.xlu0 %3680
        %v3683 = vsel %vm1517, %v3667, 0
        %v3686 = vsel %vm1517, %v3669, 0
        %v3689 = vsel %vm1517, %v3671, 0
        %v3692 = vsel %vm1517, %v3673, 0
        %v3695 = vsel %vm1517, %v3675, 0
        %v3698 = vsel %vm1517, %v3677, 0
        %v3701 = vsel %vm1517, %v3679, 0
        %v3704 = vsel %vm1517, %v3681, 0
        %3706 = vmatprep.subr.bf16.mxu0 0
        %3707 = vmatpush1.bf16.xpose.msra.mxu0 %v3695
        %3708 = vmatprep.subr.bf16.mxu0 0
        %3709 = vmatpush1.bf16.xpose.msra.mxu0 %v3698
        %3710 = vmatprep.subr.bf16.mxu0 0
        %3711 = vmatpush1.bf16.xpose.msra.mxu0 %v3701
        %3712 = vmatprep.subr.bf16.mxu0 0
        %3713 = vmatpush1.bf16.xpose.msra.mxu0 %v3704
        %3714 = vmatprep.subr.bf16.mxu0 0
        %3715 = vmatpush1.bf16.xpose.msra.mxu0 0
        %3716 = vmatprep.subr.bf16.mxu0 0
        %3717 = vmatpush1.bf16.xpose.msra.mxu0 0
        %3718 = vmatprep.subr.bf16.mxu0 0
        %3719 = vmatpush1.bf16.xpose.msra.mxu0 0
        %3720 = vmatprep.subr.bf16.mxu0 0
        %3721 = vmatpush1.bf16.xpose.msra.mxu0 0
        %3722 = vmatprep.subr.bf16.mxu0 0
        %3723 = vmatpush1.bf16.xpose.msra.mxu0 0
        %3724 = vmatprep.subr.bf16.mxu0 0
        %3725 = vmatpush1.bf16.xpose.msra.mxu0 0
        %3726 = vmatprep.subr.bf16.mxu0 0
        %3727 = vmatpush1.bf16.xpose.msra.mxu0 0
        %3728 = vmatprep.subr.bf16.mxu0 0
        %3729 = vmatpush1.bf16.xpose.msra.mxu0 0
        %3730 = vmatprep.subr.bf16.mxu0 0
        %3731 = vmatpush1.bf16.xpose.msra.mxu0 0
        %3732 = vmatprep.subr.bf16.mxu0 0
        %3733 = vmatpush1.bf16.xpose.msra.mxu0 0
        %3734 = vmatprep.subr.bf16.mxu0 0
        %3735 = vmatpush1.bf16.xpose.msra.mxu0 0
        %3736 = vmatprep.subr.bf16.mxu0 0
        %3737 = vmatpush1.bf16.xpose.msra.mxu0 0
        %3738 = vmatprep.mubr.bf16.mxu0 0
        %3739 = vmatmul.mubr.bf16.gmra.mrb[0].mxu0 %v3683
        %v3740 = vpop.f32.mrb[0].mxu0
        %v3741 = vadd.f32 0.0, %v3740
        %v3742 = vpop.f32.mrb[0].mxu0
        %v3743 = vpop.f32.mrb[0].mxu0
        %v3744 = vadd.f32 0.0, %v3743
        %v3745 = vpop.f32.mrb[0].mxu0
        %3746 = vmatprep.mubr.bf16.mxu0 0
        %3747 = vmatmul.mubr.bf16.gmra.mrb[0].mxu0 %v3686
        %v3748 = vpop.f32.mrb[0].mxu0
        %v3749 = vadd.f32 0.0, %v3748
        %v3750 = vpop.f32.mrb[0].mxu0
        %v3751 = vpop.f32.mrb[0].mxu0
        %v3752 = vadd.f32 0.0, %v3751
        %v3753 = vpop.f32.mrb[0].mxu0
        %3754 = vmatprep.mubr.bf16.mxu0 0
        %3755 = vmatmul.mubr.bf16.gmra.mrb[0].mxu0 %v3689
        %v3756 = vpop.f32.mrb[0].mxu0
        %v3757 = vadd.f32 0.0, %v3756
        %v3758 = vpop.f32.mrb[0].mxu0
        %v3759 = vpop.f32.mrb[0].mxu0
        %v3760 = vadd.f32 0.0, %v3759
        %v3761 = vpop.f32.mrb[0].mxu0
        %3762 = vmatprep.mubr.bf16.mxu0 0
        %3763 = vmatmul.mubr.bf16.gmra.mrb[0].mxu0 %v3692
        %v3764 = vpop.f32.mrb[0].mxu0
        %v3765 = vadd.f32 0.0, %v3764
        %v3766 = vpop.f32.mrb[0].mxu0
        %v3767 = vpop.f32.mrb[0].mxu0
        %v3768 = vadd.f32 0.0, %v3767
        %v3769 = vpop.f32.mrb[0].mxu0
        %3770 = vdwg.mxu0
        %v3771 = vmul.f32 %v3741, 0.17677669
        %v3772 = vmul.f32 %v3744, 0.17677669
        %v3773 = vmul.f32 %v3749, 0.17677669
        %v3774 = vmul.f32 %v3752, 0.17677669
        %v3775 = vmul.f32 %v3757, 0.17677669
        %v3776 = vmul.f32 %v3760, 0.17677669
        %v3777 = vmul.f32 %v3765, 0.17677669
        %v3778 = vmul.f32 %v3768, 0.17677669
        %v3779 = vsel %vm1615, %v3771, -inf
        %3780 = vmax.xlane.f32.xlu0 %v3779
        %v3781 = vpop.xlane.xlu0 %3780
        %v3782 = vsel %vm1615, %v3772, -inf
        %3783 = vmax.xlane.f32.xlu0 %v3782
        %v3784 = vpop.xlane.xlu0 %3783
        %v3785 = vsel %vm1615, %v3773, -inf
        %3786 = vmax.xlane.f32.xlu0 %v3785
        %v3787 = vpop.xlane.xlu0 %3786
        %v3788 = vsel %vm1615, %v3774, -inf
        %3789 = vmax.xlane.f32.xlu0 %v3788
        %v3790 = vpop.xlane.xlu0 %3789
        %v3791 = vsel %vm1615, %v3775, -inf
        %3792 = vmax.xlane.f32.xlu0 %v3791
        %v3793 = vpop.xlane.xlu0 %3792
        %v3794 = vsel %vm1615, %v3776, -inf
        %3795 = vmax.xlane.f32.xlu0 %v3794
        %v3796 = vpop.xlane.xlu0 %3795
        %v3797 = vsel %vm1615, %v3777, -inf
        %3798 = vmax.xlane.f32.xlu0 %v3797
        %v3799 = vpop.xlane.xlu0 %3798
        %v3800 = vsel %vm1615, %v3778, -inf
        %3801 = vmax.xlane.f32.xlu0 %v3800
        %v3802 = vpop.xlane.xlu0 %3801
        %v3803 = vsub.f32 %v3771, %v3781
        %v3804 = vsub.f32 %v3772, %v3784
        %v3805 = vsub.f32 %v3773, %v3787
        %v3806 = vsub.f32 %v3774, %v3790
        %v3807 = vsub.f32 %v3775, %v3793
        %v3808 = vsub.f32 %v3776, %v3796
        %v3809 = vsub.f32 %v3777, %v3799
        %v3810 = vsub.f32 %v3778, %v3802
        %v3811 = vmul.f32 %v3803, 1.442695
        %v3812 = vpow.pop %v3811
        %v3813 = vmul.f32 %v3804, 1.442695
        %v3814 = vpow.pop %v3813
        %v3815 = vmul.f32 %v3805, 1.442695
        %v3816 = vpow.pop %v3815
        %v3817 = vmul.f32 %v3806, 1.442695
        %v3818 = vpow.pop %v3817
        %v3819 = vmul.f32 %v3807, 1.442695
        %v3820 = vpow.pop %v3819
        %v3821 = vmul.f32 %v3808, 1.442695
        %v3822 = vpow.pop %v3821
        %v3823 = vmul.f32 %v3809, 1.442695
        %v3824 = vpow.pop %v3823
        %v3825 = vmul.f32 %v3810, 1.442695
        %v3826 = vpow.pop %v3825
        %v3827 = vsel %vm1615, %v3812, 0.0
        %3828 = vadd.xlane.f32.xlu0 %v3827
        %v3829 = vpop.xlane.xlu0 %3828
        %v3830 = vsel %vm1615, %v3814, 0.0
        %3831 = vadd.xlane.f32.xlu0 %v3830
        %v3832 = vpop.xlane.xlu0 %3831
        %v3833 = vsel %vm1615, %v3816, 0.0
        %3834 = vadd.xlane.f32.xlu0 %v3833
        %v3835 = vpop.xlane.xlu0 %3834
        %v3836 = vsel %vm1615, %v3818, 0.0
        %3837 = vadd.xlane.f32.xlu0 %v3836
        %v3838 = vpop.xlane.xlu0 %3837
        %v3839 = vsel %vm1615, %v3820, 0.0
        %3840 = vadd.xlane.f32.xlu0 %v3839
        %v3841 = vpop.xlane.xlu0 %3840
        %v3842 = vsel %vm1615, %v3822, 0.0
        %3843 = vadd.xlane.f32.xlu0 %v3842
        %v3844 = vpop.xlane.xlu0 %3843
        %v3845 = vsel %vm1615, %v3824, 0.0
        %3846 = vadd.xlane.f32.xlu0 %v3845
        %v3847 = vpop.xlane.xlu0 %3846
        %v3848 = vsel %vm1615, %v3826, 0.0
        %3849 = vadd.xlane.f32.xlu0 %v3848
        %v3850 = vpop.xlane.xlu0 %3849
        %v3851 = vrcp.pop %v3829
        %v3852 = vrcp.pop %v3832
        %v3853 = vrcp.pop %v3835
        %v3854 = vrcp.pop %v3838
        %v3855 = vrcp.pop %v3841
        %v3856 = vrcp.pop %v3844
        %v3857 = vrcp.pop %v3847
        %v3858 = vrcp.pop %v3850
        %v3859 = vmul.f32 %v3812, %v3851
        %v3860 = vmul.f32 %v3814, %v3852
        %v3861 = vmul.f32 %v3816, %v3853
        %v3862 = vmul.f32 %v3818, %v3854
        %v3863 = vmul.f32 %v3820, %v3855
        %v3864 = vmul.f32 %v3822, %v3856
        %v3865 = vmul.f32 %v3824, %v3857
        %v3866 = vmul.f32 %v3826, %v3858
        %v3867 = vpack.c.bf16 %v3860, %v3859
        %v3868 = vpack.c.bf16 %v3862, %v3861
        %v3869 = vpack.c.bf16 %v3864, %v3863
        %v3870 = vpack.c.bf16 %v3866, %v3865
        %3871 = vrot.lane.b32.xlu0 %v1507, 32
        %v3872 = vpop.permute.xlu0 %3871
        %3873 = vrot.lane.b32.xlu0 %v1510, 32
        %v3874 = vpop.permute.xlu0 %3873
        %3875 = vrot.lane.b32.xlu0 %v1513, 32
        %v3876 = vpop.permute.xlu0 %3875
        %3877 = vrot.lane.b32.xlu0 %v1516, 32
        %v3878 = vpop.permute.xlu0 %3877
        %v3884 = vsel %vm1615, %v3867, 0
        %v3887 = vsel %vm1615, %v3868, 0
        %v3890 = vsel %vm1615, %v3869, 0
        %v3893 = vsel %vm1615, %v3870, 0
        %3895 = vmatprep.subr.bf16.mxu0 0
        %3896 = vmatpush1.bf16.msra.mxu0 %v3872
        %3897 = vmatprep.subr.bf16.mxu0 0
        %3898 = vmatpush1.bf16.msra.mxu0 %v3874
        %3899 = vmatprep.subr.bf16.mxu0 0
        %3900 = vmatpush1.bf16.msra.mxu0 %v3876
        %3901 = vmatprep.subr.bf16.mxu0 0
        %3902 = vmatpush1.bf16.msra.mxu0 %v3878
        %3903 = vmatprep.subr.bf16.mxu0 0
        %3904 = vmatpush1.bf16.msra.mxu0 0
        %3905 = vmatprep.subr.bf16.mxu0 0
        %3906 = vmatpush1.bf16.msra.mxu0 0
        %3907 = vmatprep.subr.bf16.mxu0 0
        %3908 = vmatpush1.bf16.msra.mxu0 0
        %3909 = vmatprep.subr.bf16.mxu0 0
        %3910 = vmatpush1.bf16.msra.mxu0 0
        %3911 = vmatprep.subr.bf16.mxu0 0
        %3912 = vmatpush1.bf16.msra.mxu0 0
        %3913 = vmatprep.subr.bf16.mxu0 0
        %3914 = vmatpush1.bf16.msra.mxu0 0
        %3915 = vmatprep.subr.bf16.mxu0 0
        %3916 = vmatpush1.bf16.msra.mxu0 0
        %3917 = vmatprep.subr.bf16.mxu0 0
        %3918 = vmatpush1.bf16.msra.mxu0 0
        %3919 = vmatprep.subr.bf16.mxu0 0
        %3920 = vmatpush1.bf16.msra.mxu0 0
        %3921 = vmatprep.subr.bf16.mxu0 0
        %3922 = vmatpush1.bf16.msra.mxu0 0
        %3923 = vmatprep.subr.bf16.mxu0 0
        %3924 = vmatpush1.bf16.msra.mxu0 0
        %3925 = vmatprep.subr.bf16.mxu0 0
        %3926 = vmatpush1.bf16.msra.mxu0 0
        %3927 = vmatprep.mubr.bf16.mxu0 0
        %3928 = vmatmul.mubr.bf16.gmra.mrb[0].mxu0 %v3884
        %v3929 = vpop.f32.mrb[0].mxu0
        %v3930 = vadd.f32 0.0, %v3929
        %v3931 = vpop.f32.mrb[0].mxu0
        %v3932 = vpop.f32.mrb[0].mxu0
        %v3933 = vadd.f32 0.0, %v3932
        %v3934 = vpop.f32.mrb[0].mxu0
        %3935 = vmatprep.mubr.bf16.mxu0 0
        %3936 = vmatmul.mubr.bf16.gmra.mrb[0].mxu0 %v3887
        %v3937 = vpop.f32.mrb[0].mxu0
        %v3938 = vadd.f32 0.0, %v3937
        %v3939 = vpop.f32.mrb[0].mxu0
        %v3940 = vpop.f32.mrb[0].mxu0
        %v3941 = vadd.f32 0.0, %v3940
        %v3942 = vpop.f32.mrb[0].mxu0
        %3943 = vmatprep.mubr.bf16.mxu0 0
        %3944 = vmatmul.mubr.bf16.gmra.mrb[0].mxu0 %v3890
        %v3945 = vpop.f32.mrb[0].mxu0
        %v3946 = vadd.f32 0.0, %v3945
        %v3947 = vpop.f32.mrb[0].mxu0
        %v3948 = vpop.f32.mrb[0].mxu0
        %v3949 = vadd.f32 0.0, %v3948
        %v3950 = vpop.f32.mrb[0].mxu0
        %3951 = vmatprep.mubr.bf16.mxu0 0
        %3952 = vmatmul.mubr.bf16.gmra.mrb[0].mxu0 %v3893
        %v3953 = vpop.f32.mrb[0].mxu0
        %v3954 = vadd.f32 0.0, %v3953
        %v3955 = vpop.f32.mrb[0].mxu0
        %v3956 = vpop.f32.mrb[0].mxu0
        %v3957 = vadd.f32 0.0, %v3956
        %v3958 = vpop.f32.mrb[0].mxu0
        %3959 = vdwg.mxu0
        %3968 = vrot.lane.b32.xlu0 %v3342, 32
        %v3969 = vpop.permute.xlu0 %3968
        %3970 = vrot.lane.b32.xlu0 %v3345, 32
        %v3971 = vpop.permute.xlu0 %3970
        %3972 = vrot.lane.b32.xlu0 %v3350, 32
        %v3973 = vpop.permute.xlu0 %3972
        %3974 = vrot.lane.b32.xlu0 %v3353, 32
        %v3975 = vpop.permute.xlu0 %3974
        %3976 = vrot.lane.b32.xlu0 %v3358, 32
        %v3977 = vpop.permute.xlu0 %3976
        %3978 = vrot.lane.b32.xlu0 %v3361, 32
        %v3979 = vpop.permute.xlu0 %3978
        %3980 = vrot.lane.b32.xlu0 %v3366, 32
        %v3981 = vpop.permute.xlu0 %3980
        %3982 = vrot.lane.b32.xlu0 %v3369, 32
        %v3983 = vpop.permute.xlu0 %3982
        %4000 = vrot.lane.b32.xlu0 %v3636, 64
        %v4001 = vpop.permute.xlu0 %4000
        %4002 = vrot.lane.b32.xlu0 %v3639, 64
        %v4003 = vpop.permute.xlu0 %4002
        %4004 = vrot.lane.b32.xlu0 %v3644, 64
        %v4005 = vpop.permute.xlu0 %4004
        %4006 = vrot.lane.b32.xlu0 %v3647, 64
        %v4007 = vpop.permute.xlu0 %4006
        %4008 = vrot.lane.b32.xlu0 %v3652, 64
        %v4009 = vpop.permute.xlu0 %4008
        %4010 = vrot.lane.b32.xlu0 %v3655, 64
        %v4011 = vpop.permute.xlu0 %4010
        %4012 = vrot.lane.b32.xlu0 %v3660, 64
        %v4013 = vpop.permute.xlu0 %4012
        %4014 = vrot.lane.b32.xlu0 %v3663, 64
        %v4015 = vpop.permute.xlu0 %4014
        %4032 = vrot.lane.b32.xlu0 %v3930, 96
        %v4033 = vpop.permute.xlu0 %4032
        %4034 = vrot.lane.b32.xlu0 %v3933, 96
        %v4035 = vpop.permute.xlu0 %4034
        %4036 = vrot.lane.b32.xlu0 %v3938, 96
        %v4037 = vpop.permute.xlu0 %4036
        %4038 = vrot.lane.b32.xlu0 %v3941, 96
        %v4039 = vpop.permute.xlu0 %4038
        %4040 = vrot.lane.b32.xlu0 %v3946, 96
        %v4041 = vpop.permute.xlu0 %4040
        %4042 = vrot.lane.b32.xlu0 %v3949, 96
        %v4043 = vpop.permute.xlu0 %4042
        %4044 = vrot.lane.b32.xlu0 %v3954, 96
        %v4045 = vpop.permute.xlu0 %4044
        %4046 = vrot.lane.b32.xlu0 %v3957, 96
        %v4047 = vpop.permute.xlu0 %4046
        %v4056 = vsel %vm1517, %v3036, %v3969
        %v4057 = vsel %vm1517, %v3039, %v3971
        %v4058 = vsel %vm1517, %v3044, %v3973
        %v4059 = vsel %vm1517, %v3047, %v3975
        %v4060 = vsel %vm1517, %v3052, %v3977
        %v4061 = vsel %vm1517, %v3055, %v3979
        %v4062 = vsel %vm1517, %v3060, %v3981
        %v4063 = vsel %vm1517, %v3063, %v3983
        %v4064 = vsel %vm1615, %v4056, %v4001
        %v4065 = vsel %vm1615, %v4057, %v4003
        %v4066 = vsel %vm1615, %v4058, %v4005
        %v4067 = vsel %vm1615, %v4059, %v4007
        %v4068 = vsel %vm1615, %v4060, %v4009
        %v4069 = vsel %vm1615, %v4061, %v4011
        %v4070 = vsel %vm1615, %v4062, %v4013
        %v4071 = vsel %vm1615, %v4063, %v4015
        %v4072 = vsel %vm2791, %v4064, %v4033
        %v4073 = vsel %vm2791, %v4065, %v4035
        %v4074 = vsel %vm2791, %v4066, %v4037
        %v4075 = vsel %vm2791, %v4067, %v4039
        %v4076 = vsel %vm2791, %v4068, %v4041
        %v4077 = vsel %vm2791, %v4069, %v4043
        %v4078 = vsel %vm2791, %v4070, %v4045
        %v4079 = vsel %vm2791, %v4071, %v4047
        %v4080 = vpack.c.bf16 %v2793, %v2792
        %v4081 = vpack.c.bf16 %v2795, %v2794
        %v4082 = vpack.c.bf16 %v2797, %v2796
        %v4083 = vpack.c.bf16 %v2799, %v2798
        %v4084 = vpack.c.bf16 %v4073, %v4072
        %v4085 = vpack.c.bf16 %v4075, %v4074
        %v4086 = vpack.c.bf16 %v4077, %v4076
        %v4087 = vpack.c.bf16 %v4079, %v4078
        %v4088 = vld [vmem:[%s626] sm:$0xf]
        %v4089 = vld [vmem:[%s626 + $0x4] sm:$0xf]
        %v4090 = vld [vmem:[%s626 + $0x8] sm:$0xf]
        %v4091 = vld [vmem:[%s626 + $0xc] sm:$0xf]
        %v4092 = vld [vmem:[%s626 + $0x10] sm:$0xf]
        %v4093 = vld [vmem:[%s626 + $0x14] sm:$0xf]
        %v4094 = vld [vmem:[%s626 + $0x18] sm:$0xf]
        %v4095 = vld [vmem:[%s626 + $0x1c] sm:$0xf]
        %v4096 = vld [vmem:[%s626 + $0x20] sm:$0xf]
        %v4097 = vld [vmem:[%s626 + $0x24] sm:$0xf]
        %v4098 = vld [vmem:[%s626 + $0x28] sm:$0xf]
        %v4099 = vld [vmem:[%s626 + $0x2c] sm:$0xf]
        %v4100 = vld [vmem:[%s626 + $0x30] sm:$0xf]
        %v4101 = vld [vmem:[%s626 + $0x34] sm:$0xf]
        %v4102 = vld [vmem:[%s626 + $0x38] sm:$0xf]
        %v4103 = vld [vmem:[%s626 + $0x3c] sm:$0xf]
        %v4104 = vld [vmem:[%s629] sm:$0x1]
        %v4106 = vlaneseq
        %v4107 = vshrl.u32 %v4106, 7
        %v4108 = vsub.s32 0, %v4107
        %v4109 = vrot.slane %v4104, %v4108
        %v4127 = vunpack.c.l.b16 %v4088
        %v4128 = vunpack.c.l.b16 %v4089
        %v4129 = vunpack.c.l.b16 %v4090
        %v4130 = vunpack.c.l.b16 %v4091
        %v4131 = vunpack.c.l.b16 %v4092
        %v4132 = vunpack.c.l.b16 %v4093
        %v4133 = vunpack.c.l.b16 %v4094
        %v4134 = vunpack.c.l.b16 %v4095
        %v4135 = vunpack.c.l.b16 %v4096
        %v4136 = vunpack.c.l.b16 %v4097
        %v4137 = vunpack.c.l.b16 %v4098
        %v4138 = vunpack.c.l.b16 %v4099
        %v4139 = vunpack.c.l.b16 %v4100
        %v4140 = vunpack.c.l.b16 %v4101
        %v4141 = vunpack.c.l.b16 %v4102
        %v4142 = vunpack.c.l.b16 %v4103
        %v4143 = vpack.c.b16 %v4128, %v4127
        %v4144 = vpack.c.b16 %v4130, %v4129
        %v4145 = vpack.c.b16 %v4132, %v4131
        %v4146 = vpack.c.b16 %v4134, %v4133
        %v4147 = vpack.c.b16 %v4136, %v4135
        %v4148 = vpack.c.b16 %v4138, %v4137
        %v4149 = vpack.c.b16 %v4140, %v4139
        %v4150 = vpack.c.b16 %v4142, %v4141
        %4159 = vmatprep.subr.bf16.mxu0 0
        %4160 = vmatpush1.bf16.msra.mxu0 %v4143
        %4161 = vmatprep.subr.bf16.mxu0 0
        %4162 = vmatpush1.bf16.msra.mxu0 %v4144
        %4163 = vmatprep.subr.bf16.mxu0 0
        %4164 = vmatpush1.bf16.msra.mxu0 %v4145
        %4165 = vmatprep.subr.bf16.mxu0 0
        %4166 = vmatpush1.bf16.msra.mxu0 %v4146
        %4167 = vmatprep.subr.bf16.mxu0 0
        %4168 = vmatpush1.bf16.msra.mxu0 %v4147
        %4169 = vmatprep.subr.bf16.mxu0 0
        %4170 = vmatpush1.bf16.msra.mxu0 %v4148
        %4171 = vmatprep.subr.bf16.mxu0 0
        %4172 = vmatpush1.bf16.msra.mxu0 %v4149
        %4173 = vmatprep.subr.bf16.mxu0 0
        %4174 = vmatpush1.bf16.msra.mxu0 %v4150
        %4175 = vmatprep.subr.bf16.mxu0 0
        %4176 = vmatpush1.bf16.msra.mxu0 0
        %4177 = vmatprep.subr.bf16.mxu0 0
        %4178 = vmatpush1.bf16.msra.mxu0 0
        %4179 = vmatprep.subr.bf16.mxu0 0
        %4180 = vmatpush1.bf16.msra.mxu0 0
        %4181 = vmatprep.subr.bf16.mxu0 0
        %4182 = vmatpush1.bf16.msra.mxu0 0
        %4183 = vmatprep.subr.bf16.mxu0 0
        %4184 = vmatpush1.bf16.msra.mxu0 0
        %4185 = vmatprep.subr.bf16.mxu0 0
        %4186 = vmatpush1.bf16.msra.mxu0 0
        %4187 = vmatprep.subr.bf16.mxu0 0
        %4188 = vmatpush1.bf16.msra.mxu0 0
        %4189 = vmatprep.subr.bf16.mxu0 0
        %4190 = vmatpush1.bf16.msra.mxu0 0
        %4191 = vmatprep.mubr.bf16.mxu0 0
        %4192 = vmatmul.mubr.bf16.gmra.mrb[0].mxu0 %v4080
        %v4193 = vpop.f32.mrb[0].mxu0
        %v4194 = vadd.f32 %v4109, %v4193
        %v4195 = vpop.f32.mrb[0].mxu0
        %v4196 = vpop.f32.mrb[0].mxu0
        %v4197 = vadd.f32 %v4109, %v4196
        %v4198 = vpop.f32.mrb[0].mxu0
        %4199 = vmatprep.mubr.bf16.mxu0 0
        %4200 = vmatmul.mubr.bf16.gmra.mrb[0].mxu0 %v4081
        %v4201 = vpop.f32.mrb[0].mxu0
        %v4202 = vadd.f32 %v4109, %v4201
        %v4203 = vpop.f32.mrb[0].mxu0
        %v4204 = vpop.f32.mrb[0].mxu0
        %v4205 = vadd.f32 %v4109, %v4204
        %v4206 = vpop.f32.mrb[0].mxu0
        %4207 = vmatprep.mubr.bf16.mxu0 0
        %4208 = vmatmul.mubr.bf16.gmra.mrb[0].mxu0 %v4082
        %v4209 = vpop.f32.mrb[0].mxu0
        %v4210 = vadd.f32 %v4109, %v4209
        %v4211 = vpop.f32.mrb[0].mxu0
        %v4212 = vpop.f32.mrb[0].mxu0
        %v4213 = vadd.f32 %v4109, %v4212
        %v4214 = vpop.f32.mrb[0].mxu0
        %4215 = vmatprep.mubr.bf16.mxu0 0
        %4216 = vmatmul.mubr.bf16.gmra.mrb[0].mxu0 %v4083
        %v4217 = vpop.f32.mrb[0].mxu0
        %v4218 = vadd.f32 %v4109, %v4217
        %v4219 = vpop.f32.mrb[0].mxu0
        %v4220 = vpop.f32.mrb[0].mxu0
        %v4221 = vadd.f32 %v4109, %v4220
        %v4222 = vpop.f32.mrb[0].mxu0
        %4223 = vmatprep.mubr.bf16.mxu0 0
        %4224 = vmatmul.mubr.bf16.gmra.mrb[0].mxu0 %v4084
        %v4225 = vpop.f32.mrb[0].mxu0
        %v4226 = vadd.f32 %v4109, %v4225
        %v4227 = vpop.f32.mrb[0].mxu0
        %v4228 = vpop.f32.mrb[0].mxu0
        %v4229 = vadd.f32 %v4109, %v4228
        %v4230 = vpop.f32.mrb[0].mxu0
        %4231 = vmatprep.mubr.bf16.mxu0 0
        %4232 = vmatmul.mubr.bf16.gmra.mrb[0].mxu0 %v4085
        %v4233 = vpop.f32.mrb[0].mxu0
        %v4234 = vadd.f32 %v4109, %v4233
        %v4235 = vpop.f32.mrb[0].mxu0
        %v4236 = vpop.f32.mrb[0].mxu0
        %v4237 = vadd.f32 %v4109, %v4236
        %v4238 = vpop.f32.mrb[0].mxu0
        %4239 = vmatprep.mubr.bf16.mxu0 0
        %4240 = vmatmul.mubr.bf16.gmra.mrb[0].mxu0 %v4086
        %v4241 = vpop.f32.mrb[0].mxu0
        %v4242 = vadd.f32 %v4109, %v4241
        %v4243 = vpop.f32.mrb[0].mxu0
        %v4244 = vpop.f32.mrb[0].mxu0
        %v4245 = vadd.f32 %v4109, %v4244
        %v4246 = vpop.f32.mrb[0].mxu0
        %4247 = vmatprep.mubr.bf16.mxu0 0
        %4248 = vmatmul.mubr.bf16.gmra.mrb[0].mxu0 %v4087
        %v4249 = vpop.f32.mrb[0].mxu0
        %v4250 = vadd.f32 %v4109, %v4249
        %v4251 = vpop.f32.mrb[0].mxu0
        %v4252 = vpop.f32.mrb[0].mxu0
        %v4253 = vadd.f32 %v4109, %v4252
        %v4254 = vpop.f32.mrb[0].mxu0
        %4255 = vdwg.mxu0
        %v4256 = vadd.f32 %v4194, %v1082
        %v4257 = vadd.f32 %v4197, %v1083
        %v4258 = vadd.f32 %v4202, %v1084
        %v4259 = vadd.f32 %v4205, %v1085
        %v4260 = vadd.f32 %v4210, %v1086
        %v4261 = vadd.f32 %v4213, %v1087
        %v4262 = vadd.f32 %v4218, %v1088
        %v4263 = vadd.f32 %v4221, %v1089
        %v4264 = vadd.f32 %v4226, %v1090
        %v4265 = vadd.f32 %v4229, %v1091
        %v4266 = vadd.f32 %v4234, %v1092
        %v4267 = vadd.f32 %v4237, %v1093
        %v4268 = vadd.f32 %v4242, %v1094
        %v4269 = vadd.f32 %v4245, %v1095
        %v4270 = vadd.f32 %v4250, %v1096
        %v4271 = vadd.f32 %v4253, %v1097
        %v4272 = vld [vmem:[%s632] sm:$0x1]
        %v4273 = vld [vmem:[%s635] sm:$0x1]
        %4274 = vadd.xlane.f32.xlu0 %v4256
        %v4275 = vpop.xlane.xlu0 %4274
        %4276 = vadd.xlane.f32.xlu0 %v4257
        %v4277 = vpop.xlane.xlu0 %4276
        %4278 = vadd.xlane.f32.xlu0 %v4258
        %v4279 = vpop.xlane.xlu0 %4278
        %4280 = vadd.xlane.f32.xlu0 %v4259
        %v4281 = vpop.xlane.xlu0 %4280
        %4282 = vadd.xlane.f32.xlu0 %v4260
        %v4283 = vpop.xlane.xlu0 %4282
        %4284 = vadd.xlane.f32.xlu0 %v4261
        %v4285 = vpop.xlane.xlu0 %4284
        %4286 = vadd.xlane.f32.xlu0 %v4262
        %v4287 = vpop.xlane.xlu0 %4286
        %4288 = vadd.xlane.f32.xlu0 %v4263
        %v4289 = vpop.xlane.xlu0 %4288
        %4290 = vadd.xlane.f32.xlu0 %v4264
        %v4291 = vpop.xlane.xlu0 %4290
        %4292 = vadd.xlane.f32.xlu0 %v4265
        %v4293 = vpop.xlane.xlu0 %4292
        %4294 = vadd.xlane.f32.xlu0 %v4266
        %v4295 = vpop.xlane.xlu0 %4294
        %4296 = vadd.xlane.f32.xlu0 %v4267
        %v4297 = vpop.xlane.xlu0 %4296
        %4298 = vadd.xlane.f32.xlu0 %v4268
        %v4299 = vpop.xlane.xlu0 %4298
        %4300 = vadd.xlane.f32.xlu0 %v4269
        %v4301 = vpop.xlane.xlu0 %4300
        %4302 = vadd.xlane.f32.xlu0 %v4270
        %v4303 = vpop.xlane.xlu0 %4302
        %4304 = vadd.xlane.f32.xlu0 %v4271
        %v4305 = vpop.xlane.xlu0 %4304
        %v4306 = vrcp.pop 128.0
        %v4307 = vmul.f32 %v4275, %v4306
        %v4308 = vmul.f32 %v4277, %v4306
        %v4309 = vmul.f32 %v4279, %v4306
        %v4310 = vmul.f32 %v4281, %v4306
        %v4311 = vmul.f32 %v4283, %v4306
        %v4312 = vmul.f32 %v4285, %v4306
        %v4313 = vmul.f32 %v4287, %v4306
        %v4314 = vmul.f32 %v4289, %v4306
        %v4315 = vmul.f32 %v4291, %v4306
        %v4316 = vmul.f32 %v4293, %v4306
        %v4317 = vmul.f32 %v4295, %v4306
        %v4318 = vmul.f32 %v4297, %v4306
        %v4319 = vmul.f32 %v4299, %v4306
        %v4320 = vmul.f32 %v4301, %v4306
        %v4321 = vmul.f32 %v4303, %v4306
        %v4322 = vmul.f32 %v4305, %v4306
        %v4323 = vsub.f32 %v4256, %v4307
        %v4324 = vsub.f32 %v4257, %v4308
        %v4325 = vsub.f32 %v4258, %v4309
        %v4326 = vsub.f32 %v4259, %v4310
        %v4327 = vsub.f32 %v4260, %v4311
        %v4328 = vsub.f32 %v4261, %v4312
        %v4329 = vsub.f32 %v4262, %v4313
        %v4330 = vsub.f32 %v4263, %v4314
        %v4331 = vsub.f32 %v4264, %v4315
        %v4332 = vsub.f32 %v4265, %v4316
        %v4333 = vsub.f32 %v4266, %v4317
        %v4334 = vsub.f32 %v4267, %v4318
        %v4335 = vsub.f32 %v4268, %v4319
        %v4336 = vsub.f32 %v4269, %v4320
        %v4337 = vsub.f32 %v4270, %v4321
        %v4338 = vsub.f32 %v4271, %v4322
        %v4339 = vmul.f32 %v4323, %v4323
        %v4340 = vmul.f32 %v4324, %v4324
        %v4341 = vmul.f32 %v4325, %v4325
        %v4342 = vmul.f32 %v4326, %v4326
        %v4343 = vmul.f32 %v4327, %v4327
        %v4344 = vmul.f32 %v4328, %v4328
        %v4345 = vmul.f32 %v4329, %v4329
        %v4346 = vmul.f32 %v4330, %v4330
        %v4347 = vmul.f32 %v4331, %v4331
        %v4348 = vmul.f32 %v4332, %v4332
        %v4349 = vmul.f32 %v4333, %v4333
        %v4350 = vmul.f32 %v4334, %v4334
        %v4351 = vmul.f32 %v4335, %v4335
        %v4352 = vmul.f32 %v4336, %v4336
        %v4353 = vmul.f32 %v4337, %v4337
        %v4354 = vmul.f32 %v4338, %v4338
        %4355 = vadd.xlane.f32.xlu0 %v4339
        %v4356 = vpop.xlane.xlu0 %4355
        %4357 = vadd.xlane.f32.xlu0 %v4340
        %v4358 = vpop.xlane.xlu0 %4357
        %4359 = vadd.xlane.f32.xlu0 %v4341
        %v4360 = vpop.xlane.xlu0 %4359
        %4361 = vadd.xlane.f32.xlu0 %v4342
        %v4362 = vpop.xlane.xlu0 %4361
        %4363 = vadd.xlane.f32.xlu0 %v4343
        %v4364 = vpop.xlane.xlu0 %4363
        %4365 = vadd.xlane.f32.xlu0 %v4344
        %v4366 = vpop.xlane.xlu0 %4365
        %4367 = vadd.xlane.f32.xlu0 %v4345
        %v4368 = vpop.xlane.xlu0 %4367
        %4369 = vadd.xlane.f32.xlu0 %v4346
        %v4370 = vpop.xlane.xlu0 %4369
        %4371 = vadd.xlane.f32.xlu0 %v4347
        %v4372 = vpop.xlane.xlu0 %4371
        %4373 = vadd.xlane.f32.xlu0 %v4348
        %v4374 = vpop.xlane.xlu0 %4373
        %4375 = vadd.xlane.f32.xlu0 %v4349
        %v4376 = vpop.xlane.xlu0 %4375
        %4377 = vadd.xlane.f32.xlu0 %v4350
        %v4378 = vpop.xlane.xlu0 %4377
        %4379 = vadd.xlane.f32.xlu0 %v4351
        %v4380 = vpop.xlane.xlu0 %4379
        %4381 = vadd.xlane.f32.xlu0 %v4352
        %v4382 = vpop.xlane.xlu0 %4381
        %4383 = vadd.xlane.f32.xlu0 %v4353
        %v4384 = vpop.xlane.xlu0 %4383
        %4385 = vadd.xlane.f32.xlu0 %v4354
        %v4386 = vpop.xlane.xlu0 %4385
        %v4387 = vmul.f32 %v4356, %v4306
        %v4388 = vmul.f32 %v4358, %v4306
        %v4389 = vmul.f32 %v4360, %v4306
        %v4390 = vmul.f32 %v4362, %v4306
        %v4391 = vmul.f32 %v4364, %v4306
        %v4392 = vmul.f32 %v4366, %v4306
        %v4393 = vmul.f32 %v4368, %v4306
        %v4394 = vmul.f32 %v4370, %v4306
        %v4395 = vmul.f32 %v4372, %v4306
        %v4396 = vmul.f32 %v4374, %v4306
        %v4397 = vmul.f32 %v4376, %v4306
        %v4398 = vmul.f32 %v4378, %v4306
        %v4399 = vmul.f32 %v4380, %v4306
        %v4400 = vmul.f32 %v4382, %v4306
        %v4401 = vmul.f32 %v4384, %v4306
        %v4402 = vmul.f32 %v4386, %v4306
        %v4403 = vadd.f32 %v4387, 1e-05
        %v4404 = vadd.f32 %v4388, 1e-05
        %v4405 = vadd.f32 %v4389, 1e-05
        %v4406 = vadd.f32 %v4390, 1e-05
        %v4407 = vadd.f32 %v4391, 1e-05
        %v4408 = vadd.f32 %v4392, 1e-05
        %v4409 = vadd.f32 %v4393, 1e-05
        %v4410 = vadd.f32 %v4394, 1e-05
        %v4411 = vadd.f32 %v4395, 1e-05
        %v4412 = vadd.f32 %v4396, 1e-05
        %v4413 = vadd.f32 %v4397, 1e-05
        %v4414 = vadd.f32 %v4398, 1e-05
        %v4415 = vadd.f32 %v4399, 1e-05
        %v4416 = vadd.f32 %v4400, 1e-05
        %v4417 = vadd.f32 %v4401, 1e-05
        %v4418 = vadd.f32 %v4402, 1e-05
        %v4419 = vrsqrt.pop %v4403
        %v4420 = vrsqrt.pop %v4404
        %v4421 = vrsqrt.pop %v4405
        %v4422 = vrsqrt.pop %v4406
        %v4423 = vrsqrt.pop %v4407
        %v4424 = vrsqrt.pop %v4408
        %v4425 = vrsqrt.pop %v4409
        %v4426 = vrsqrt.pop %v4410
        %v4427 = vrsqrt.pop %v4411
        %v4428 = vrsqrt.pop %v4412
        %v4429 = vrsqrt.pop %v4413
        %v4430 = vrsqrt.pop %v4414
        %v4431 = vrsqrt.pop %v4415
        %v4432 = vrsqrt.pop %v4416
        %v4433 = vrsqrt.pop %v4417
        %v4434 = vrsqrt.pop %v4418
        %v4435 = vmul.f32 %v4323, %v4419
        %v4436 = vmul.f32 %v4324, %v4420
        %v4437 = vmul.f32 %v4325, %v4421
        %v4438 = vmul.f32 %v4326, %v4422
        %v4439 = vmul.f32 %v4327, %v4423
        %v4440 = vmul.f32 %v4328, %v4424
        %v4441 = vmul.f32 %v4329, %v4425
        %v4442 = vmul.f32 %v4330, %v4426
        %v4443 = vmul.f32 %v4331, %v4427
        %v4444 = vmul.f32 %v4332, %v4428
        %v4445 = vmul.f32 %v4333, %v4429
        %v4446 = vmul.f32 %v4334, %v4430
        %v4447 = vmul.f32 %v4335, %v4431
        %v4448 = vmul.f32 %v4336, %v4432
        %v4449 = vmul.f32 %v4337, %v4433
        %v4450 = vmul.f32 %v4338, %v4434
        %v4452 = vlaneseq
        %v4453 = vshrl.u32 %v4452, 7
        %v4454 = vsub.s32 0, %v4453
        %v4455 = vrot.slane %v4272, %v4454
        %v4457 = vmul.f32 %v4435, %v4455
        %v4458 = vmul.f32 %v4436, %v4455
        %v4459 = vmul.f32 %v4437, %v4455
        %v4460 = vmul.f32 %v4438, %v4455
        %v4461 = vmul.f32 %v4439, %v4455
        %v4462 = vmul.f32 %v4440, %v4455
        %v4463 = vmul.f32 %v4441, %v4455
        %v4464 = vmul.f32 %v4442, %v4455
        %v4465 = vmul.f32 %v4443, %v4455
        %v4466 = vmul.f32 %v4444, %v4455
        %v4467 = vmul.f32 %v4445, %v4455
        %v4468 = vmul.f32 %v4446, %v4455
        %v4469 = vmul.f32 %v4447, %v4455
        %v4470 = vmul.f32 %v4448, %v4455
        %v4471 = vmul.f32 %v4449, %v4455
        %v4472 = vmul.f32 %v4450, %v4455
        %v4474 = vlaneseq
        %v4475 = vshrl.u32 %v4474, 7
        %v4476 = vsub.s32 0, %v4475
        %v4477 = vrot.slane %v4273, %v4476
        %v4479 = vadd.f32 %v4457, %v4477
        %v4480 = vadd.f32 %v4458, %v4477
        %v4481 = vadd.f32 %v4459, %v4477
        %v4482 = vadd.f32 %v4460, %v4477
        %v4483 = vadd.f32 %v4461, %v4477
        %v4484 = vadd.f32 %v4462, %v4477
        %v4485 = vadd.f32 %v4463, %v4477
        %v4486 = vadd.f32 %v4464, %v4477
        %v4487 = vadd.f32 %v4465, %v4477
        %v4488 = vadd.f32 %v4466, %v4477
        %v4489 = vadd.f32 %v4467, %v4477
        %v4490 = vadd.f32 %v4468, %v4477
        %v4491 = vadd.f32 %v4469, %v4477
        %v4492 = vadd.f32 %v4470, %v4477
        %v4493 = vadd.f32 %v4471, %v4477
        %v4494 = vadd.f32 %v4472, %v4477
        %v4495 = vpack.c.bf16 %v4480, %v4479
        %v4496 = vpack.c.bf16 %v4482, %v4481
        %v4497 = vpack.c.bf16 %v4484, %v4483
        %v4498 = vpack.c.bf16 %v4486, %v4485
        %v4499 = vpack.c.bf16 %v4488, %v4487
        %v4500 = vpack.c.bf16 %v4490, %v4489
        %v4501 = vpack.c.bf16 %v4492, %v4491
        %v4502 = vpack.c.bf16 %v4494, %v4493
        %v4503 = vld [vmem:[%s640] sm:$0xff]
        %v4504 = vld [vmem:[%s640 + $0x8] sm:$0xff]
        %v4505 = vld [vmem:[%s640 + $0x10] sm:$0xff]
        %v4506 = vld [vmem:[%s640 + $0x18] sm:$0xff]
        %v4507 = vld [vmem:[%s640 + $0x20] sm:$0xff]
        %v4508 = vld [vmem:[%s640 + $0x28] sm:$0xff]
        %v4509 = vld [vmem:[%s640 + $0x30] sm:$0xff]
        %v4510 = vld [vmem:[%s640 + $0x38] sm:$0xff]
        %v4511 = vld [vmem:[%s640 + $0x40] sm:$0xff]
        %v4512 = vld [vmem:[%s640 + $0x48] sm:$0xff]
        %v4513 = vld [vmem:[%s640 + $0x50] sm:$0xff]
        %v4514 = vld [vmem:[%s640 + $0x58] sm:$0xff]
        %v4515 = vld [vmem:[%s640 + $0x60] sm:$0xff]
        %v4516 = vld [vmem:[%s640 + $0x68] sm:$0xff]
        %v4517 = vld [vmem:[%s640 + $0x70] sm:$0xff]
        %v4518 = vld [vmem:[%s640 + $0x78] sm:$0xff]
        %v4519 = vld [vmem:[%s644] sm:$0x3]
        %v4521 = vlaneseq
        %v4522 = vshrl.u32 %v4521, 7
        %v4523 = vsub.s32 0, %v4522
        %v4524 = vrot.slane %v4519, %v4523
        %v4525 = vlaneseq
        %v4526 = vshrl.u32 %v4525, 7
        %v4527 = vsub.s32 1, %v4526
        %v4528 = vrot.slane %v4519, %v4527
        %v4547 = vunpack.c.l.b16 %v4503
        %v4548 = vunpack.c.h.b16 %v4503
        %v4549 = vunpack.c.l.b16 %v4504
        %v4550 = vunpack.c.h.b16 %v4504
        %v4551 = vunpack.c.l.b16 %v4505
        %v4552 = vunpack.c.h.b16 %v4505
        %v4553 = vunpack.c.l.b16 %v4506
        %v4554 = vunpack.c.h.b16 %v4506
        %v4555 = vunpack.c.l.b16 %v4507
        %v4556 = vunpack.c.h.b16 %v4507
        %v4557 = vunpack.c.l.b16 %v4508
        %v4558 = vunpack.c.h.b16 %v4508
        %v4559 = vunpack.c.l.b16 %v4509
        %v4560 = vunpack.c.h.b16 %v4509
        %v4561 = vunpack.c.l.b16 %v4510
        %v4562 = vunpack.c.h.b16 %v4510
        %v4563 = vunpack.c.l.b16 %v4511
        %v4564 = vunpack.c.h.b16 %v4511
        %v4565 = vunpack.c.l.b16 %v4512
        %v4566 = vunpack.c.h.b16 %v4512
        %v4567 = vunpack.c.l.b16 %v4513
        %v4568 = vunpack.c.h.b16 %v4513
        %v4569 = vunpack.c.l.b16 %v4514
        %v4570 = vunpack.c.h.b16 %v4514
        %v4571 = vunpack.c.l.b16 %v4515
        %v4572 = vunpack.c.h.b16 %v4515
        %v4573 = vunpack.c.l.b16 %v4516
        %v4574 = vunpack.c.h.b16 %v4516
        %v4575 = vunpack.c.l.b16 %v4517
        %v4576 = vunpack.c.h.b16 %v4517
        %v4577 = vunpack.c.l.b16 %v4518
        %v4578 = vunpack.c.h.b16 %v4518
        %v4579 = vpack.c.b16 %v4549, %v4547
        %v4580 = vpack.c.b16 %v4550, %v4548
        %v4581 = vpack.c.b16 %v4553, %v4551
        %v4582 = vpack.c.b16 %v4554, %v4552
        %v4583 = vpack.c.b16 %v4557, %v4555
        %v4584 = vpack.c.b16 %v4558, %v4556
        %v4585 = vpack.c.b16 %v4561, %v4559
        %v4586 = vpack.c.b16 %v4562, %v4560
        %v4587 = vpack.c.b16 %v4565, %v4563
        %v4588 = vpack.c.b16 %v4566, %v4564
        %v4589 = vpack.c.b16 %v4569, %v4567
        %v4590 = vpack.c.b16 %v4570, %v4568
        %v4591 = vpack.c.b16 %v4573, %v4571
        %v4592 = vpack.c.b16 %v4574, %v4572
        %v4593 = vpack.c.b16 %v4577, %v4575
        %v4594 = vpack.c.b16 %v4578, %v4576
        %4611 = vmatprep.subr.bf16.mxu0 %v4580
        %4612 = vmatpush1.bf16.msra.mxu0 %v4579
        %4613 = vmatprep.subr.bf16.mxu0 %v4582
        %4614 = vmatpush1.bf16.msra.mxu0 %v4581
        %4615 = vmatprep.subr.bf16.mxu0 %v4584
        %4616 = vmatpush1.bf16.msra.mxu0 %v4583
        %4617 = vmatprep.subr.bf16.mxu0 %v4586
        %4618 = vmatpush1.bf16.msra.mxu0 %v4585
        %4619 = vmatprep.subr.bf16.mxu0 %v4588
        %4620 = vmatpush1.bf16.msra.mxu0 %v4587
        %4621 = vmatprep.subr.bf16.mxu0 %v4590
        %4622 = vmatpush1.bf16.msra.mxu0 %v4589
        %4623 = vmatprep.subr.bf16.mxu0 %v4592
        %4624 = vmatpush1.bf16.msra.mxu0 %v4591
        %4625 = vmatprep.subr.bf16.mxu0 %v4594
        %4626 = vmatpush1.bf16.msra.mxu0 %v4593
        %4627 = vmatprep.subr.bf16.mxu0 0
        %4628 = vmatpush1.bf16.msra.mxu0 0
        %4629 = vmatprep.subr.bf16.mxu0 0
        %4630 = vmatpush1.bf16.msra.mxu0 0
        %4631 = vmatprep.subr.bf16.mxu0 0
        %4632 = vmatpush1.bf16.msra.mxu0 0
        %4633 = vmatprep.subr.bf16.mxu0 0
        %4634 = vmatpush1.bf16.msra.mxu0 0
        %4635 = vmatprep.subr.bf16.mxu0 0
        %4636 = vmatpush1.bf16.msra.mxu0 0
        %4637 = vmatprep.subr.bf16.mxu0 0
        %4638 = vmatpush1.bf16.msra.mxu0 0
        %4639 = vmatprep.subr.bf16.mxu0 0
        %4640 = vmatpush1.bf16.msra.mxu0 0
        %4641 = vmatprep.subr.bf16.mxu0 0
        %4642 = vmatpush1.bf16.msra.mxu0 0
        %4643 = vmatprep.mubr.bf16.mxu0 0
        %4644 = vmatmul.mubr.bf16.gmra.mrb[0].mxu0 %v4495
        %v4645 = vpop.f32.mrb[0].mxu0
        %v4646 = vadd.f32 %v4524, %v4645
        %v4647 = vpop.f32.mrb[0].mxu0
        %v4648 = vadd.f32 %v4528, %v4647
        %v4649 = vpop.f32.mrb[0].mxu0
        %v4650 = vadd.f32 %v4524, %v4649
        %v4651 = vpop.f32.mrb[0].mxu0
        %v4652 = vadd.f32 %v4528, %v4651
        %4653 = vmatprep.mubr.bf16.mxu0 0
        %4654 = vmatmul.mubr.bf16.gmra.mrb[0].mxu0 %v4496
        %v4655 = vpop.f32.mrb[0].mxu0
        %v4656 = vadd.f32 %v4524, %v4655
        %v4657 = vpop.f32.mrb[0].mxu0
        %v4658 = vadd.f32 %v4528, %v4657
        %v4659 = vpop.f32.mrb[0].mxu0
        %v4660 = vadd.f32 %v4524, %v4659
        %v4661 = vpop.f32.mrb[0].mxu0
        %v4662 = vadd.f32 %v4528, %v4661
        %4663 = vmatprep.mubr.bf16.mxu0 0
        %4664 = vmatmul.mubr.bf16.gmra.mrb[0].mxu0 %v4497
        %v4665 = vpop.f32.mrb[0].mxu0
        %v4666 = vadd.f32 %v4524, %v4665
        %v4667 = vpop.f32.mrb[0].mxu0
        %v4668 = vadd.f32 %v4528, %v4667
        %v4669 = vpop.f32.mrb[0].mxu0
        %v4670 = vadd.f32 %v4524, %v4669
        %v4671 = vpop.f32.mrb[0].mxu0
        %v4672 = vadd.f32 %v4528, %v4671
        %4673 = vmatprep.mubr.bf16.mxu0 0
        %4674 = vmatmul.mubr.bf16.gmra.mrb[0].mxu0 %v4498
        %v4675 = vpop.f32.mrb[0].mxu0
        %v4676 = vadd.f32 %v4524, %v4675
        %v4677 = vpop.f32.mrb[0].mxu0
        %v4678 = vadd.f32 %v4528, %v4677
        %v4679 = vpop.f32.mrb[0].mxu0
        %v4680 = vadd.f32 %v4524, %v4679
        %v4681 = vpop.f32.mrb[0].mxu0
        %v4682 = vadd.f32 %v4528, %v4681
        %4683 = vmatprep.mubr.bf16.mxu0 0
        %4684 = vmatmul.mubr.bf16.gmra.mrb[0].mxu0 %v4499
        %v4685 = vpop.f32.mrb[0].mxu0
        %v4686 = vadd.f32 %v4524, %v4685
        %v4687 = vpop.f32.mrb[0].mxu0
        %v4688 = vadd.f32 %v4528, %v4687
        %v4689 = vpop.f32.mrb[0].mxu0
        %v4690 = vadd.f32 %v4524, %v4689
        %v4691 = vpop.f32.mrb[0].mxu0
        %v4692 = vadd.f32 %v4528, %v4691
        %4693 = vmatprep.mubr.bf16.mxu0 0
        %4694 = vmatmul.mubr.bf16.gmra.mrb[0].mxu0 %v4500
        %v4695 = vpop.f32.mrb[0].mxu0
        %v4696 = vadd.f32 %v4524, %v4695
        %v4697 = vpop.f32.mrb[0].mxu0
        %v4698 = vadd.f32 %v4528, %v4697
        %v4699 = vpop.f32.mrb[0].mxu0
        %v4700 = vadd.f32 %v4524, %v4699
        %v4701 = vpop.f32.mrb[0].mxu0
        %v4702 = vadd.f32 %v4528, %v4701
        %4703 = vmatprep.mubr.bf16.mxu0 0
        %4704 = vmatmul.mubr.bf16.gmra.mrb[0].mxu0 %v4501
        %v4705 = vpop.f32.mrb[0].mxu0
        %v4706 = vadd.f32 %v4524, %v4705
        %v4707 = vpop.f32.mrb[0].mxu0
        %v4708 = vadd.f32 %v4528, %v4707
        %v4709 = vpop.f32.mrb[0].mxu0
        %v4710 = vadd.f32 %v4524, %v4709
        %v4711 = vpop.f32.mrb[0].mxu0
        %v4712 = vadd.f32 %v4528, %v4711
        %4713 = vmatprep.mubr.bf16.mxu0 0
        %4714 = vmatmul.mubr.bf16.gmra.mrb[0].mxu0 %v4502
        %v4715 = vpop.f32.mrb[0].mxu0
        %v4716 = vadd.f32 %v4524, %v4715
        %v4717 = vpop.f32.mrb[0].mxu0
        %v4718 = vadd.f32 %v4528, %v4717
        %v4719 = vpop.f32.mrb[0].mxu0
        %v4720 = vadd.f32 %v4524, %v4719
        %v4721 = vpop.f32.mrb[0].mxu0
        %v4722 = vadd.f32 %v4528, %v4721
        %4723 = vdwg.mxu0
        %v4724 = vmax.f32 %v4646, 0.0
        %v4725 = vmax.f32 %v4648, 0.0
        %v4726 = vmax.f32 %v4650, 0.0
        %v4727 = vmax.f32 %v4652, 0.0
        %v4728 = vmax.f32 %v4656, 0.0
        %v4729 = vmax.f32 %v4658, 0.0
        %v4730 = vmax.f32 %v4660, 0.0
        %v4731 = vmax.f32 %v4662, 0.0
        %v4732 = vmax.f32 %v4666, 0.0
        %v4733 = vmax.f32 %v4668, 0.0
        %v4734 = vmax.f32 %v4670, 0.0
        %v4735 = vmax.f32 %v4672, 0.0
        %v4736 = vmax.f32 %v4676, 0.0
        %v4737 = vmax.f32 %v4678, 0.0
        %v4738 = vmax.f32 %v4680, 0.0
        %v4739 = vmax.f32 %v4682, 0.0
        %v4740 = vmax.f32 %v4686, 0.0
        %v4741 = vmax.f32 %v4688, 0.0
        %v4742 = vmax.f32 %v4690, 0.0
        %v4743 = vmax.f32 %v4692, 0.0
        %v4744 = vmax.f32 %v4696, 0.0
        %v4745 = vmax.f32 %v4698, 0.0
        %v4746 = vmax.f32 %v4700, 0.0
        %v4747 = vmax.f32 %v4702, 0.0
        %v4748 = vmax.f32 %v4706, 0.0
        %v4749 = vmax.f32 %v4708, 0.0
        %v4750 = vmax.f32 %v4710, 0.0
        %v4751 = vmax.f32 %v4712, 0.0
        %v4752 = vmax.f32 %v4716, 0.0
        %v4753 = vmax.f32 %v4718, 0.0
        %v4754 = vmax.f32 %v4720, 0.0
        %v4755 = vmax.f32 %v4722, 0.0
        %v4756 = vpack.c.bf16 %v4726, %v4724
        %v4757 = vpack.c.bf16 %v4727, %v4725
        %v4758 = vpack.c.bf16 %v4730, %v4728
        %v4759 = vpack.c.bf16 %v4731, %v4729
        %v4760 = vpack.c.bf16 %v4734, %v4732
        %v4761 = vpack.c.bf16 %v4735, %v4733
        %v4762 = vpack.c.bf16 %v4738, %v4736
        %v4763 = vpack.c.bf16 %v4739, %v4737
        %v4764 = vpack.c.bf16 %v4742, %v4740
        %v4765 = vpack.c.bf16 %v4743, %v4741
        %v4766 = vpack.c.bf16 %v4746, %v4744
        %v4767 = vpack.c.bf16 %v4747, %v4745
        %v4768 = vpack.c.bf16 %v4750, %v4748
        %v4769 = vpack.c.bf16 %v4751, %v4749
        %v4770 = vpack.c.bf16 %v4754, %v4752
        %v4771 = vpack.c.bf16 %v4755, %v4753
        %v4772 = vld [vmem:[%s649] sm:$0xf]
        %v4773 = vld [vmem:[%s649 + $0x4] sm:$0xf]
        %v4774 = vld [vmem:[%s649 + $0x8] sm:$0xf]
        %v4775 = vld [vmem:[%s649 + $0xc] sm:$0xf]
        %v4776 = vld [vmem:[%s649 + $0x10] sm:$0xf]
        %v4777 = vld [vmem:[%s649 + $0x14] sm:$0xf]
        %v4778 = vld [vmem:[%s649 + $0x18] sm:$0xf]
        %v4779 = vld [vmem:[%s649 + $0x1c] sm:$0xf]
        %v4780 = vld [vmem:[%s649 + $0x20] sm:$0xf]
        %v4781 = vld [vmem:[%s649 + $0x24] sm:$0xf]
        %v4782 = vld [vmem:[%s649 + $0x28] sm:$0xf]
        %v4783 = vld [vmem:[%s649 + $0x2c] sm:$0xf]
        %v4784 = vld [vmem:[%s649 + $0x30] sm:$0xf]
        %v4785 = vld [vmem:[%s649 + $0x34] sm:$0xf]
        %v4786 = vld [vmem:[%s649 + $0x38] sm:$0xf]
        %v4787 = vld [vmem:[%s649 + $0x3c] sm:$0xf]
        %v4788 = vld [vmem:[%s649 + $0x40] sm:$0xf]
        %v4789 = vld [vmem:[%s649 + $0x44] sm:$0xf]
        %v4790 = vld [vmem:[%s649 + $0x48] sm:$0xf]
        %v4791 = vld [vmem:[%s649 + $0x4c] sm:$0xf]
        %v4792 = vld [vmem:[%s649 + $0x50] sm:$0xf]
        %v4793 = vld [vmem:[%s649 + $0x54] sm:$0xf]
        %v4794 = vld [vmem:[%s649 + $0x58] sm:$0xf]
        %v4795 = vld [vmem:[%s649 + $0x5c] sm:$0xf]
        %v4796 = vld [vmem:[%s649 + $0x60] sm:$0xf]
        %v4797 = vld [vmem:[%s649 + $0x64] sm:$0xf]
        %v4798 = vld [vmem:[%s649 + $0x68] sm:$0xf]
        %v4799 = vld [vmem:[%s649 + $0x6c] sm:$0xf]
        %v4800 = vld [vmem:[%s649 + $0x70] sm:$0xf]
        %v4801 = vld [vmem:[%s649 + $0x74] sm:$0xf]
        %v4802 = vld [vmem:[%s649 + $0x78] sm:$0xf]
        %v4803 = vld [vmem:[%s649 + $0x7c] sm:$0xf]
        %v4804 = vld [vmem:[%s652] sm:$0x1]
        %v4806 = vlaneseq
        %v4807 = vshrl.u32 %v4806, 7
        %v4808 = vsub.s32 0, %v4807
        %v4809 = vrot.slane %v4804, %v4808
        %v4843 = vunpack.c.l.b16 %v4772
        %v4844 = vunpack.c.l.b16 %v4773
        %v4845 = vunpack.c.l.b16 %v4774
        %v4846 = vunpack.c.l.b16 %v4775
        %v4847 = vunpack.c.l.b16 %v4776
        %v4848 = vunpack.c.l.b16 %v4777
        %v4849 = vunpack.c.l.b16 %v4778
        %v4850 = vunpack.c.l.b16 %v4779
        %v4851 = vunpack.c.l.b16 %v4780
        %v4852 = vunpack.c.l.b16 %v4781
        %v4853 = vunpack.c.l.b16 %v4782
        %v4854 = vunpack.c.l.b16 %v4783
        %v4855 = vunpack.c.l.b16 %v4784
        %v4856 = vunpack.c.l.b16 %v4785
        %v4857 = vunpack.c.l.b16 %v4786
        %v4858 = vunpack.c.l.b16 %v4787
        %v4859 = vunpack.c.l.b16 %v4788
        %v4860 = vunpack.c.l.b16 %v4789
        %v4861 = vunpack.c.l.b16 %v4790
        %v4862 = vunpack.c.l.b16 %v4791
        %v4863 = vunpack.c.l.b16 %v4792
        %v4864 = vunpack.c.l.b16 %v4793
        %v4865 = vunpack.c.l.b16 %v4794
        %v4866 = vunpack.c.l.b16 %v4795
        %v4867 = vunpack.c.l.b16 %v4796
        %v4868 = vunpack.c.l.b16 %v4797
        %v4869 = vunpack.c.l.b16 %v4798
        %v4870 = vunpack.c.l.b16 %v4799
        %v4871 = vunpack.c.l.b16 %v4800
        %v4872 = vunpack.c.l.b16 %v4801
        %v4873 = vunpack.c.l.b16 %v4802
        %v4874 = vunpack.c.l.b16 %v4803
        %v4875 = vpack.c.b16 %v4844, %v4843
        %v4876 = vpack.c.b16 %v4846, %v4845
        %v4877 = vpack.c.b16 %v4848, %v4847
        %v4878 = vpack.c.b16 %v4850, %v4849
        %v4879 = vpack.c.b16 %v4852, %v4851
        %v4880 = vpack.c.b16 %v4854, %v4853
        %v4881 = vpack.c.b16 %v4856, %v4855
        %v4882 = vpack.c.b16 %v4858, %v4857
        %v4883 = vpack.c.b16 %v4860, %v4859
        %v4884 = vpack.c.b16 %v4862, %v4861
        %v4885 = vpack.c.b16 %v4864, %v4863
        %v4886 = vpack.c.b16 %v4866, %v4865
        %v4887 = vpack.c.b16 %v4868, %v4867
        %v4888 = vpack.c.b16 %v4870, %v4869
        %v4889 = vpack.c.b16 %v4872, %v4871
        %v4890 = vpack.c.b16 %v4874, %v4873
        %4907 = vmatprep.subr.bf16.mxu0 0
        %4908 = vmatpush1.bf16.msra.mxu0 %v4875
        %4909 = vmatprep.subr.bf16.mxu0 0
        %4910 = vmatpush1.bf16.msra.mxu0 %v4876
        %4911 = vmatprep.subr.bf16.mxu0 0
        %4912 = vmatpush1.bf16.msra.mxu0 %v4877
        %4913 = vmatprep.subr.bf16.mxu0 0
        %4914 = vmatpush1.bf16.msra.mxu0 %v4878
        %4915 = vmatprep.subr.bf16.mxu0 0
        %4916 = vmatpush1.bf16.msra.mxu0 %v4879
        %4917 = vmatprep.subr.bf16.mxu0 0
        %4918 = vmatpush1.bf16.msra.mxu0 %v4880
        %4919 = vmatprep.subr.bf16.mxu0 0
        %4920 = vmatpush1.bf16.msra.mxu0 %v4881
        %4921 = vmatprep.subr.bf16.mxu0 0
        %4922 = vmatpush1.bf16.msra.mxu0 %v4882
        %4923 = vmatprep.subr.bf16.mxu0 0
        %4924 = vmatpush1.bf16.msra.mxu0 %v4883
        %4925 = vmatprep.subr.bf16.mxu0 0
        %4926 = vmatpush1.bf16.msra.mxu0 %v4884
        %4927 = vmatprep.subr.bf16.mxu0 0
        %4928 = vmatpush1.bf16.msra.mxu0 %v4885
        %4929 = vmatprep.subr.bf16.mxu0 0
        %4930 = vmatpush1.bf16.msra.mxu0 %v4886
        %4931 = vmatprep.subr.bf16.mxu0 0
        %4932 = vmatpush1.bf16.msra.mxu0 %v4887
        %4933 = vmatprep.subr.bf16.mxu0 0
        %4934 = vmatpush1.bf16.msra.mxu0 %v4888
        %4935 = vmatprep.subr.bf16.mxu0 0
        %4936 = vmatpush1.bf16.msra.mxu0 %v4889
        %4937 = vmatprep.subr.bf16.mxu0 0
        %4938 = vmatpush1.bf16.msra.mxu0 %v4890
        %4939 = vmatprep.mubr.bf16.mxu0 %v4757
        %4940 = vmatmul.mubr.bf16.gmra.mrb[0].mxu0 %v4756
        %v4941 = vpop.f32.mrb[0].mxu0
        %v4942 = vadd.f32 %v4809, %v4941
        %v4943 = vpop.f32.mrb[0].mxu0
        %v4944 = vpop.f32.mrb[0].mxu0
        %v4945 = vadd.f32 %v4809, %v4944
        %v4946 = vpop.f32.mrb[0].mxu0
        %4947 = vmatprep.mubr.bf16.mxu0 %v4759
        %4948 = vmatmul.mubr.bf16.gmra.mrb[0].mxu0 %v4758
        %v4949 = vpop.f32.mrb[0].mxu0
        %v4950 = vadd.f32 %v4809, %v4949
        %v4951 = vpop.f32.mrb[0].mxu0
        %v4952 = vpop.f32.mrb[0].mxu0
        %v4953 = vadd.f32 %v4809, %v4952
        %v4954 = vpop.f32.mrb[0].mxu0
        %4955 = vmatprep.mubr.bf16.mxu0 %v4761
        %4956 = vmatmul.mubr.bf16.gmra.mrb[0].mxu0 %v4760
        %v4957 = vpop.f32.mrb[0].mxu0
        %v4958 = vadd.f32 %v4809, %v4957
        %v4959 = vpop.f32.mrb[0].mxu0
        %v4960 = vpop.f32.mrb[0].mxu0
        %v4961 = vadd.f32 %v4809, %v4960
        %v4962 = vpop.f32.mrb[0].mxu0
        %4963 = vmatprep.mubr.bf16.mxu0 %v4763
        %4964 = vmatmul.mubr.bf16.gmra.mrb[0].mxu0 %v4762
        %v4965 = vpop.f32.mrb[0].mxu0
        %v4966 = vadd.f32 %v4809, %v4965
        %v4967 = vpop.f32.mrb[0].mxu0
        %v4968 = vpop.f32.mrb[0].mxu0
        %v4969 = vadd.f32 %v4809, %v4968
        %v4970 = vpop.f32.mrb[0].mxu0
        %4971 = vmatprep.mubr.bf16.mxu0 %v4765
        %4972 = vmatmul.mubr.bf16.gmra.mrb[0].mxu0 %v4764
        %v4973 = vpop.f32.mrb[0].mxu0
        %v4974 = vadd.f32 %v4809, %v4973
        %v4975 = vpop.f32.mrb[0].mxu0
        %v4976 = vpop.f32.mrb[0].mxu0
        %v4977 = vadd.f32 %v4809, %v4976
        %v4978 = vpop.f32.mrb[0].mxu0
        %4979 = vmatprep.mubr.bf16.mxu0 %v4767
        %4980 = vmatmul.mubr.bf16.gmra.mrb[0].mxu0 %v4766
        %v4981 = vpop.f32.mrb[0].mxu0
        %v4982 = vadd.f32 %v4809, %v4981
        %v4983 = vpop.f32.mrb[0].mxu0
        %v4984 = vpop.f32.mrb[0].mxu0
        %v4985 = vadd.f32 %v4809, %v4984
        %v4986 = vpop.f32.mrb[0].mxu0
        %4987 = vmatprep.mubr.bf16.mxu0 %v4769
        %4988 = vmatmul.mubr.bf16.gmra.mrb[0].mxu0 %v4768
        %v4989 = vpop.f32.mrb[0].mxu0
        %v4990 = vadd.f32 %v4809, %v4989
        %v4991 = vpop.f32.mrb[0].mxu0
        %v4992 = vpop.f32.mrb[0].mxu0
        %v4993 = vadd.f32 %v4809, %v4992
        %v4994 = vpop.f32.mrb[0].mxu0
        %4995 = vmatprep.mubr.bf16.mxu0 %v4771
        %4996 = vmatmul.mubr.bf16.gmra.mrb[0].mxu0 %v4770
        %v4997 = vpop.f32.mrb[0].mxu0
        %v4998 = vadd.f32 %v4809, %v4997
        %v4999 = vpop.f32.mrb[0].mxu0
        %v5000 = vpop.f32.mrb[0].mxu0
        %v5001 = vadd.f32 %v4809, %v5000
        %v5002 = vpop.f32.mrb[0].mxu0
        %5003 = vdwg.mxu0
        %v5004 = vadd.f32 %v4942, %v4479
        %v5005 = vadd.f32 %v4945, %v4480
        %v5006 = vadd.f32 %v4950, %v4481
        %v5007 = vadd.f32 %v4953, %v4482
        %v5008 = vadd.f32 %v4958, %v4483
        %v5009 = vadd.f32 %v4961, %v4484
        %v5010 = vadd.f32 %v4966, %v4485
        %v5011 = vadd.f32 %v4969, %v4486
        %v5012 = vadd.f32 %v4974, %v4487
        %v5013 = vadd.f32 %v4977, %v4488
        %v5014 = vadd.f32 %v4982, %v4489
        %v5015 = vadd.f32 %v4985, %v4490
        %v5016 = vadd.f32 %v4990, %v4491
        %v5017 = vadd.f32 %v4993, %v4492
        %v5018 = vadd.f32 %v4998, %v4493
        %v5019 = vadd.f32 %v5001, %v4494
        %v5020 = vld [vmem:[%s655] sm:$0x1]
        %v5021 = vld [vmem:[%s658] sm:$0x1]
        %5022 = vadd.xlane.f32.xlu0 %v5004
        %v5023 = vpop.xlane.xlu0 %5022
        %5024 = vadd.xlane.f32.xlu0 %v5005
        %v5025 = vpop.xlane.xlu0 %5024
        %5026 = vadd.xlane.f32.xlu0 %v5006
        %v5027 = vpop.xlane.xlu0 %5026
        %5028 = vadd.xlane.f32.xlu0 %v5007
        %v5029 = vpop.xlane.xlu0 %5028
        %5030 = vadd.xlane.f32.xlu0 %v5008
        %v5031 = vpop.xlane.xlu0 %5030
        %5032 = vadd.xlane.f32.xlu0 %v5009
        %v5033 = vpop.xlane.xlu0 %5032
        %5034 = vadd.xlane.f32.xlu0 %v5010
        %v5035 = vpop.xlane.xlu0 %5034
        %5036 = vadd.xlane.f32.xlu0 %v5011
        %v5037 = vpop.xlane.xlu0 %5036
        %5038 = vadd.xlane.f32.xlu0 %v5012
        %v5039 = vpop.xlane.xlu0 %5038
        %5040 = vadd.xlane.f32.xlu0 %v5013
        %v5041 = vpop.xlane.xlu0 %5040
        %5042 = vadd.xlane.f32.xlu0 %v5014
        %v5043 = vpop.xlane.xlu0 %5042
        %5044 = vadd.xlane.f32.xlu0 %v5015
        %v5045 = vpop.xlane.xlu0 %5044
        %5046 = vadd.xlane.f32.xlu0 %v5016
        %v5047 = vpop.xlane.xlu0 %5046
        %5048 = vadd.xlane.f32.xlu0 %v5017
        %v5049 = vpop.xlane.xlu0 %5048
        %5050 = vadd.xlane.f32.xlu0 %v5018
        %v5051 = vpop.xlane.xlu0 %5050
        %5052 = vadd.xlane.f32.xlu0 %v5019
        %v5053 = vpop.xlane.xlu0 %5052
        %v5054 = vmul.f32 %v5023, %v4306
        %v5055 = vmul.f32 %v5025, %v4306
        %v5056 = vmul.f32 %v5027, %v4306
        %v5057 = vmul.f32 %v5029, %v4306
        %v5058 = vmul.f32 %v5031, %v4306
        %v5059 = vmul.f32 %v5033, %v4306
        %v5060 = vmul.f32 %v5035, %v4306
        %v5061 = vmul.f32 %v5037, %v4306
        %v5062 = vmul.f32 %v5039, %v4306
        %v5063 = vmul.f32 %v5041, %v4306
        %v5064 = vmul.f32 %v5043, %v4306
        %v5065 = vmul.f32 %v5045, %v4306
        %v5066 = vmul.f32 %v5047, %v4306
        %v5067 = vmul.f32 %v5049, %v4306
        %v5068 = vmul.f32 %v5051, %v4306
        %v5069 = vmul.f32 %v5053, %v4306
        %v5070 = vsub.f32 %v5004, %v5054
        %v5071 = vsub.f32 %v5005, %v5055
        %v5072 = vsub.f32 %v5006, %v5056
        %v5073 = vsub.f32 %v5007, %v5057
        %v5074 = vsub.f32 %v5008, %v5058
        %v5075 = vsub.f32 %v5009, %v5059
        %v5076 = vsub.f32 %v5010, %v5060
        %v5077 = vsub.f32 %v5011, %v5061
        %v5078 = vsub.f32 %v5012, %v5062
        %v5079 = vsub.f32 %v5013, %v5063
        %v5080 = vsub.f32 %v5014, %v5064
        %v5081 = vsub.f32 %v5015, %v5065
        %v5082 = vsub.f32 %v5016, %v5066
        %v5083 = vsub.f32 %v5017, %v5067
        %v5084 = vsub.f32 %v5018, %v5068
        %v5085 = vsub.f32 %v5019, %v5069
        %v5086 = vmul.f32 %v5070, %v5070
        %v5087 = vmul.f32 %v5071, %v5071
        %v5088 = vmul.f32 %v5072, %v5072
        %v5089 = vmul.f32 %v5073, %v5073
        %v5090 = vmul.f32 %v5074, %v5074
        %v5091 = vmul.f32 %v5075, %v5075
        %v5092 = vmul.f32 %v5076, %v5076
        %v5093 = vmul.f32 %v5077, %v5077
        %v5094 = vmul.f32 %v5078, %v5078
        %v5095 = vmul.f32 %v5079, %v5079
        %v5096 = vmul.f32 %v5080, %v5080
        %v5097 = vmul.f32 %v5081, %v5081
        %v5098 = vmul.f32 %v5082, %v5082
        %v5099 = vmul.f32 %v5083, %v5083
        %v5100 = vmul.f32 %v5084, %v5084
        %v5101 = vmul.f32 %v5085, %v5085
        %5102 = vadd.xlane.f32.xlu0 %v5086
        %v5103 = vpop.xlane.xlu0 %5102
        %5104 = vadd.xlane.f32.xlu0 %v5087
        %v5105 = vpop.xlane.xlu0 %5104
        %5106 = vadd.xlane.f32.xlu0 %v5088
        %v5107 = vpop.xlane.xlu0 %5106
        %5108 = vadd.xlane.f32.xlu0 %v5089
        %v5109 = vpop.xlane.xlu0 %5108
        %5110 = vadd.xlane.f32.xlu0 %v5090
        %v5111 = vpop.xlane.xlu0 %5110
        %5112 = vadd.xlane.f32.xlu0 %v5091
        %v5113 = vpop.xlane.xlu0 %5112
        %5114 = vadd.xlane.f32.xlu0 %v5092
        %v5115 = vpop.xlane.xlu0 %5114
        %5116 = vadd.xlane.f32.xlu0 %v5093
        %v5117 = vpop.xlane.xlu0 %5116
        %5118 = vadd.xlane.f32.xlu0 %v5094
        %v5119 = vpop.xlane.xlu0 %5118
        %5120 = vadd.xlane.f32.xlu0 %v5095
        %v5121 = vpop.xlane.xlu0 %5120
        %5122 = vadd.xlane.f32.xlu0 %v5096
        %v5123 = vpop.xlane.xlu0 %5122
        %5124 = vadd.xlane.f32.xlu0 %v5097
        %v5125 = vpop.xlane.xlu0 %5124
        %5126 = vadd.xlane.f32.xlu0 %v5098
        %v5127 = vpop.xlane.xlu0 %5126
        %5128 = vadd.xlane.f32.xlu0 %v5099
        %v5129 = vpop.xlane.xlu0 %5128
        %5130 = vadd.xlane.f32.xlu0 %v5100
        %v5131 = vpop.xlane.xlu0 %5130
        %5132 = vadd.xlane.f32.xlu0 %v5101
        %v5133 = vpop.xlane.xlu0 %5132
        %v5134 = vmul.f32 %v5103, %v4306
        %v5135 = vmul.f32 %v5105, %v4306
        %v5136 = vmul.f32 %v5107, %v4306
        %v5137 = vmul.f32 %v5109, %v4306
        %v5138 = vmul.f32 %v5111, %v4306
        %v5139 = vmul.f32 %v5113, %v4306
        %v5140 = vmul.f32 %v5115, %v4306
        %v5141 = vmul.f32 %v5117, %v4306
        %v5142 = vmul.f32 %v5119, %v4306
        %v5143 = vmul.f32 %v5121, %v4306
        %v5144 = vmul.f32 %v5123, %v4306
        %v5145 = vmul.f32 %v5125, %v4306
        %v5146 = vmul.f32 %v5127, %v4306
        %v5147 = vmul.f32 %v5129, %v4306
        %v5148 = vmul.f32 %v5131, %v4306
        %v5149 = vmul.f32 %v5133, %v4306
        %v5150 = vadd.f32 %v5134, 1e-05
        %v5151 = vadd.f32 %v5135, 1e-05
        %v5152 = vadd.f32 %v5136, 1e-05
        %v5153 = vadd.f32 %v5137, 1e-05
        %v5154 = vadd.f32 %v5138, 1e-05
        %v5155 = vadd.f32 %v5139, 1e-05
        %v5156 = vadd.f32 %v5140, 1e-05
        %v5157 = vadd.f32 %v5141, 1e-05
        %v5158 = vadd.f32 %v5142, 1e-05
        %v5159 = vadd.f32 %v5143, 1e-05
        %v5160 = vadd.f32 %v5144, 1e-05
        %v5161 = vadd.f32 %v5145, 1e-05
        %v5162 = vadd.f32 %v5146, 1e-05
        %v5163 = vadd.f32 %v5147, 1e-05
        %v5164 = vadd.f32 %v5148, 1e-05
        %v5165 = vadd.f32 %v5149, 1e-05
        %v5166 = vrsqrt.pop %v5150
        %v5167 = vrsqrt.pop %v5151
        %v5168 = vrsqrt.pop %v5152
        %v5169 = vrsqrt.pop %v5153
        %v5170 = vrsqrt.pop %v5154
        %v5171 = vrsqrt.pop %v5155
        %v5172 = vrsqrt.pop %v5156
        %v5173 = vrsqrt.pop %v5157
        %v5174 = vrsqrt.pop %v5158
        %v5175 = vrsqrt.pop %v5159
        %v5176 = vrsqrt.pop %v5160
        %v5177 = vrsqrt.pop %v5161
        %v5178 = vrsqrt.pop %v5162
        %v5179 = vrsqrt.pop %v5163
        %v5180 = vrsqrt.pop %v5164
        %v5181 = vrsqrt.pop %v5165
        %v5182 = vmul.f32 %v5070, %v5166
        %v5183 = vmul.f32 %v5071, %v5167
        %v5184 = vmul.f32 %v5072, %v5168
        %v5185 = vmul.f32 %v5073, %v5169
        %v5186 = vmul.f32 %v5074, %v5170
        %v5187 = vmul.f32 %v5075, %v5171
        %v5188 = vmul.f32 %v5076, %v5172
        %v5189 = vmul.f32 %v5077, %v5173
        %v5190 = vmul.f32 %v5078, %v5174
        %v5191 = vmul.f32 %v5079, %v5175
        %v5192 = vmul.f32 %v5080, %v5176
        %v5193 = vmul.f32 %v5081, %v5177
        %v5194 = vmul.f32 %v5082, %v5178
        %v5195 = vmul.f32 %v5083, %v5179
        %v5196 = vmul.f32 %v5084, %v5180
        %v5197 = vmul.f32 %v5085, %v5181
        %v5199 = vlaneseq
        %v5200 = vshrl.u32 %v5199, 7
        %v5201 = vsub.s32 0, %v5200
        %v5202 = vrot.slane %v5020, %v5201
        %v5204 = vmul.f32 %v5182, %v5202
        %v5205 = vmul.f32 %v5183, %v5202
        %v5206 = vmul.f32 %v5184, %v5202
        %v5207 = vmul.f32 %v5185, %v5202
        %v5208 = vmul.f32 %v5186, %v5202
        %v5209 = vmul.f32 %v5187, %v5202
        %v5210 = vmul.f32 %v5188, %v5202
        %v5211 = vmul.f32 %v5189, %v5202
        %v5212 = vmul.f32 %v5190, %v5202
        %v5213 = vmul.f32 %v5191, %v5202
        %v5214 = vmul.f32 %v5192, %v5202
        %v5215 = vmul.f32 %v5193, %v5202
        %v5216 = vmul.f32 %v5194, %v5202
        %v5217 = vmul.f32 %v5195, %v5202
        %v5218 = vmul.f32 %v5196, %v5202
        %v5219 = vmul.f32 %v5197, %v5202
        %v5221 = vlaneseq
        %v5222 = vshrl.u32 %v5221, 7
        %v5223 = vsub.s32 0, %v5222
        %v5224 = vrot.slane %v5021, %v5223
        %v5226 = vadd.f32 %v5204, %v5224
        %v5227 = vadd.f32 %v5205, %v5224
        %v5228 = vadd.f32 %v5206, %v5224
        %v5229 = vadd.f32 %v5207, %v5224
        %v5230 = vadd.f32 %v5208, %v5224
        %v5231 = vadd.f32 %v5209, %v5224
        %v5232 = vadd.f32 %v5210, %v5224
        %v5233 = vadd.f32 %v5211, %v5224
        %v5234 = vadd.f32 %v5212, %v5224
        %v5235 = vadd.f32 %v5213, %v5224
        %v5236 = vadd.f32 %v5214, %v5224
        %v5237 = vadd.f32 %v5215, %v5224
        %v5238 = vadd.f32 %v5216, %v5224
        %v5239 = vadd.f32 %v5217, %v5224
        %v5240 = vadd.f32 %v5218, %v5224
        %v5241 = vadd.f32 %v5219, %v5224
        %5242 = vst [vmem:[#allocation2] sm:$0xff] %v5226
        %5243 = vst [vmem:[#allocation2 + $0x8] sm:$0xff] %v5227
        %5244 = vst [vmem:[#allocation2 + $0x10] sm:$0xff] %v5228
        %5245 = vst [vmem:[#allocation2 + $0x18] sm:$0xff] %v5229
        %5246 = vst [vmem:[#allocation2 + $0x20] sm:$0xff] %v5230
        %5247 = vst [vmem:[#allocation2 + $0x28] sm:$0xff] %v5231
        %5248 = vst [vmem:[#allocation2 + $0x30] sm:$0xff] %v5232
        %5249 = vst [vmem:[#allocation2 + $0x38] sm:$0xff] %v5233
        %5250 = vst [vmem:[#allocation2 + $0x40] sm:$0xff] %v5234
        %5251 = vst [vmem:[#allocation2 + $0x48] sm:$0xff] %v5235
        %5252 = vst [vmem:[#allocation2 + $0x50] sm:$0xff] %v5236
        %5253 = vst [vmem:[#allocation2 + $0x58] sm:$0xff] %v5237
        %5254 = vst [vmem:[#allocation2 + $0x60] sm:$0xff] %v5238
        %5255 = vst [vmem:[#allocation2 + $0x68] sm:$0xff] %v5239
        %5256 = vst [vmem:[#allocation2 + $0x70] sm:$0xff] %v5240
        %5257 = vst [vmem:[#allocation2 + $0x78] sm:$0xff] %v5241
        // Predicated region
        $region85: #{text_encoder.1} parent=79 // pred_check
          %p5258 = pneg %p415
        $region86: #{text_encoder.1} parent=79 // pred_check_branch
          %5260 = sbr.rel (%p5258) target = $region88
        $region87: #{text_encoder.1} parent=79 // pred_region
          %s5262 = ssub.s32 2048, 2048
          %5263 = vsyncadd [#allocation3], %s5262
          %s5264 = sshll.u32 [#allocation2], 4
          %s5265 = int_to_ptr.vmem [resolvable:$true] %s5264
          %5270 = dma.vmem_to_hbm [thread:$0]  %s5265, 2048, %s15, [#allocation3], 128, 128, 8
        $region88: #{text_encoder.1} parent=79 // pred_fallthru
          _
        // Predicated region
        $region89: #{text_encoder.1} parent=79 // pred_check
          %p5271 = pneg %p415
        $region90: #{text_encoder.1} parent=79 // pred_check_branch
          %5273 = sbr.rel (%p5271) target = $region92
        $region91: #{text_encoder.1} parent=79 // pred_region
          %5274 = dma.done [#allocation3], 2048
        $region92: #{text_encoder.1} parent=79 // pred_fallthru
          _
      $region80: #{text_encoder.1} parent=5 // pred_fallthru
        _
      %p5275 = scmp.le.s32.totalorder 2, %s22
      // Predicated region
      $region93: #{text_encoder.1} parent=5 // pred_check
        %p5276 = pneg %p5275
      $region94: #{text_encoder.1} parent=5 // pred_check_branch
        %5278 = sbr.rel (%p5276) target = $region96
      $region95: #{text_encoder.1} parent=5 // pred_region
        %s5279 = ssub.s32 %s22, 2
      $region96: #{text_encoder.1} parent=5 // pred_fallthru
        _
    $region6: #{text_encoder.1} parent=1 // loop_footer
      %s26 = sadd.s32 1, %s22
    $region7: #{text_encoder.1} parent=1 // loop_footer_branch
      %21 = sbr.rel target = $region3
    $region8: #{text_encoder.1} parent=1 // loop_exit
      _
    %5280 = vsyncpa [#allocation3], 1
    %s5281 = scalar_lea.sflag [#allocation3], 1
    %5282 = vsyncpa %s5281, 1

</llo_original>
